<compile_context>
chip_gen: v7x
topology: tpu7x:2x2x1
jax: 0.10.0
libtpu: 0.0.40
codegen_flags: <defaults>
</compile_context>

<pallas_src>
import functools
import math

import numpy as np

import jax
import jax.numpy as jnp
from jax.experimental import pallas as pl
from jax.experimental.pallas import tpu as pltpu


CORR_SIZE = 3          # patch_size of spatial_correlation_sample
NEG_SLOPE = 0.01       # nn.LeakyReLU default negative slope

_CONV_OFFSETS = tuple((dy, dx) for dy in (-1, 0, 1) for dx in (-1, 0, 1))  # 3x3 taps


def _fold_offsets(patch_size, scale):
    """Patch displacement -> feature-space offset for up(s) -> corr -> down(1/s)."""
    r = (patch_size - 1) // 2
    return tuple((math.floor((dy - r) / scale), math.floor((dx - r) / scale))
                 for dy in range(patch_size) for dx in range(patch_size))


# ----------------------------- Pallas kernel ------------------------------------

def _corr_lstm_level_kernel(
    feat1_ref, feat2_ref, h_pre_ref, c_pre_ref,
    sel_ref, w_gate_ref, b_gate_ref, mask_ref,
    h_next_ref, c_next_ref,
    *, C, corr_shifts, conv_shifts,
):
    """Channel-on-sublane / pixel-on-lane layout.

    Refs:  feat1/feat2 : (1, Cin, L) f32      h_pre/c_pre : (1, C, L) f32
           sel         : (C, C, Cin) bf16     w_gate      : (9, 4C, 2C) bf16
           b_gate      : (4C, 1) f32          mask        : (len(corr)+9, 1, L) f32
           outputs     : (1, C, L) f32        with L = batch_block * H * W.
    """
    f1 = feat1_ref[0]                       # (Cin, L)
    f2 = feat2_ref[0]                       # (Cin, L)
    h_pre = h_pre_ref[0]                    # (C, L)
    c_pre = c_pre_ref[0]                    # (C, L)
    L = f1.shape[-1]
    n_corr = len(corr_shifts)

    def shifted(x, s):
        # spatial shift (oy, ox) == lane roll by -(oy*W + ox); lanes whose shifted
        # read falls outside the image (zero-padding / row- and image-wrap-around)
        # are zeroed by the precomputed mask.
        return jnp.roll(x, -s, axis=-1) if s else x

    # ---- correlation (folded nearest up/corr/down): per-offset accumulation -----
    # corr[k, p] = sum_c feat1[c, p] * feat2[c, p + shift_k]   (0 outside the image)
    # TODO(synk): assumes spatial_correlation_sampler returns the raw per-displacement
    # channel sum (no normalization), with patch index 0 <-> displacement -r.
    corr = jnp.zeros((C, L), jnp.float32)
    for k, s in enumerate(corr_shifts):
        prod = (f1 * shifted(f2, s)) * mask_ref[k]               # (Cin, L) f32
        corr = corr + jnp.dot(sel_ref[k], prod.astype(jnp.bfloat16),
                              preferred_element_type=jnp.float32)
    corr = jnp.where(corr > 0, corr, NEG_SLOPE * corr)           # LeakyReLU

    # ---- ConvLSTM cell: 3x3 conv on [corr, h_pre] as 9 accumulating tap matmuls --
    lstm_in = jnp.concatenate([corr, h_pre], axis=0)             # (2C, L) f32
    gates = jnp.zeros((4 * C, L), jnp.float32)
    for t, s in enumerate(conv_shifts):
        tap = (shifted(lstm_in, s) * mask_ref[n_corr + t]).astype(jnp.bfloat16)
        gates = gates + jnp.dot(w_gate_ref[t], tap,
                                preferred_element_type=jnp.float32)
    gates = gates + b_gate_ref[...]                              # (4C, 1) lane-broadcast

    i_g = jax.nn.sigmoid(gates[0:C])
    f_g = jax.nn.sigmoid(gates[C:2 * C])
    o_g = jax.nn.sigmoid(gates[2 * C:3 * C])
    g_g = jnp.tanh(gates[3 * C:4 * C])

    c_next = f_g * c_pre + i_g * g_g
    h_next = o_g * jnp.tanh(c_next)
    c_next_ref[0] = c_next
    h_next_ref[0] = h_next


# ----------------------------- wrapper ------------------------------------------

def _pick_batch_block(B, HW):
    # Smallest divisor of B whose packed pixel count fills a full 128-lane vreg
    # (lane-dense stores, amortized per-step overhead at low-res levels) while
    # keeping the grid as large as possible (megacore sharding on v7x).
    for bb in range(1, B + 1):
        if B % bb == 0 and bb * HW >= 128:
            return bb
    return B


def corr_lstm_level(feat1, feat2, h_pre, c_pre, params, scale,
                    patch_size=CORR_SIZE, batch_block=None):
    """One pyramid level of CorrLSTM_upsample_resize_no (NHWC in / NHWC out)."""
    # TODO(synk): only integer upsample scales are supported (needed for the folded
    # nearest-up -> correlate -> nearest-down offset / mask formulation).
    B, H, W, Cin = feat1.shape
    HW = H * W
    C = patch_size * patch_size
    offsets = _fold_offsets(patch_size, scale)

    bb = batch_block or _pick_batch_block(B, HW)
    assert B % bb == 0, "batch_block must divide the batch"
    G = B // bb
    L = bb * HW

    corr_shifts = tuple(oy * W + ox for oy, ox in offsets)
    conv_shifts = tuple(dy * W + dx for dy, dx in _CONV_OFFSETS)

    # Static validity masks: zero lanes whose shifted read falls outside the image
    # (also kills the row / image wrap-around introduced by the lane roll).
    yy, xx = np.mgrid[0:H, 0:W]

    def make_masks(offs):
        rows = []
        for oy, ox in offs:
            m = ((yy + oy >= 0) & (yy + oy < H) &
                 (xx + ox >= 0) & (xx + ox < W)).astype(np.float32).reshape(-1)
            rows.append(np.tile(m, bb))
        return np.stack(rows)

    masks = jnp.asarray(
        np.concatenate([make_masks(offsets), make_masks(_CONV_OFFSETS)], axis=0)
    )[:, None, :]                                                # (C + 9, 1, L)

    # Block-ones selector: corr row k sums the Cin products of offset k (bf16-exact).
    sel = jnp.asarray(
        np.repeat(np.eye(C, dtype=np.float32)[:, :, None], Cin, axis=2),
        jnp.bfloat16)                                            # (C, C, Cin)
    w_gate = params["w_gate"].transpose(0, 2, 1).astype(jnp.bfloat16)   # (9, 4C, 2C)
    b_gate = params["b_gate"].reshape(4 * C, 1).astype(jnp.float32)     # (4C, 1)

    # Layout plumbing (kept in the wrapper): NHWC -> channel-major, pixels on lanes.
    def to_lanes(x):   # (B, H, W, c) -> (G, c, bb*H*W)
        c = x.shape[-1]
        return x.reshape(G, bb, HW, c).transpose(0, 3, 1, 2).reshape(G, c, L)

    def from_lanes(y):  # (G, C, bb*H*W) -> (B, H, W, C)
        return y.reshape(G, C, bb, HW).transpose(0, 2, 3, 1).reshape(B, H, W, C)

    kernel = functools.partial(_corr_lstm_level_kernel, C=C,
                               corr_shifts=corr_shifts, conv_shifts=conv_shifts)

    h_t, c_t = pl.pallas_call(
        kernel,
        grid=(G,),
        out_shape=(jax.ShapeDtypeStruct((G, C, L), jnp.float32),) * 2,
        in_specs=[
            pl.BlockSpec((1, Cin, L), lambda g: (g, 0, 0)),        # feat1 (current)
            pl.BlockSpec((1, Cin, L), lambda g: (g, 0, 0)),        # feat2 (previous)
            pl.BlockSpec((1, C, L), lambda g: (g, 0, 0)),          # h_pre
            pl.BlockSpec((1, C, L), lambda g: (g, 0, 0)),          # c_pre
            pl.BlockSpec((C, C, Cin), lambda g: (0, 0, 0)),        # corr selector
            pl.BlockSpec((9, 4 * C, 2 * C), lambda g: (0, 0, 0)),  # gate conv weight
            pl.BlockSpec((4 * C, 1), lambda g: (0, 0)),            # gate conv bias
            pl.BlockSpec(masks.shape, lambda g: (0, 0, 0)),        # shift validity masks
        ],
        out_specs=(pl.BlockSpec((1, C, L), lambda g: (g, 0, 0)),) * 2,
        compiler_params=pltpu.CompilerParams(
            dimension_semantics=("parallel",),
            vmem_limit_bytes=32 * 1024 * 1024),
    )(to_lanes(feat1), to_lanes(feat2), to_lanes(h_pre), to_lanes(c_pre),
      sel, w_gate, b_gate, masks)

    return from_lanes(h_t), from_lanes(c_t)


def corr_lstm_forward(x_pre, x, motion_state, params, scales):
    """Mirrors CorrLSTM_upsample_resize_no.forward (feat1 = x[i], feat2 = x_pre[i])."""
    state_next = []
    for feat1, feat2, (h_pre, c_pre), p, s in zip(x, x_pre, motion_state, params, scales):
        # TODO(synk): the feat width==1 branch (reuse of the previous level's
        # dw_corr_feat + nearest 1/3 downsample) is not implemented.
        state_next.append(corr_lstm_level(feat1, feat2, h_pre, c_pre, p, s))
    return state_next


# ----------------------------- pure-JAX reference --------------------------------
# Literal pipeline: nearest upsample -> correlation -> LeakyReLU -> nearest downsample
# -> 3x3 conv ConvLSTM cell.  Cross-checks the folded-offset / mask kernel formulation.

def corr_lstm_reference(x_pre, x, motion_state, params, scales, patch_size=CORR_SIZE):
    C = patch_size * patch_size
    r = (patch_size - 1) // 2
    state_next = []
    for feat1, feat2, (h_pre, c_pre), p, s in zip(x, x_pre, motion_state, params, scales):
        B, H, W, Cin = feat1.shape
        up1 = jnp.repeat(jnp.repeat(feat1, s, axis=1), s, axis=2)
        up2 = jnp.repeat(jnp.repeat(feat2, s, axis=1), s, axis=2)
        Hs, Ws = H * s, W * s
        pad2 = jnp.pad(up2, ((0, 0), (r, r), (r, r), (0, 0)))
        corr = jnp.stack(
            [jnp.sum(up1 * pad2[:, dy:dy + Hs, dx:dx + Ws, :], axis=-1)
             for dy in range(patch_size) for dx in range(patch_size)], axis=-1)
        corr = jnp.where(corr > 0, corr, NEG_SLOPE * corr)
        corr = corr[:, ::s, ::s, :]                          # nearest downsample by 1/s

        lstm_in = jnp.concatenate([corr, h_pre], axis=-1)
        w4 = p["w_gate"].reshape(3, 3, 2 * C, 4 * C)
        conv = jax.lax.conv_general_dilated(
            lstm_in, w4, window_strides=(1, 1), padding="SAME",
            dimension_numbers=("NHWC", "HWIO", "NHWC"),
            precision=jax.lax.Precision.HIGHEST)
        conv = conv + p["b_gate"].reshape(1, 1, 1, -1)

        i = jax.nn.sigmoid(conv[..., 0:C])
        f = jax.nn.sigmoid(conv[..., C:2 * C])
        o = jax.nn.sigmoid(conv[..., 2 * C:3 * C])
        g = jnp.tanh(conv[..., 3 * C:4 * C])
        c_next = f * c_pre + i * g
        h_next = o * jnp.tanh(c_next)
        state_next.append((h_next, c_next))
    return state_next


# ----------------------------- params / main -------------------------------------

def init_level_params(key, C):
    # lstm_convolution: Conv2d(2*C -> 4*C, 3x3);  init_weights(): bias[C:2C] (forget) = 1
    w_gate = 0.05 * jax.random.normal(key, (9, 2 * C, 4 * C), jnp.float32)
    b_gate = jnp.zeros((4 * C,), jnp.float32).at[C:2 * C].set(1.0)
    return dict(w_gate=w_gate, b_gate=b_gate)


if __name__ == "__main__":
    key = jax.random.PRNGKey(0)
    B = 2
    corr_size = CORR_SIZE
    C = corr_size * corr_size          # state channels = corr_size^2 = 9
    upsample_param = 1
    in_channels = (16, 32)             # small 2-level pyramid
    spatial = (16, 8)
    scales = tuple(int(upsample_param * (2 ** i)) for i in range(len(in_channels)))

    x, x_pre, motion_state, params = [], [], [], []
    for cin, s_hw in zip(in_channels, spatial):
        key, k1, k2, kh, kc, kp = jax.random.split(key, 6)
        x.append(jax.random.normal(k1, (B, s_hw, s_hw, cin), jnp.float32))
        x_pre.append(jax.random.normal(k2, (B, s_hw, s_hw, cin), jnp.float32))
        motion_state.append(
            (jax.random.normal(kh, (B, s_hw, s_hw, C), jnp.float32),
             jax.random.normal(kc, (B, s_hw, s_hw, C), jnp.float32)))
        params.append(init_level_params(kp, C))

    state_next = corr_lstm_forward(x_pre, x, motion_state, params, scales)
    jax.block_until_ready(state_next)

    # correctness check against the literal (upsample / correlate / downsample) reference
    ref_next = corr_lstm_reference(x_pre, x, motion_state, params, scales)
    # bf16 MXU operands (per perf review) vs HIGHEST-precision f32 reference; error is
    # dominated by bf16 quantization of O(+-20) correlation values feeding the gates.
    tol = 1e-1
    for lvl in range(len(in_channels)):
        for got, want in zip(state_next[lvl], ref_next[lvl]):
            err = float(jnp.max(jnp.abs(got - want)))
            assert err < tol, f"level {lvl}: max abs err {err}"

    print("KERNEL_OK")
</pallas_src>

<mosaic_0001>
module attributes {stable_mosaic.version = 11 : i64} {
  func.func @_corr_lstm_level_kernel(%arg0: i32, %arg1: memref<1x16x256xf32, #tpu.memory_space<vmem>>, %arg2: memref<1x16x256xf32, #tpu.memory_space<vmem>>, %arg3: memref<1x9x256xf32, #tpu.memory_space<vmem>>, %arg4: memref<1x9x256xf32, #tpu.memory_space<vmem>>, %arg5: memref<9x9x16xbf16, #tpu.memory_space<vmem>>, %arg6: memref<9x36x18xbf16, #tpu.memory_space<vmem>>, %arg7: memref<36x1xf32, #tpu.memory_space<vmem>>, %arg8: memref<18x1x256xf32, #tpu.memory_space<vmem>>, %arg9: memref<1x9x256xf32, #tpu.memory_space<vmem>>, %arg10: memref<1x9x256xf32, #tpu.memory_space<vmem>>) attributes {dimension_semantics = [#tpu.dimension_semantics<parallel>], iteration_bounds = array<i64: 2>, scalar_prefetch = 0 : i64, scratch_operands = 0 : i64, tpu.core_type = #tpu.core_type<tc>, window_params = [{transform_indices = @transform_0, window_bounds = array<i64: 1, 16, 256>}, {transform_indices = @transform_1, window_bounds = array<i64: 1, 16, 256>}, {transform_indices = @transform_2, window_bounds = array<i64: 1, 9, 256>}, {transform_indices = @transform_3, window_bounds = array<i64: 1, 9, 256>}, {pipeline_mode = #tpu.pipeline_mode<synchronous>, transform_indices = @transform_4, window_bounds = array<i64: 9, 9, 16>}, {pipeline_mode = #tpu.pipeline_mode<synchronous>, transform_indices = @transform_5, window_bounds = array<i64: 9, 36, 18>}, {pipeline_mode = #tpu.pipeline_mode<synchronous>, transform_indices = @transform_6, window_bounds = array<i64: 36, 1>}, {pipeline_mode = #tpu.pipeline_mode<synchronous>, transform_indices = @transform_7, window_bounds = array<i64: 18, 1, 256>}, {transform_indices = @transform_8, window_bounds = array<i64: 1, 9, 256>}, {transform_indices = @transform_9, window_bounds = array<i64: 1, 9, 256>}]} {
    %c0 = arith.constant 0 : index
    %c0_0 = arith.constant 0 : index
    %c0_1 = arith.constant 0 : index
    %0 = vector.load %arg1[%c0, %c0_0, %c0_1] : memref<1x16x256xf32, #tpu.memory_space<vmem>>, vector<1x16x256xf32>
    %1 = vector.shape_cast %0 : vector<1x16x256xf32> to vector<16x256xf32>
    %c0_2 = arith.constant 0 : index
    %c0_3 = arith.constant 0 : index
    %c0_4 = arith.constant 0 : index
    %2 = vector.load %arg2[%c0_2, %c0_3, %c0_4] : memref<1x16x256xf32, #tpu.memory_space<vmem>>, vector<1x16x256xf32>
    %3 = vector.shape_cast %2 : vector<1x16x256xf32> to vector<16x256xf32>
    %c0_5 = arith.constant 0 : index
    %c0_6 = arith.constant 0 : index
    %c0_7 = arith.constant 0 : index
    %4 = vector.load %arg3[%c0_5, %c0_6, %c0_7] : memref<1x9x256xf32, #tpu.memory_space<vmem>>, vector<1x9x256xf32>
    %5 = vector.shape_cast %4 : vector<1x9x256xf32> to vector<9x256xf32>
    %c0_8 = arith.constant 0 : index
    %c0_9 = arith.constant 0 : index
    %c0_10 = arith.constant 0 : index
    %6 = vector.load %arg4[%c0_8, %c0_9, %c0_10] : memref<1x9x256xf32, #tpu.memory_space<vmem>>, vector<1x9x256xf32>
    %7 = vector.shape_cast %6 : vector<1x9x256xf32> to vector<9x256xf32>
    %cst = arith.constant 0.000000e+00 : f32
    %8 = vector.broadcast %cst : f32 to vector<9x256xf32>
    %9 = vector.extract_strided_slice %3 {offsets = [0, 239], sizes = [16, 17], strides = [1, 1]} : vector<16x256xf32> to vector<16x17xf32>
    %10 = vector.extract_strided_slice %3 {offsets = [0, 0], sizes = [16, 239], strides = [1, 1]} : vector<16x256xf32> to vector<16x239xf32>
    %11 = tpu.concatenate %9, %10 in 1 : vector<16x17xf32>, vector<16x239xf32> -> vector<16x256xf32>
    %12 = arith.mulf %1, %11 : vector<16x256xf32>
    %c0_11 = arith.constant 0 : index
    %c0_12 = arith.constant 0 : index
    %c0_13 = arith.constant 0 : index
    %13 = vector.load %arg8[%c0_11, %c0_12, %c0_13] : memref<18x1x256xf32, #tpu.memory_space<vmem>>, vector<1x1x256xf32>
    %14 = vector.shape_cast %13 : vector<1x1x256xf32> to vector<1x256xf32>
    %15 = vector.broadcast %14 : vector<1x256xf32> to vector<16x256xf32>
    %16 = arith.mulf %12, %15 : vector<16x256xf32>
    %c0_14 = arith.constant 0 : index
    %c0_15 = arith.constant 0 : index
    %c0_16 = arith.constant 0 : index
    %17 = vector.load %arg5[%c0_14, %c0_15, %c0_16] : memref<9x9x16xbf16, #tpu.memory_space<vmem>>, vector<1x9x16xbf16>
    %18 = vector.shape_cast %17 : vector<1x9x16xbf16> to vector<9x16xbf16>
    %19 = arith.truncf %16 : vector<16x256xf32> to vector<16x256xbf16>
    %cst_17 = arith.constant dense<0.000000e+00> : vector<9x256xf32>
    %20 = tpu.matmul %18, %19, %cst_17 {dimension_numbers = #tpu.dot_dimension_numbers<[1], [0], [0], [1], [0, 0, 1, 1], [], []>} : vector<9x16xbf16>, vector<16x256xbf16>, vector<9x256xf32> -> vector<9x256xf32>
    %21 = arith.addf %8, %20 : vector<9x256xf32>
    %22 = vector.extract_strided_slice %3 {offsets = [0, 240], sizes = [16, 16], strides = [1, 1]} : vector<16x256xf32> to vector<16x16xf32>
    %23 = vector.extract_strided_slice %3 {offsets = [0, 0], sizes = [16, 240], strides = [1, 1]} : vector<16x256xf32> to vector<16x240xf32>
    %24 = tpu.concatenate %22, %23 in 1 : vector<16x16xf32>, vector<16x240xf32> -> vector<16x256xf32>
    %25 = arith.mulf %1, %24 : vector<16x256xf32>
    %c1 = arith.constant 1 : index
    %c0_18 = arith.constant 0 : index
    %c0_19 = arith.constant 0 : index
    %26 = vector.load %arg8[%c1, %c0_18, %c0_19] : memref<18x1x256xf32, #tpu.memory_space<vmem>>, vector<1x1x256xf32>
    %27 = vector.shape_cast %26 : vector<1x1x256xf32> to vector<1x256xf32>
    %28 = vector.broadcast %27 : vector<1x256xf32> to vector<16x256xf32>
    %29 = arith.mulf %25, %28 : vector<16x256xf32>
    %c1_20 = arith.constant 1 : index
    %c0_21 = arith.constant 0 : index
    %c0_22 = arith.constant 0 : index
    %30 = vector.load %arg5[%c1_20, %c0_21, %c0_22] : memref<9x9x16xbf16, #tpu.memory_space<vmem>>, vector<1x9x16xbf16>
    %31 = vector.shape_cast %30 : vector<1x9x16xbf16> to vector<9x16xbf16>
    %32 = arith.truncf %29 : vector<16x256xf32> to vector<16x256xbf16>
    %cst_23 = arith.constant dense<0.000000e+00> : vector<9x256xf32>
    %33 = tpu.matmul %31, %32, %cst_23 {dimension_numbers = #tpu.dot_dimension_numbers<[1], [0], [0], [1], [0, 0, 1, 1], [], []>} : vector<9x16xbf16>, vector<16x256xbf16>, vector<9x256xf32> -> vector<9x256xf32>
    %34 = arith.addf %21, %33 : vector<9x256xf32>
    %35 = vector.extract_strided_slice %3 {offsets = [0, 241], sizes = [16, 15], strides = [1, 1]} : vector<16x256xf32> to vector<16x15xf32>
    %36 = vector.extract_strided_slice %3 {offsets = [0, 0], sizes = [16, 241], strides = [1, 1]} : vector<16x256xf32> to vector<16x241xf32>
    %37 = tpu.concatenate %35, %36 in 1 : vector<16x15xf32>, vector<16x241xf32> -> vector<16x256xf32>
    %38 = arith.mulf %1, %37 : vector<16x256xf32>
    %c2 = arith.constant 2 : index
    %c0_24 = arith.constant 0 : index
    %c0_25 = arith.constant 0 : index
    %39 = vector.load %arg8[%c2, %c0_24, %c0_25] : memref<18x1x256xf32, #tpu.memory_space<vmem>>, vector<1x1x256xf32>
    %40 = vector.shape_cast %39 : vector<1x1x256xf32> to vector<1x256xf32>
    %41 = vector.broadcast %40 : vector<1x256xf32> to vector<16x256xf32>
    %42 = arith.mulf %38, %41 : vector<16x256xf32>
    %c2_26 = arith.constant 2 : index
    %c0_27 = arith.constant 0 : index
    %c0_28 = arith.constant 0 : index
    %43 = vector.load %arg5[%c2_26, %c0_27, %c0_28] : memref<9x9x16xbf16, #tpu.memory_space<vmem>>, vector<1x9x16xbf16>
    %44 = vector.shape_cast %43 : vector<1x9x16xbf16> to vector<9x16xbf16>
    %45 = arith.truncf %42 : vector<16x256xf32> to vector<16x256xbf16>
    %cst_29 = arith.constant dense<0.000000e+00> : vector<9x256xf32>
    %46 = tpu.matmul %44, %45, %cst_29 {dimension_numbers = #tpu.dot_dimension_numbers<[1], [0], [0], [1], [0, 0, 1, 1], [], []>} : vector<9x16xbf16>, vector<16x256xbf16>, vector<9x256xf32> -> vector<9x256xf32>
    %47 = arith.addf %34, %46 : vector<9x256xf32>
    %48 = vector.extract_strided_slice %3 {offsets = [0, 255], sizes = [16, 1], strides = [1, 1]} : vector<16x256xf32> to vector<16x1xf32>
    %49 = vector.extract_strided_slice %3 {offsets = [0, 0], sizes = [16, 255], strides = [1, 1]} : vector<16x256xf32> to vector<16x255xf32>
    %50 = tpu.concatenate %48, %49 in 1 : vector<16x1xf32>, vector<16x255xf32> -> vector<16x256xf32>
    %51 = arith.mulf %1, %50 : vector<16x256xf32>
    %c3 = arith.constant 3 : index
    %c0_30 = arith.constant 0 : index
    %c0_31 = arith.constant 0 : index
    %52 = vector.load %arg8[%c3, %c0_30, %c0_31] : memref<18x1x256xf32, #tpu.memory_space<vmem>>, vector<1x1x256xf32>
    %53 = vector.shape_cast %52 : vector<1x1x256xf32> to vector<1x256xf32>
    %54 = vector.broadcast %53 : vector<1x256xf32> to vector<16x256xf32>
    %55 = arith.mulf %51, %54 : vector<16x256xf32>
    %c3_32 = arith.constant 3 : index
    %c0_33 = arith.constant 0 : index
    %c0_34 = arith.constant 0 : index
    %56 = vector.load %arg5[%c3_32, %c0_33, %c0_34] : memref<9x9x16xbf16, #tpu.memory_space<vmem>>, vector<1x9x16xbf16>
    %57 = vector.shape_cast %56 : vector<1x9x16xbf16> to vector<9x16xbf16>
    %58 = arith.truncf %55 : vector<16x256xf32> to vector<16x256xbf16>
    %cst_35 = arith.constant dense<0.000000e+00> : vector<9x256xf32>
    %59 = tpu.matmul %57, %58, %cst_35 {dimension_numbers = #tpu.dot_dimension_numbers<[1], [0], [0], [1], [0, 0, 1, 1], [], []>} : vector<9x16xbf16>, vector<16x256xbf16>, vector<9x256xf32> -> vector<9x256xf32>
    %60 = arith.addf %47, %59 : vector<9x256xf32>
    %61 = arith.mulf %1, %3 : vector<16x256xf32>
    %c4 = arith.constant 4 : index
    %c0_36 = arith.constant 0 : index
    %c0_37 = arith.constant 0 : index
    %62 = vector.load %arg8[%c4, %c0_36, %c0_37] : memref<18x1x256xf32, #tpu.memory_space<vmem>>, vector<1x1x256xf32>
    %63 = vector.shape_cast %62 : vector<1x1x256xf32> to vector<1x256xf32>
    %64 = vector.broadcast %63 : vector<1x256xf32> to vector<16x256xf32>
    %65 = arith.mulf %61, %64 : vector<16x256xf32>
    %c4_38 = arith.constant 4 : index
    %c0_39 = arith.constant 0 : index
    %c0_40 = arith.constant 0 : index
    %66 = vector.load %arg5[%c4_38, %c0_39, %c0_40] : memref<9x9x16xbf16, #tpu.memory_space<vmem>>, vector<1x9x16xbf16>
    %67 = vector.shape_cast %66 : vector<1x9x16xbf16> to vector<9x16xbf16>
    %68 = arith.truncf %65 : vector<16x256xf32> to vector<16x256xbf16>
    %cst_41 = arith.constant dense<0.000000e+00> : vector<9x256xf32>
    %69 = tpu.matmul %67, %68, %cst_41 {dimension_numbers = #tpu.dot_dimension_numbers<[1], [0], [0], [1], [0, 0, 1, 1], [], []>} : vector<9x16xbf16>, vector<16x256xbf16>, vector<9x256xf32> -> vector<9x256xf32>
    %70 = arith.addf %60, %69 : vector<9x256xf32>
    %71 = vector.extract_strided_slice %3 {offsets = [0, 1], sizes = [16, 255], strides = [1, 1]} : vector<16x256xf32> to vector<16x255xf32>
    %72 = vector.extract_strided_slice %3 {offsets = [0, 0], sizes = [16, 1], strides = [1, 1]} : vector<16x256xf32> to vector<16x1xf32>
    %73 = tpu.concatenate %71, %72 in 1 : vector<16x255xf32>, vector<16x1xf32> -> vector<16x256xf32>
    %74 = arith.mulf %1, %73 : vector<16x256xf32>
    %c5 = arith.constant 5 : index
    %c0_42 = arith.constant 0 : index
    %c0_43 = arith.constant 0 : index
    %75 = vector.load %arg8[%c5, %c0_42, %c0_43] : memref<18x1x256xf32, #tpu.memory_space<vmem>>, vector<1x1x256xf32>
    %76 = vector.shape_cast %75 : vector<1x1x256xf32> to vector<1x256xf32>
    %77 = vector.broadcast %76 : vector<1x256xf32> to vector<16x256xf32>
    %78 = arith.mulf %74, %77 : vector<16x256xf32>
    %c5_44 = arith.constant 5 : index
    %c0_45 = arith.constant 0 : index
    %c0_46 = arith.constant 0 : index
    %79 = vector.load %arg5[%c5_44, %c0_45, %c0_46] : memref<9x9x16xbf16, #tpu.memory_space<vmem>>, vector<1x9x16xbf16>
    %80 = vector.shape_cast %79 : vector<1x9x16xbf16> to vector<9x16xbf16>
    %81 = arith.truncf %78 : vector<16x256xf32> to vector<16x256xbf16>
    %cst_47 = arith.constant dense<0.000000e+00> : vector<9x256xf32>
    %82 = tpu.matmul %80, %81, %cst_47 {dimension_numbers = #tpu.dot_dimension_numbers<[1], [0], [0], [1], [0, 0, 1, 1], [], []>} : vector<9x16xbf16>, vector<16x256xbf16>, vector<9x256xf32> -> vector<9x256xf32>
    %83 = arith.addf %70, %82 : vector<9x256xf32>
    %84 = vector.extract_strided_slice %3 {offsets = [0, 15], sizes = [16, 241], strides = [1, 1]} : vector<16x256xf32> to vector<16x241xf32>
    %85 = vector.extract_strided_slice %3 {offsets = [0, 0], sizes = [16, 15], strides = [1, 1]} : vector<16x256xf32> to vector<16x15xf32>
    %86 = tpu.concatenate %84, %85 in 1 : vector<16x241xf32>, vector<16x15xf32> -> vector<16x256xf32>
    %87 = arith.mulf %1, %86 : vector<16x256xf32>
    %c6 = arith.constant 6 : index
    %c0_48 = arith.constant 0 : index
    %c0_49 = arith.constant 0 : index
    %88 = vector.load %arg8[%c6, %c0_48, %c0_49] : memref<18x1x256xf32, #tpu.memory_space<vmem>>, vector<1x1x256xf32>
    %89 = vector.shape_cast %88 : vector<1x1x256xf32> to vector<1x256xf32>
    %90 = vector.broadcast %89 : vector<1x256xf32> to vector<16x256xf32>
    %91 = arith.mulf %87, %90 : vector<16x256xf32>
    %c6_50 = arith.constant 6 : index
    %c0_51 = arith.constant 0 : index
    %c0_52 = arith.constant 0 : index
    %92 = vector.load %arg5[%c6_50, %c0_51, %c0_52] : memref<9x9x16xbf16, #tpu.memory_space<vmem>>, vector<1x9x16xbf16>
    %93 = vector.shape_cast %92 : vector<1x9x16xbf16> to vector<9x16xbf16>
    %94 = arith.truncf %91 : vector<16x256xf32> to vector<16x256xbf16>
    %cst_53 = arith.constant dense<0.000000e+00> : vector<9x256xf32>
    %95 = tpu.matmul %93, %94, %cst_53 {dimension_numbers = #tpu.dot_dimension_numbers<[1], [0], [0], [1], [0, 0, 1, 1], [], []>} : vector<9x16xbf16>, vector<16x256xbf16>, vector<9x256xf32> -> vector<9x256xf32>
    %96 = arith.addf %83, %95 : vector<9x256xf32>
    %97 = vector.extract_strided_slice %3 {offsets = [0, 16], sizes = [16, 240], strides = [1, 1]} : vector<16x256xf32> to vector<16x240xf32>
    %98 = vector.extract_strided_slice %3 {offsets = [0, 0], sizes = [16, 16], strides = [1, 1]} : vector<16x256xf32> to vector<16x16xf32>
    %99 = tpu.concatenate %97, %98 in 1 : vector<16x240xf32>, vector<16x16xf32> -> vector<16x256xf32>
    %100 = arith.mulf %1, %99 : vector<16x256xf32>
    %c7 = arith.constant 7 : index
    %c0_54 = arith.constant 0 : index
    %c0_55 = arith.constant 0 : index
    %101 = vector.load %arg8[%c7, %c0_54, %c0_55] : memref<18x1x256xf32, #tpu.memory_space<vmem>>, vector<1x1x256xf32>
    %102 = vector.shape_cast %101 : vector<1x1x256xf32> to vector<1x256xf32>
    %103 = vector.broadcast %102 : vector<1x256xf32> to vector<16x256xf32>
    %104 = arith.mulf %100, %103 : vector<16x256xf32>
    %c7_56 = arith.constant 7 : index
    %c0_57 = arith.constant 0 : index
    %c0_58 = arith.constant 0 : index
    %105 = vector.load %arg5[%c7_56, %c0_57, %c0_58] : memref<9x9x16xbf16, #tpu.memory_space<vmem>>, vector<1x9x16xbf16>
    %106 = vector.shape_cast %105 : vector<1x9x16xbf16> to vector<9x16xbf16>
    %107 = arith.truncf %104 : vector<16x256xf32> to vector<16x256xbf16>
    %cst_59 = arith.constant dense<0.000000e+00> : vector<9x256xf32>
    %108 = tpu.matmul %106, %107, %cst_59 {dimension_numbers = #tpu.dot_dimension_numbers<[1], [0], [0], [1], [0, 0, 1, 1], [], []>} : vector<9x16xbf16>, vector<16x256xbf16>, vector<9x256xf32> -> vector<9x256xf32>
    %109 = arith.addf %96, %108 : vector<9x256xf32>
    %110 = vector.extract_strided_slice %3 {offsets = [0, 17], sizes = [16, 239], strides = [1, 1]} : vector<16x256xf32> to vector<16x239xf32>
    %111 = vector.extract_strided_slice %3 {offsets = [0, 0], sizes = [16, 17], strides = [1, 1]} : vector<16x256xf32> to vector<16x17xf32>
    %112 = tpu.concatenate %110, %111 in 1 : vector<16x239xf32>, vector<16x17xf32> -> vector<16x256xf32>
    %113 = arith.mulf %1, %112 : vector<16x256xf32>
    %c8 = arith.constant 8 : index
    %c0_60 = arith.constant 0 : index
    %c0_61 = arith.constant 0 : index
    %114 = vector.load %arg8[%c8, %c0_60, %c0_61] : memref<18x1x256xf32, #tpu.memory_space<vmem>>, vector<1x1x256xf32>
    %115 = vector.shape_cast %114 : vector<1x1x256xf32> to vector<1x256xf32>
    %116 = vector.broadcast %115 : vector<1x256xf32> to vector<16x256xf32>
    %117 = arith.mulf %113, %116 : vector<16x256xf32>
    %c8_62 = arith.constant 8 : index
    %c0_63 = arith.constant 0 : index
    %c0_64 = arith.constant 0 : index
    %118 = vector.load %arg5[%c8_62, %c0_63, %c0_64] : memref<9x9x16xbf16, #tpu.memory_space<vmem>>, vector<1x9x16xbf16>
    %119 = vector.shape_cast %118 : vector<1x9x16xbf16> to vector<9x16xbf16>
    %120 = arith.truncf %117 : vector<16x256xf32> to vector<16x256xbf16>
    %cst_65 = arith.constant dense<0.000000e+00> : vector<9x256xf32>
    %121 = tpu.matmul %119, %120, %cst_65 {dimension_numbers = #tpu.dot_dimension_numbers<[1], [0], [0], [1], [0, 0, 1, 1], [], []>} : vector<9x16xbf16>, vector<16x256xbf16>, vector<9x256xf32> -> vector<9x256xf32>
    %122 = arith.addf %109, %121 : vector<9x256xf32>
    %cst_66 = arith.constant 0.000000e+00 : f32
    %123 = vector.broadcast %cst_66 : f32 to vector<9x256xf32>
    %124 = arith.cmpf ogt, %122, %123 : vector<9x256xf32>
    %cst_67 = arith.constant 0.00999999977 : f32
    %125 = vector.broadcast %cst_67 : f32 to vector<9x256xf32>
    %126 = arith.mulf %125, %122 : vector<9x256xf32>
    %127 = arith.select %124, %122, %126 : vector<9x256xi1>, vector<9x256xf32>
    %128 = tpu.concatenate %127, %5 in 0 : vector<9x256xf32>, vector<9x256xf32> -> vector<18x256xf32>
    %cst_68 = arith.constant 0.000000e+00 : f32
    %129 = vector.broadcast %cst_68 : f32 to vector<36x256xf32>
    %130 = vector.extract_strided_slice %128 {offsets = [0, 239], sizes = [18, 17], strides = [1, 1]} : vector<18x256xf32> to vector<18x17xf32>
    %131 = vector.extract_strided_slice %128 {offsets = [0, 0], sizes = [18, 239], strides = [1, 1]} : vector<18x256xf32> to vector<18x239xf32>
    %132 = tpu.concatenate %130, %131 in 1 : vector<18x17xf32>, vector<18x239xf32> -> vector<18x256xf32>
    %c9 = arith.constant 9 : index
    %c0_69 = arith.constant 0 : index
    %c0_70 = arith.constant 0 : index
    %133 = vector.load %arg8[%c9, %c0_69, %c0_70] : memref<18x1x256xf32, #tpu.memory_space<vmem>>, vector<1x1x256xf32>
    %134 = vector.shape_cast %133 : vector<1x1x256xf32> to vector<1x256xf32>
    %135 = vector.broadcast %134 : vector<1x256xf32> to vector<18x256xf32>
    %136 = arith.mulf %132, %135 : vector<18x256xf32>
    %137 = arith.truncf %136 : vector<18x256xf32> to vector<18x256xbf16>
    %c0_71 = arith.constant 0 : index
    %c0_72 = arith.constant 0 : index
    %c0_73 = arith.constant 0 : index
    %138 = vector.load %arg6[%c0_71, %c0_72, %c0_73] : memref<9x36x18xbf16, #tpu.memory_space<vmem>>, vector<1x36x18xbf16>
    %139 = vector.shape_cast %138 : vector<1x36x18xbf16> to vector<36x18xbf16>
    %cst_74 = arith.constant dense<0.000000e+00> : vector<36x256xf32>
    %140 = tpu.matmul %139, %137, %cst_74 {dimension_numbers = #tpu.dot_dimension_numbers<[1], [0], [0], [1], [0, 0, 1, 1], [], []>} : vector<36x18xbf16>, vector<18x256xbf16>, vector<36x256xf32> -> vector<36x256xf32>
    %141 = arith.addf %129, %140 : vector<36x256xf32>
    %142 = vector.extract_strided_slice %128 {offsets = [0, 240], sizes = [18, 16], strides = [1, 1]} : vector<18x256xf32> to vector<18x16xf32>
    %143 = vector.extract_strided_slice %128 {offsets = [0, 0], sizes = [18, 240], strides = [1, 1]} : vector<18x256xf32> to vector<18x240xf32>
    %144 = tpu.concatenate %142, %143 in 1 : vector<18x16xf32>, vector<18x240xf32> -> vector<18x256xf32>
    %c10 = arith.constant 10 : index
    %c0_75 = arith.constant 0 : index
    %c0_76 = arith.constant 0 : index
    %145 = vector.load %arg8[%c10, %c0_75, %c0_76] : memref<18x1x256xf32, #tpu.memory_space<vmem>>, vector<1x1x256xf32>
    %146 = vector.shape_cast %145 : vector<1x1x256xf32> to vector<1x256xf32>
    %147 = vector.broadcast %146 : vector<1x256xf32> to vector<18x256xf32>
    %148 = arith.mulf %144, %147 : vector<18x256xf32>
    %149 = arith.truncf %148 : vector<18x256xf32> to vector<18x256xbf16>
    %c1_77 = arith.constant 1 : index
    %c0_78 = arith.constant 0 : index
    %c0_79 = arith.constant 0 : index
    %150 = vector.load %arg6[%c1_77, %c0_78, %c0_79] : memref<9x36x18xbf16, #tpu.memory_space<vmem>>, vector<1x36x18xbf16>
    %151 = vector.shape_cast %150 : vector<1x36x18xbf16> to vector<36x18xbf16>
    %cst_80 = arith.constant dense<0.000000e+00> : vector<36x256xf32>
    %152 = tpu.matmul %151, %149, %cst_80 {dimension_numbers = #tpu.dot_dimension_numbers<[1], [0], [0], [1], [0, 0, 1, 1], [], []>} : vector<36x18xbf16>, vector<18x256xbf16>, vector<36x256xf32> -> vector<36x256xf32>
    %153 = arith.addf %141, %152 : vector<36x256xf32>
    %154 = vector.extract_strided_slice %128 {offsets = [0, 241], sizes = [18, 15], strides = [1, 1]} : vector<18x256xf32> to vector<18x15xf32>
    %155 = vector.extract_strided_slice %128 {offsets = [0, 0], sizes = [18, 241], strides = [1, 1]} : vector<18x256xf32> to vector<18x241xf32>
    %156 = tpu.concatenate %154, %155 in 1 : vector<18x15xf32>, vector<18x241xf32> -> vector<18x256xf32>
    %c11 = arith.constant 11 : index
    %c0_81 = arith.constant 0 : index
    %c0_82 = arith.constant 0 : index
    %157 = vector.load %arg8[%c11, %c0_81, %c0_82] : memref<18x1x256xf32, #tpu.memory_space<vmem>>, vector<1x1x256xf32>
    %158 = vector.shape_cast %157 : vector<1x1x256xf32> to vector<1x256xf32>
    %159 = vector.broadcast %158 : vector<1x256xf32> to vector<18x256xf32>
    %160 = arith.mulf %156, %159 : vector<18x256xf32>
    %161 = arith.truncf %160 : vector<18x256xf32> to vector<18x256xbf16>
    %c2_83 = arith.constant 2 : index
    %c0_84 = arith.constant 0 : index
    %c0_85 = arith.constant 0 : index
    %162 = vector.load %arg6[%c2_83, %c0_84, %c0_85] : memref<9x36x18xbf16, #tpu.memory_space<vmem>>, vector<1x36x18xbf16>
    %163 = vector.shape_cast %162 : vector<1x36x18xbf16> to vector<36x18xbf16>
    %cst_86 = arith.constant dense<0.000000e+00> : vector<36x256xf32>
    %164 = tpu.matmul %163, %161, %cst_86 {dimension_numbers = #tpu.dot_dimension_numbers<[1], [0], [0], [1], [0, 0, 1, 1], [], []>} : vector<36x18xbf16>, vector<18x256xbf16>, vector<36x256xf32> -> vector<36x256xf32>
    %165 = arith.addf %153, %164 : vector<36x256xf32>
    %166 = vector.extract_strided_slice %128 {offsets = [0, 255], sizes = [18, 1], strides = [1, 1]} : vector<18x256xf32> to vector<18x1xf32>
    %167 = vector.extract_strided_slice %128 {offsets = [0, 0], sizes = [18, 255], strides = [1, 1]} : vector<18x256xf32> to vector<18x255xf32>
    %168 = tpu.concatenate %166, %167 in 1 : vector<18x1xf32>, vector<18x255xf32> -> vector<18x256xf32>
    %c12 = arith.constant 12 : index
    %c0_87 = arith.constant 0 : index
    %c0_88 = arith.constant 0 : index
    %169 = vector.load %arg8[%c12, %c0_87, %c0_88] : memref<18x1x256xf32, #tpu.memory_space<vmem>>, vector<1x1x256xf32>
    %170 = vector.shape_cast %169 : vector<1x1x256xf32> to vector<1x256xf32>
    %171 = vector.broadcast %170 : vector<1x256xf32> to vector<18x256xf32>
    %172 = arith.mulf %168, %171 : vector<18x256xf32>
    %173 = arith.truncf %172 : vector<18x256xf32> to vector<18x256xbf16>
    %c3_89 = arith.constant 3 : index
    %c0_90 = arith.constant 0 : index
    %c0_91 = arith.constant 0 : index
    %174 = vector.load %arg6[%c3_89, %c0_90, %c0_91] : memref<9x36x18xbf16, #tpu.memory_space<vmem>>, vector<1x36x18xbf16>
    %175 = vector.shape_cast %174 : vector<1x36x18xbf16> to vector<36x18xbf16>
    %cst_92 = arith.constant dense<0.000000e+00> : vector<36x256xf32>
    %176 = tpu.matmul %175, %173, %cst_92 {dimension_numbers = #tpu.dot_dimension_numbers<[1], [0], [0], [1], [0, 0, 1, 1], [], []>} : vector<36x18xbf16>, vector<18x256xbf16>, vector<36x256xf32> -> vector<36x256xf32>
    %177 = arith.addf %165, %176 : vector<36x256xf32>
    %c13 = arith.constant 13 : index
    %c0_93 = arith.constant 0 : index
    %c0_94 = arith.constant 0 : index
    %178 = vector.load %arg8[%c13, %c0_93, %c0_94] : memref<18x1x256xf32, #tpu.memory_space<vmem>>, vector<1x1x256xf32>
    %179 = vector.shape_cast %178 : vector<1x1x256xf32> to vector<1x256xf32>
    %180 = vector.broadcast %179 : vector<1x256xf32> to vector<18x256xf32>
    %181 = arith.mulf %128, %180 : vector<18x256xf32>
    %182 = arith.truncf %181 : vector<18x256xf32> to vector<18x256xbf16>
    %c4_95 = arith.constant 4 : index
    %c0_96 = arith.constant 0 : index
    %c0_97 = arith.constant 0 : index
    %183 = vector.load %arg6[%c4_95, %c0_96, %c0_97] : memref<9x36x18xbf16, #tpu.memory_space<vmem>>, vector<1x36x18xbf16>
    %184 = vector.shape_cast %183 : vector<1x36x18xbf16> to vector<36x18xbf16>
    %cst_98 = arith.constant dense<0.000000e+00> : vector<36x256xf32>
    %185 = tpu.matmul %184, %182, %cst_98 {dimension_numbers = #tpu.dot_dimension_numbers<[1], [0], [0], [1], [0, 0, 1, 1], [], []>} : vector<36x18xbf16>, vector<18x256xbf16>, vector<36x256xf32> -> vector<36x256xf32>
    %186 = arith.addf %177, %185 : vector<36x256xf32>
    %187 = vector.extract_strided_slice %128 {offsets = [0, 1], sizes = [18, 255], strides = [1, 1]} : vector<18x256xf32> to vector<18x255xf32>
    %188 = vector.extract_strided_slice %128 {offsets = [0, 0], sizes = [18, 1], strides = [1, 1]} : vector<18x256xf32> to vector<18x1xf32>
    %189 = tpu.concatenate %187, %188 in 1 : vector<18x255xf32>, vector<18x1xf32> -> vector<18x256xf32>
    %c14 = arith.constant 14 : index
    %c0_99 = arith.constant 0 : index
    %c0_100 = arith.constant 0 : index
    %190 = vector.load %arg8[%c14, %c0_99, %c0_100] : memref<18x1x256xf32, #tpu.memory_space<vmem>>, vector<1x1x256xf32>
    %191 = vector.shape_cast %190 : vector<1x1x256xf32> to vector<1x256xf32>
    %192 = vector.broadcast %191 : vector<1x256xf32> to vector<18x256xf32>
    %193 = arith.mulf %189, %192 : vector<18x256xf32>
    %194 = arith.truncf %193 : vector<18x256xf32> to vector<18x256xbf16>
    %c5_101 = arith.constant 5 : index
    %c0_102 = arith.constant 0 : index
    %c0_103 = arith.constant 0 : index
    %195 = vector.load %arg6[%c5_101, %c0_102, %c0_103] : memref<9x36x18xbf16, #tpu.memory_space<vmem>>, vector<1x36x18xbf16>
    %196 = vector.shape_cast %195 : vector<1x36x18xbf16> to vector<36x18xbf16>
    %cst_104 = arith.constant dense<0.000000e+00> : vector<36x256xf32>
    %197 = tpu.matmul %196, %194, %cst_104 {dimension_numbers = #tpu.dot_dimension_numbers<[1], [0], [0], [1], [0, 0, 1, 1], [], []>} : vector<36x18xbf16>, vector<18x256xbf16>, vector<36x256xf32> -> vector<36x256xf32>
    %198 = arith.addf %186, %197 : vector<36x256xf32>
    %199 = vector.extract_strided_slice %128 {offsets = [0, 15], sizes = [18, 241], strides = [1, 1]} : vector<18x256xf32> to vector<18x241xf32>
    %200 = vector.extract_strided_slice %128 {offsets = [0, 0], sizes = [18, 15], strides = [1, 1]} : vector<18x256xf32> to vector<18x15xf32>
    %201 = tpu.concatenate %199, %200 in 1 : vector<18x241xf32>, vector<18x15xf32> -> vector<18x256xf32>
    %c15 = arith.constant 15 : index
    %c0_105 = arith.constant 0 : index
    %c0_106 = arith.constant 0 : index
    %202 = vector.load %arg8[%c15, %c0_105, %c0_106] : memref<18x1x256xf32, #tpu.memory_space<vmem>>, vector<1x1x256xf32>
    %203 = vector.shape_cast %202 : vector<1x1x256xf32> to vector<1x256xf32>
    %204 = vector.broadcast %203 : vector<1x256xf32> to vector<18x256xf32>
    %205 = arith.mulf %201, %204 : vector<18x256xf32>
    %206 = arith.truncf %205 : vector<18x256xf32> to vector<18x256xbf16>
    %c6_107 = arith.constant 6 : index
    %c0_108 = arith.constant 0 : index
    %c0_109 = arith.constant 0 : index
    %207 = vector.load %arg6[%c6_107, %c0_108, %c0_109] : memref<9x36x18xbf16, #tpu.memory_space<vmem>>, vector<1x36x18xbf16>
    %208 = vector.shape_cast %207 : vector<1x36x18xbf16> to vector<36x18xbf16>
    %cst_110 = arith.constant dense<0.000000e+00> : vector<36x256xf32>
    %209 = tpu.matmul %208, %206, %cst_110 {dimension_numbers = #tpu.dot_dimension_numbers<[1], [0], [0], [1], [0, 0, 1, 1], [], []>} : vector<36x18xbf16>, vector<18x256xbf16>, vector<36x256xf32> -> vector<36x256xf32>
    %210 = arith.addf %198, %209 : vector<36x256xf32>
    %211 = vector.extract_strided_slice %128 {offsets = [0, 16], sizes = [18, 240], strides = [1, 1]} : vector<18x256xf32> to vector<18x240xf32>
    %212 = vector.extract_strided_slice %128 {offsets = [0, 0], sizes = [18, 16], strides = [1, 1]} : vector<18x256xf32> to vector<18x16xf32>
    %213 = tpu.concatenate %211, %212 in 1 : vector<18x240xf32>, vector<18x16xf32> -> vector<18x256xf32>
    %c16 = arith.constant 16 : index
    %c0_111 = arith.constant 0 : index
    %c0_112 = arith.constant 0 : index
    %214 = vector.load %arg8[%c16, %c0_111, %c0_112] : memref<18x1x256xf32, #tpu.memory_space<vmem>>, vector<1x1x256xf32>
    %215 = vector.shape_cast %214 : vector<1x1x256xf32> to vector<1x256xf32>
    %216 = vector.broadcast %215 : vector<1x256xf32> to vector<18x256xf32>
    %217 = arith.mulf %213, %216 : vector<18x256xf32>
    %218 = arith.truncf %217 : vector<18x256xf32> to vector<18x256xbf16>
    %c7_113 = arith.constant 7 : index
    %c0_114 = arith.constant 0 : index
    %c0_115 = arith.constant 0 : index
    %219 = vector.load %arg6[%c7_113, %c0_114, %c0_115] : memref<9x36x18xbf16, #tpu.memory_space<vmem>>, vector<1x36x18xbf16>
    %220 = vector.shape_cast %219 : vector<1x36x18xbf16> to vector<36x18xbf16>
    %cst_116 = arith.constant dense<0.000000e+00> : vector<36x256xf32>
    %221 = tpu.matmul %220, %218, %cst_116 {dimension_numbers = #tpu.dot_dimension_numbers<[1], [0], [0], [1], [0, 0, 1, 1], [], []>} : vector<36x18xbf16>, vector<18x256xbf16>, vector<36x256xf32> -> vector<36x256xf32>
    %222 = arith.addf %210, %221 : vector<36x256xf32>
    %223 = vector.extract_strided_slice %128 {offsets = [0, 17], sizes = [18, 239], strides = [1, 1]} : vector<18x256xf32> to vector<18x239xf32>
    %224 = vector.extract_strided_slice %128 {offsets = [0, 0], sizes = [18, 17], strides = [1, 1]} : vector<18x256xf32> to vector<18x17xf32>
    %225 = tpu.concatenate %223, %224 in 1 : vector<18x239xf32>, vector<18x17xf32> -> vector<18x256xf32>
    %c17 = arith.constant 17 : index
    %c0_117 = arith.constant 0 : index
    %c0_118 = arith.constant 0 : index
    %226 = vector.load %arg8[%c17, %c0_117, %c0_118] : memref<18x1x256xf32, #tpu.memory_space<vmem>>, vector<1x1x256xf32>
    %227 = vector.shape_cast %226 : vector<1x1x256xf32> to vector<1x256xf32>
    %228 = vector.broadcast %227 : vector<1x256xf32> to vector<18x256xf32>
    %229 = arith.mulf %225, %228 : vector<18x256xf32>
    %230 = arith.truncf %229 : vector<18x256xf32> to vector<18x256xbf16>
    %c8_119 = arith.constant 8 : index
    %c0_120 = arith.constant 0 : index
    %c0_121 = arith.constant 0 : index
    %231 = vector.load %arg6[%c8_119, %c0_120, %c0_121] : memref<9x36x18xbf16, #tpu.memory_space<vmem>>, vector<1x36x18xbf16>
    %232 = vector.shape_cast %231 : vector<1x36x18xbf16> to vector<36x18xbf16>
    %cst_122 = arith.constant dense<0.000000e+00> : vector<36x256xf32>
    %233 = tpu.matmul %232, %230, %cst_122 {dimension_numbers = #tpu.dot_dimension_numbers<[1], [0], [0], [1], [0, 0, 1, 1], [], []>} : vector<36x18xbf16>, vector<18x256xbf16>, vector<36x256xf32> -> vector<36x256xf32>
    %234 = arith.addf %222, %233 : vector<36x256xf32>
    %c0_123 = arith.constant 0 : index
    %c0_124 = arith.constant 0 : index
    %235 = vector.load %arg7[%c0_123, %c0_124] : memref<36x1xf32, #tpu.memory_space<vmem>>, vector<36x1xf32>
    %236 = vector.broadcast %235 : vector<36x1xf32> to vector<36x256xf32>
    %237 = arith.addf %234, %236 : vector<36x256xf32>
    %238 = vector.extract_strided_slice %237 {offsets = [0, 0], sizes = [9, 256], strides = [1, 1]} : vector<36x256xf32> to vector<9x256xf32>
    %239 = arith.negf %238 : vector<9x256xf32>
    %240 = math.exp %239 : vector<9x256xf32>
    %cst_125 = arith.constant 1.000000e+00 : f32
    %241 = vector.broadcast %cst_125 : f32 to vector<9x256xf32>
    %242 = arith.addf %241, %240 : vector<9x256xf32>
    %243 = arith.divf %241, %242 : vector<9x256xf32>
    %244 = vector.extract_strided_slice %237 {offsets = [9, 0], sizes = [9, 256], strides = [1, 1]} : vector<36x256xf32> to vector<9x256xf32>
    %245 = arith.negf %244 : vector<9x256xf32>
    %246 = math.exp %245 : vector<9x256xf32>
    %cst_126 = arith.constant 1.000000e+00 : f32
    %247 = vector.broadcast %cst_126 : f32 to vector<9x256xf32>
    %248 = arith.addf %247, %246 : vector<9x256xf32>
    %249 = arith.divf %247, %248 : vector<9x256xf32>
    %250 = vector.extract_strided_slice %237 {offsets = [18, 0], sizes = [9, 256], strides = [1, 1]} : vector<36x256xf32> to vector<9x256xf32>
    %251 = arith.negf %250 : vector<9x256xf32>
    %252 = math.exp %251 : vector<9x256xf32>
    %cst_127 = arith.constant 1.000000e+00 : f32
    %253 = vector.broadcast %cst_127 : f32 to vector<9x256xf32>
    %254 = arith.addf %253, %252 : vector<9x256xf32>
    %255 = arith.divf %253, %254 : vector<9x256xf32>
    %256 = vector.extract_strided_slice %237 {offsets = [27, 0], sizes = [9, 256], strides = [1, 1]} : vector<36x256xf32> to vector<9x256xf32>
    %257 = math.tanh %256 : vector<9x256xf32>
    %258 = arith.mulf %249, %7 : vector<9x256xf32>
    %259 = arith.mulf %243, %257 : vector<9x256xf32>
    %260 = arith.addf %258, %259 : vector<9x256xf32>
    %261 = math.tanh %260 : vector<9x256xf32>
    %262 = arith.mulf %255, %261 : vector<9x256xf32>
    %c0_128 = arith.constant 0 : index
    %c0_129 = arith.constant 0 : index
    %c0_130 = arith.constant 0 : index
    %263 = vector.load %arg10[%c0_128, %c0_129, %c0_130] : memref<1x9x256xf32, #tpu.memory_space<vmem>>, vector<1x9x256xf32>
    %264 = vector.shape_cast %263 : vector<1x9x256xf32> to vector<9x256xf32>
    %265 = vector.shape_cast %260 : vector<9x256xf32> to vector<1x9x256xf32>
    tpu.vector_store %arg10[%c0_128, %c0_129, %c0_130], %265 {strides = array<i32>} : memref<1x9x256xf32, #tpu.memory_space<vmem>>, vector<1x9x256xf32>,
    %c0_131 = arith.constant 0 : index
    %c0_132 = arith.constant 0 : index
    %c0_133 = arith.constant 0 : index
    %266 = vector.load %arg9[%c0_131, %c0_132, %c0_133] : memref<1x9x256xf32, #tpu.memory_space<vmem>>, vector<1x9x256xf32>
    %267 = vector.shape_cast %266 : vector<1x9x256xf32> to vector<9x256xf32>
    %268 = vector.shape_cast %262 : vector<9x256xf32> to vector<1x9x256xf32>
    tpu.vector_store %arg9[%c0_131, %c0_132, %c0_133], %268 {strides = array<i32>} : memref<1x9x256xf32, #tpu.memory_space<vmem>>, vector<1x9x256xf32>,
    return
  }
  func.func @transform_0(%arg0: i32) -> (i32, i32, i32) {
    %c0_i32 = arith.constant 0 : i32
    %c0_i32_0 = arith.constant 0 : i32
    %c0_i32_1 = arith.constant 0 : i32
    return %arg0, %c0_i32, %c0_i32_0 : i32, i32, i32
  }
  func.func @transform_1(%arg0: i32) -> (i32, i32, i32) {
    %c0_i32 = arith.constant 0 : i32
    %c0_i32_0 = arith.constant 0 : i32
    %c0_i32_1 = arith.constant 0 : i32
    return %arg0, %c0_i32, %c0_i32_0 : i32, i32, i32
  }
  func.func @transform_2(%arg0: i32) -> (i32, i32, i32) {
    %c0_i32 = arith.constant 0 : i32
    %c0_i32_0 = arith.constant 0 : i32
    %c0_i32_1 = arith.constant 0 : i32
    return %arg0, %c0_i32, %c0_i32_0 : i32, i32, i32
  }
  func.func @transform_3(%arg0: i32) -> (i32, i32, i32) {
    %c0_i32 = arith.constant 0 : i32
    %c0_i32_0 = arith.constant 0 : i32
    %c0_i32_1 = arith.constant 0 : i32
    return %arg0, %c0_i32, %c0_i32_0 : i32, i32, i32
  }
  func.func @transform_4(%arg0: i32) -> (i32, i32, i32) {
    %c0_i32 = arith.constant 0 : i32
    %c0_i32_0 = arith.constant 0 : i32
    %c0_i32_1 = arith.constant 0 : i32
    %c0_i32_2 = arith.constant 0 : i32
    return %c0_i32, %c0_i32_0, %c0_i32_1 : i32, i32, i32
  }
  func.func @transform_5(%arg0: i32) -> (i32, i32, i32) {
    %c0_i32 = arith.constant 0 : i32
    %c0_i32_0 = arith.constant 0 : i32
    %c0_i32_1 = arith.constant 0 : i32
    %c0_i32_2 = arith.constant 0 : i32
    return %c0_i32, %c0_i32_0, %c0_i32_1 : i32, i32, i32
  }
  func.func @transform_6(%arg0: i32) -> (i32, i32) {
    %c0_i32 = arith.constant 0 : i32
    %c0_i32_0 = arith.constant 0 : i32
    %c0_i32_1 = arith.constant 0 : i32
    return %c0_i32, %c0_i32_0 : i32, i32
  }
  func.func @transform_7(%arg0: i32) -> (i32, i32, i32) {
    %c0_i32 = arith.constant 0 : i32
    %c0_i32_0 = arith.constant 0 : i32
    %c0_i32_1 = arith.constant 0 : i32
    %c0_i32_2 = arith.constant 0 : i32
    return %c0_i32, %c0_i32_0, %c0_i32_1 : i32, i32, i32
  }
  func.func @transform_8(%arg0: i32) -> (i32, i32, i32) {
    %c0_i32 = arith.constant 0 : i32
    %c0_i32_0 = arith.constant 0 : i32
    %c0_i32_1 = arith.constant 0 : i32
    return %arg0, %c0_i32, %c0_i32_0 : i32, i32, i32
  }
  func.func @transform_9(%arg0: i32) -> (i32, i32, i32) {
    %c0_i32 = arith.constant 0 : i32
    %c0_i32_0 = arith.constant 0 : i32
    %c0_i32_1 = arith.constant 0 : i32
    return %arg0, %c0_i32, %c0_i32_0 : i32, i32, i32
  }
}

</mosaic_0001>

<llo_original>
// kernel: tpu_custom_call.1
$region0: #{tpu_custom_call.1}
  #allocation0 [shape = 'u32[]', space=smem, size = 0x4, offset = 0x4, fixed_abs, tag = 'smem constant byte address 0x4 - core index']
  #allocation1 [shape = 'u32[144,128]{1,0:T(1,128)}', space=vmem, size = 0x12000, scoped, tag = 'internal scratch']
  %s0 = inlined_call_operand.vmem [shape: f32[2,16,256], index: 0, kind: input, shape index: {}]
  %s1 = inlined_call_operand.vmem [shape: f32[2,16,256], index: 1, kind: input, shape index: {}]
  %s2 = inlined_call_operand.vmem [shape: f32[2,9,256], index: 2, kind: input, shape index: {}]
  %s3 = inlined_call_operand.vmem [shape: f32[2,9,256], index: 3, kind: input, shape index: {}]
  %s4 = inlined_call_operand.vmem [shape: bf16[9,9,16], index: 4, kind: input, shape index: {}]
  %s5 = inlined_call_operand.vmem [shape: bf16[9,36,18], index: 5, kind: input, shape index: {}]
  %s6 = inlined_call_operand.vmem [shape: f32[36,1], index: 6, kind: input, shape index: {}]
  %s7 = inlined_call_operand.vmem [shape: f32[18,1,256], index: 7, kind: input, shape index: {}]
  %s8 = inlined_call_operand.vmem [shape: f32[2,9,256], index: 8, kind: output, shape index: {0}]
  %s9 = inlined_call_operand.vmem [shape: f32[2,9,256], index: 9, kind: output, shape index: {1}]
  %10 = xla_tuple %s8, %s9
  %s11 = sld [smem:[#allocation0]]
  $region73: #{tpu_custom_call.1} parent=0
    _
  %s13 = ssub.s32 1, %s11
  %s14 = scalar_select 0, %s13, %s11
  loop: start=0, step=1, limit=4
  $region2: #{tpu_custom_call.1} parent=0 // loop_pre_header
    _
  $region3: #{tpu_custom_call.1} parent=0 // loop_header
    %s16 = sphi 0, %s20
    %p17 = scmp.ge.s32.totalorder %s16, 4
    %s26 = sphi 0, %s28
    %s29 = sphi 0, %s26
    %s30 = sphi 0, %s29
    %s46 = sphi 0, %s30
    %s52 = sphi 0, %s54
    %s55 = sphi 0, %s52
    %s56 = sphi 0, %s55
    %s72 = sphi 0, %s56
    %s78 = sphi 0, %s80
    %s81 = sphi 0, %s78
    %s82 = sphi 0, %s81
    %s98 = sphi 0, %s82
    %s104 = sphi 0, %s106
    %s107 = sphi 0, %s104
    %s108 = sphi 0, %s107
    %s124 = sphi 0, %s108
    %s128 = sphi 0, %s128
    %s130 = sphi 0, %s128
    %s131 = sphi 0, %s130
    %s145 = sphi 0, %s131
    %s149 = sphi 0, %s149
    %s151 = sphi 0, %s149
    %s152 = sphi 0, %s151
    %s166 = sphi 0, %s152
    %s170 = sphi 0, %s170
    %s172 = sphi 0, %s170
    %s173 = sphi 0, %s172
    %s187 = sphi 0, %s173
    %s191 = sphi 0, %s191
    %s193 = sphi 0, %s191
    %s194 = sphi 0, %s193
    %s208 = sphi 0, %s194
    %s214 = sphi 0, %s216
    %s217 = sphi 0, %s214
    %s218 = sphi 0, %s217
    %s234 = sphi 0, %s218
    %s240 = sphi 0, %s242
    %s243 = sphi 0, %s240
    %s244 = sphi 0, %s243
    %s260 = sphi 0, %s244
  $region4: #{tpu_custom_call.1} parent=0 // loop_header_branch
    %19 = sbr.rel (%p17) target = $region8
  $region5: #{tpu_custom_call.1} parent=0 // loop_body
    %s21 = ssub.s32 %s16, 1
    %s22 = ssub.s32 %s16, 2
    %s23 = sadd.s32 %s16, 1
    %s24 = ssub.s32 %s16, %s23
    %p25 = scmp.eq.s32.totalorder %s24, 0
    %s27 = sadd.s32 %s26, 1
    %s28 = scalar_select %p25, %s26, %s27
    %p31 = pneg %p25
    %p32 = scmp.eq.s32.totalorder %s16, 1
    %p33 = por %p31, %p32
    %p34 = scmp.ne.s32.totalorder %s26, %s29
    %p35 = scmp.eq.s32.totalorder %s16, 0
    %p36 = por %p34, %p35
    %p37 = scmp.ne.s32.totalorder %s26, %s29
    %p38 = scmp.eq.s32.totalorder %s21, 1
    %p39 = por %p37, %p38
    %p40 = scmp.ne.s32.totalorder %s29, %s30
    %p41 = scmp.eq.s32.totalorder %s21, 0
    %p42 = por %p40, %p41
    %p43 = scmp.ne.s32.totalorder %s29, %s30
    %p44 = scmp.eq.s32.totalorder %s22, 1
    %p45 = por %p43, %p44
    %p47 = scmp.ne.s32.totalorder %s30, %s46
    %p48 = scmp.eq.s32.totalorder %s22, 0
    %p49 = por %p47, %p48
    %s50 = ssub.s32 %s16, %s23
    %p51 = scmp.eq.s32.totalorder %s50, 0
    %s53 = sadd.s32 %s52, 1
    %s54 = scalar_select %p51, %s52, %s53
    %p57 = pneg %p51
    %p58 = scmp.eq.s32.totalorder %s16, 1
    %p59 = por %p57, %p58
    %p60 = scmp.ne.s32.totalorder %s52, %s55
    %p61 = scmp.eq.s32.totalorder %s16, 0
    %p62 = por %p60, %p61
    %p63 = scmp.ne.s32.totalorder %s52, %s55
    %p64 = scmp.eq.s32.totalorder %s21, 1
    %p65 = por %p63, %p64
    %p66 = scmp.ne.s32.totalorder %s55, %s56
    %p67 = scmp.eq.s32.totalorder %s21, 0
    %p68 = por %p66, %p67
    %p69 = scmp.ne.s32.totalorder %s55, %s56
    %p70 = scmp.eq.s32.totalorder %s22, 1
    %p71 = por %p69, %p70
    %p73 = scmp.ne.s32.totalorder %s56, %s72
    %p74 = scmp.eq.s32.totalorder %s22, 0
    %p75 = por %p73, %p74
    %s76 = ssub.s32 %s16, %s23
    %p77 = scmp.eq.s32.totalorder %s76, 0
    %s79 = sadd.s32 %s78, 1
    %s80 = scalar_select %p77, %s78, %s79
    %p83 = pneg %p77
    %p84 = scmp.eq.s32.totalorder %s16, 1
    %p85 = por %p83, %p84
    %p86 = scmp.ne.s32.totalorder %s78, %s81
    %p87 = scmp.eq.s32.totalorder %s16, 0
    %p88 = por %p86, %p87
    %p89 = scmp.ne.s32.totalorder %s78, %s81
    %p90 = scmp.eq.s32.totalorder %s21, 1
    %p91 = por %p89, %p90
    %p92 = scmp.ne.s32.totalorder %s81, %s82
    %p93 = scmp.eq.s32.totalorder %s21, 0
    %p94 = por %p92, %p93
    %p95 = scmp.ne.s32.totalorder %s81, %s82
    %p96 = scmp.eq.s32.totalorder %s22, 1
    %p97 = por %p95, %p96
    %p99 = scmp.ne.s32.totalorder %s82, %s98
    %p100 = scmp.eq.s32.totalorder %s22, 0
    %p101 = por %p99, %p100
    %s102 = ssub.s32 %s16, %s23
    %p103 = scmp.eq.s32.totalorder %s102, 0
    %s105 = sadd.s32 %s104, 1
    %s106 = scalar_select %p103, %s104, %s105
    %p109 = pneg %p103
    %p110 = scmp.eq.s32.totalorder %s16, 1
    %p111 = por %p109, %p110
    %p112 = scmp.ne.s32.totalorder %s104, %s107
    %p113 = scmp.eq.s32.totalorder %s16, 0
    %p114 = por %p112, %p113
    %p115 = scmp.ne.s32.totalorder %s104, %s107
    %p116 = scmp.eq.s32.totalorder %s21, 1
    %p117 = por %p115, %p116
    %p118 = scmp.ne.s32.totalorder %s107, %s108
    %p119 = scmp.eq.s32.totalorder %s21, 0
    %p120 = por %p118, %p119
    %p121 = scmp.ne.s32.totalorder %s107, %s108
    %p122 = scmp.eq.s32.totalorder %s22, 1
    %p123 = por %p121, %p122
    %p125 = scmp.ne.s32.totalorder %s108, %s124
    %p126 = scmp.eq.s32.totalorder %s22, 0
    %p127 = por %p125, %p126
    %s129 = sadd.s32 %s128, 1
    %p132 = scmp.eq.s32.totalorder %s16, 1
    %p133 = scmp.ne.s32.totalorder %s128, %s130
    %p134 = scmp.eq.s32.totalorder %s16, 0
    %p135 = por %p133, %p134
    %p136 = scmp.ne.s32.totalorder %s128, %s130
    %p137 = scmp.eq.s32.totalorder %s21, 1
    %p138 = por %p136, %p137
    %p139 = scmp.ne.s32.totalorder %s130, %s131
    %p140 = scmp.eq.s32.totalorder %s21, 0
    %p141 = por %p139, %p140
    %p142 = scmp.ne.s32.totalorder %s130, %s131
    %p143 = scmp.eq.s32.totalorder %s22, 1
    %p144 = por %p142, %p143
    %p146 = scmp.ne.s32.totalorder %s131, %s145
    %p147 = scmp.eq.s32.totalorder %s22, 0
    %p148 = por %p146, %p147
    %s150 = sadd.s32 %s149, 1
    %p153 = scmp.eq.s32.totalorder %s16, 1
    %p154 = scmp.ne.s32.totalorder %s149, %s151
    %p155 = scmp.eq.s32.totalorder %s16, 0
    %p156 = por %p154, %p155
    %p157 = scmp.ne.s32.totalorder %s149, %s151
    %p158 = scmp.eq.s32.totalorder %s21, 1
    %p159 = por %p157, %p158
    %p160 = scmp.ne.s32.totalorder %s151, %s152
    %p161 = scmp.eq.s32.totalorder %s21, 0
    %p162 = por %p160, %p161
    %p163 = scmp.ne.s32.totalorder %s151, %s152
    %p164 = scmp.eq.s32.totalorder %s22, 1
    %p165 = por %p163, %p164
    %p167 = scmp.ne.s32.totalorder %s152, %s166
    %p168 = scmp.eq.s32.totalorder %s22, 0
    %p169 = por %p167, %p168
    %s171 = sadd.s32 %s170, 1
    %p174 = scmp.eq.s32.totalorder %s16, 1
    %p175 = scmp.ne.s32.totalorder %s170, %s172
    %p176 = scmp.eq.s32.totalorder %s16, 0
    %p177 = por %p175, %p176
    %p178 = scmp.ne.s32.totalorder %s170, %s172
    %p179 = scmp.eq.s32.totalorder %s21, 1
    %p180 = por %p178, %p179
    %p181 = scmp.ne.s32.totalorder %s172, %s173
    %p182 = scmp.eq.s32.totalorder %s21, 0
    %p183 = por %p181, %p182
    %p184 = scmp.ne.s32.totalorder %s172, %s173
    %p185 = scmp.eq.s32.totalorder %s22, 1
    %p186 = por %p184, %p185
    %p188 = scmp.ne.s32.totalorder %s173, %s187
    %p189 = scmp.eq.s32.totalorder %s22, 0
    %p190 = por %p188, %p189
    %s192 = sadd.s32 %s191, 1
    %p195 = scmp.eq.s32.totalorder %s16, 1
    %p196 = scmp.ne.s32.totalorder %s191, %s193
    %p197 = scmp.eq.s32.totalorder %s16, 0
    %p198 = por %p196, %p197
    %p199 = scmp.ne.s32.totalorder %s191, %s193
    %p200 = scmp.eq.s32.totalorder %s21, 1
    %p201 = por %p199, %p200
    %p202 = scmp.ne.s32.totalorder %s193, %s194
    %p203 = scmp.eq.s32.totalorder %s21, 0
    %p204 = por %p202, %p203
    %p205 = scmp.ne.s32.totalorder %s193, %s194
    %p206 = scmp.eq.s32.totalorder %s22, 1
    %p207 = por %p205, %p206
    %p209 = scmp.ne.s32.totalorder %s194, %s208
    %p210 = scmp.eq.s32.totalorder %s22, 0
    %p211 = por %p209, %p210
    %s212 = ssub.s32 %s16, %s23
    %p213 = scmp.eq.s32.totalorder %s212, 0
    %s215 = sadd.s32 %s214, 1
    %s216 = scalar_select %p213, %s214, %s215
    %p219 = pneg %p213
    %p220 = scmp.eq.s32.totalorder %s16, 1
    %p221 = por %p219, %p220
    %p222 = scmp.ne.s32.totalorder %s214, %s217
    %p223 = scmp.eq.s32.totalorder %s16, 0
    %p224 = por %p222, %p223
    %p225 = scmp.ne.s32.totalorder %s214, %s217
    %p226 = scmp.eq.s32.totalorder %s21, 1
    %p227 = por %p225, %p226
    %p228 = scmp.ne.s32.totalorder %s217, %s218
    %p229 = scmp.eq.s32.totalorder %s21, 0
    %p230 = por %p228, %p229
    %p231 = scmp.ne.s32.totalorder %s217, %s218
    %p232 = scmp.eq.s32.totalorder %s22, 1
    %p233 = por %p231, %p232
    %p235 = scmp.ne.s32.totalorder %s218, %s234
    %p236 = scmp.eq.s32.totalorder %s22, 0
    %p237 = por %p235, %p236
    %s238 = ssub.s32 %s16, %s23
    %p239 = scmp.eq.s32.totalorder %s238, 0
    %s241 = sadd.s32 %s240, 1
    %s242 = scalar_select %p239, %s240, %s241
    %p245 = pneg %p239
    %p246 = scmp.eq.s32.totalorder %s16, 1
    %p247 = por %p245, %p246
    %p248 = scmp.ne.s32.totalorder %s240, %s243
    %p249 = scmp.eq.s32.totalorder %s16, 0
    %p250 = por %p248, %p249
    %p251 = scmp.ne.s32.totalorder %s240, %s243
    %p252 = scmp.eq.s32.totalorder %s21, 1
    %p253 = por %p251, %p252
    %p254 = scmp.ne.s32.totalorder %s243, %s244
    %p255 = scmp.eq.s32.totalorder %s21, 0
    %p256 = por %p254, %p255
    %p257 = scmp.ne.s32.totalorder %s243, %s244
    %p258 = scmp.eq.s32.totalorder %s22, 1
    %p259 = por %p257, %p258
    %p261 = scmp.ne.s32.totalorder %s244, %s260
    %p262 = scmp.eq.s32.totalorder %s22, 0
    %p263 = por %p261, %p262
    %p264 = scmp.le.s32.totalorder 1, %s16
    %p265 = scmp.lt.s32.totalorder %s16, 3
    %p266 = pnand %p264, %p265
    %p267 = pneg %p266
    // Predicated region
    $region9: #{tpu_custom_call.1} parent=5 // pred_check
      _
    $region10: #{tpu_custom_call.1} parent=5 // pred_check_branch
      %269 = sbr.rel (%p266) target = $region12
    $region11: #{tpu_custom_call.1} parent=5 // pred_region
      %s270 = ssub.s32 %s16, 1
      // Predicated region
      $region13: #{tpu_custom_call.1} parent=11 // pred_check
        %p271 = pneg %p141
      $region14: #{tpu_custom_call.1} parent=11 // pred_check_branch
        %273 = sbr.rel (%p271) target = $region16
      $region15: #{tpu_custom_call.1} parent=11 // pred_region
        _
      $region16: #{tpu_custom_call.1} parent=11 // pred_fallthru
        _
      // Predicated region
      $region17: #{tpu_custom_call.1} parent=11 // pred_check
        %p274 = pneg %p162
      $region18: #{tpu_custom_call.1} parent=11 // pred_check_branch
        %276 = sbr.rel (%p274) target = $region20
      $region19: #{tpu_custom_call.1} parent=11 // pred_region
        _
      $region20: #{tpu_custom_call.1} parent=11 // pred_fallthru
        _
      // Predicated region
      $region21: #{tpu_custom_call.1} parent=11 // pred_check
        %p277 = pneg %p183
      $region22: #{tpu_custom_call.1} parent=11 // pred_check_branch
        %279 = sbr.rel (%p277) target = $region24
      $region23: #{tpu_custom_call.1} parent=11 // pred_region
        _
      $region24: #{tpu_custom_call.1} parent=11 // pred_fallthru
        _
      // Predicated region
      $region25: #{tpu_custom_call.1} parent=11 // pred_check
        %p280 = pneg %p204
      $region26: #{tpu_custom_call.1} parent=11 // pred_check_branch
        %282 = sbr.rel (%p280) target = $region28
      $region27: #{tpu_custom_call.1} parent=11 // pred_region
        _
      $region28: #{tpu_custom_call.1} parent=11 // pred_fallthru
        _
    $region12: #{tpu_custom_call.1} parent=5 // pred_fallthru
      _
    %p283 = scmp.lt.s32.totalorder %s16, 2
    // Predicated region
    $region29: #{tpu_custom_call.1} parent=5 // pred_check
      %p284 = pneg %p283
    $region30: #{tpu_custom_call.1} parent=5 // pred_check_branch
      %286 = sbr.rel (%p284) target = $region32
    $region31: #{tpu_custom_call.1} parent=5 // pred_region
      // Predicated region
      $region33: #{tpu_custom_call.1} parent=31 // pred_check
        %p287 = pneg %p36
      $region34: #{tpu_custom_call.1} parent=31 // pred_check_branch
        %289 = sbr.rel (%p287) target = $region36
      $region35: #{tpu_custom_call.1} parent=31 // pred_region
        %p290 = scmp.lt.s32.totalorder %s16, 1
        %s291 = scalar_select %p290, %s16, 1
        %s292 = smul.addr %s291, 4
        %s293 = smul.addr %s292, 8
        %s294 = scalar_lea.vmem %s0, %s293
      $region36: #{tpu_custom_call.1} parent=31 // pred_fallthru
        _
      // Predicated region
      $region37: #{tpu_custom_call.1} parent=31 // pred_check
        %p295 = pneg %p62
      $region38: #{tpu_custom_call.1} parent=31 // pred_check_branch
        %297 = sbr.rel (%p295) target = $region40
      $region39: #{tpu_custom_call.1} parent=31 // pred_region
        %p298 = scmp.lt.s32.totalorder %s16, 1
        %s299 = scalar_select %p298, %s16, 1
        %s300 = smul.addr %s299, 4
        %s301 = smul.addr %s300, 8
        %s302 = scalar_lea.vmem %s1, %s301
      $region40: #{tpu_custom_call.1} parent=31 // pred_fallthru
        _
      // Predicated region
      $region41: #{tpu_custom_call.1} parent=31 // pred_check
        %p303 = pneg %p88
      $region42: #{tpu_custom_call.1} parent=31 // pred_check_branch
        %305 = sbr.rel (%p303) target = $region44
      $region43: #{tpu_custom_call.1} parent=31 // pred_region
        %p306 = scmp.lt.s32.totalorder %s16, 1
        %s307 = scalar_select %p306, %s16, 1
        %s308 = smul.addr %s307, 4
        %s309 = smul.addr %s308, 8
        %s310 = scalar_lea.vmem %s2, %s309
      $region44: #{tpu_custom_call.1} parent=31 // pred_fallthru
        _
      // Predicated region
      $region45: #{tpu_custom_call.1} parent=31 // pred_check
        %p311 = pneg %p114
      $region46: #{tpu_custom_call.1} parent=31 // pred_check_branch
        %313 = sbr.rel (%p311) target = $region48
      $region47: #{tpu_custom_call.1} parent=31 // pred_region
        %p314 = scmp.lt.s32.totalorder %s16, 1
        %s315 = scalar_select %p314, %s16, 1
        %s316 = smul.addr %s315, 4
        %s317 = smul.addr %s316, 8
        %s318 = scalar_lea.vmem %s3, %s317
      $region48: #{tpu_custom_call.1} parent=31 // pred_fallthru
        _
    $region32: #{tpu_custom_call.1} parent=5 // pred_fallthru
      _
    %p319 = scmp.le.s32.totalorder 1, %s16
    %p320 = scmp.lt.s32.totalorder %s16, 3
    %p321 = pnand %p319, %p320
    %p322 = pneg %p321
    // Predicated region
    $region49: #{tpu_custom_call.1} parent=5 // pred_check
      _
    $region50: #{tpu_custom_call.1} parent=5 // pred_check_branch
      %324 = sbr.rel (%p321) target = $region52
    $region51: #{tpu_custom_call.1} parent=5 // pred_region
      %s325 = ssub.s32 %s16, 1
      %p326 = scmp.lt.s32.totalorder %s21, 1
      %s327 = scalar_select %p326, %s21, 1
      %s328 = smul.addr %s327, 4
      %s329 = smul.addr %s328, 8
      %s330 = scalar_lea.vmem %s0, %s329
      %p331 = pneg %p42
      %p332 = pneg %p39
      %p333 = scmp.lt.s32.totalorder %s21, 1
      %s334 = scalar_select %p333, %s21, 1
      %s335 = smul.addr %s334, 4
      %s336 = smul.addr %s335, 8
      %s337 = scalar_lea.vmem %s1, %s336
      %p338 = pneg %p68
      %p339 = pneg %p65
      %p340 = scmp.lt.s32.totalorder %s21, 1
      %s341 = scalar_select %p340, %s21, 1
      %s342 = smul.addr %s341, 4
      %s343 = smul.addr %s342, 8
      %s344 = scalar_lea.vmem %s2, %s343
      %p345 = pneg %p94
      %p346 = pneg %p91
      %p347 = scmp.lt.s32.totalorder %s21, 1
      %s348 = scalar_select %p347, %s21, 1
      %s349 = smul.addr %s348, 4
      %s350 = smul.addr %s349, 8
      %s351 = scalar_lea.vmem %s3, %s350
      %p352 = pneg %p120
      %p353 = pneg %p117
      %p354 = pneg %p141
      %p355 = pneg %p138
      %p356 = pneg %p162
      %p357 = pneg %p159
      %p358 = pneg %p183
      %p359 = pneg %p180
      %p360 = pneg %p204
      %p361 = pneg %p201
      %p362 = pneg %p230
      %p363 = pneg %p227
      %p364 = scmp.lt.s32.totalorder %s21, 1
      %s365 = scalar_select %p364, %s21, 1
      %s366 = smul.addr %s365, 4
      %s367 = smul.addr %s366, 8
      %s368 = scalar_lea.vmem %s8, %s367
      %p369 = pneg %p256
      %p370 = pneg %p253
      %p371 = scmp.lt.s32.totalorder %s21, 1
      %s372 = scalar_select %p371, %s21, 1
      %s373 = smul.addr %s372, 4
      %s374 = smul.addr %s373, 8
      %s375 = scalar_lea.vmem %s9, %s374
      %p376 = scmp.lt.s32.totalorder %s21, 1
      %s377 = scalar_select %p376, %s21, 1
      %s378 = smul.addr %s377, 4
      %s379 = smul.addr %s378, 8
      %s380 = scalar_lea.vmem %s0, %s379
      %p381 = scmp.lt.s32.totalorder %s21, 1
      %s382 = scalar_select %p381, %s21, 1
      %s383 = smul.addr %s382, 4
      %s384 = smul.addr %s383, 8
      %s385 = scalar_lea.vmem %s1, %s384
      %p386 = scmp.lt.s32.totalorder %s21, 1
      %s387 = scalar_select %p386, %s21, 1
      %s388 = smul.addr %s387, 4
      %s389 = smul.addr %s388, 8
      %s390 = scalar_lea.vmem %s2, %s389
      %p391 = scmp.lt.s32.totalorder %s21, 1
      %s392 = scalar_select %p391, %s21, 1
      %s393 = smul.addr %s392, 4
      %s394 = smul.addr %s393, 8
      %s395 = scalar_lea.vmem %s3, %s394
      %p396 = scmp.lt.s32.totalorder %s21, 1
      %s397 = scalar_select %p396, %s21, 1
      %s398 = smul.addr %s397, 4
      %s399 = smul.addr %s398, 8
      %s400 = scalar_lea.vmem %s8, %s399
      %p401 = scmp.lt.s32.totalorder %s21, 1
      %s402 = scalar_select %p401, %s21, 1
      %s403 = smul.addr %s402, 4
      %s404 = smul.addr %s403, 8
      %s405 = scalar_lea.vmem %s9, %s404
      %v407 = vld [vmem:[%s380] sm:$0xff]
      %v408 = vld [vmem:[%s380 + $0x8] sm:$0xff]
      %v409 = vld [vmem:[%s380 + $0x10] sm:$0xff]
      %v410 = vld [vmem:[%s380 + $0x18] sm:$0xff]
      %v411 = vld [vmem:[%s385] sm:$0xff]
      %v412 = vld [vmem:[%s385 + $0x8] sm:$0xff]
      %v413 = vld [vmem:[%s385 + $0x10] sm:$0xff]
      %v414 = vld [vmem:[%s385 + $0x18] sm:$0xff]
      %v415 = vld [vmem:[%s390] sm:$0xff]
      %v416 = vld [vmem:[%s390 + $0x8] sm:$0xff]
      %v417 = vld [vmem:[%s390 + $0x10] sm:$0x1]
      %v418 = vld [vmem:[%s390 + $0x18] sm:$0x1]
      %v419 = vld [vmem:[%s395] sm:$0xff]
      %v420 = vld [vmem:[%s395 + $0x8] sm:$0xff]
      %v421 = vld [vmem:[%s395 + $0x10] sm:$0x1]
      %v422 = vld [vmem:[%s395 + $0x18] sm:$0x1]
      %425 = vrot.lane.b32.xlu0 %v412, 17
      %v426 = vpop.permute.xlu0 %425
      %427 = vrot.lane.b32.xlu0 %v414, 17
      %v428 = vpop.permute.xlu0 %427
      %433 = vrot.lane.b32.xlu0 %v411, 17
      %v434 = vpop.permute.xlu0 %433
      %435 = vrot.lane.b32.xlu0 %v413, 17
      %v436 = vpop.permute.xlu0 %435
      %vm437 = vcmask 138240
      %v438 = vsel %vm437, %v434, %v426
      %v439 = vsel %vm437, %v436, %v428
      %v444 = vsel %vm437, %v426, %v434
      %v445 = vsel %vm437, %v428, %v436
      %v446 = vmul.f32 %v407, %v444
      %v447 = vmul.f32 %v408, %v438
      %v448 = vmul.f32 %v409, %v445
      %v449 = vmul.f32 %v410, %v439
      %v450 = vld [vmem:[%s7] sm:$0x3]
      %v452 = vlaneseq
      %v453 = vshrl.u32 %v452, 7
      %v454 = vsub.s32 0, %v453
      %v455 = vrot.slane %v450, %v454
      %v456 = vlaneseq
      %v457 = vshrl.u32 %v456, 7
      %v458 = vsub.s32 1, %v457
      %v459 = vrot.slane %v450, %v458
      %v462 = vmul.f32 %v446, %v455
      %v463 = vmul.f32 %v447, %v459
      %v464 = vmul.f32 %v448, %v455
      %v465 = vmul.f32 %v449, %v459
      %v466 = vld [vmem:[%s4] sm:$0xf]
      %v467 = vld [vmem:[%s4 + $0x4] sm:$0x1]
      %v468 = vpack.c.bf16 %v464, %v462
      %v469 = vpack.c.bf16 %v465, %v463
      %470 = vrot.lane.b32.xlu0 %v412, 16
      %v471 = vpop.permute.xlu0 %470
      %472 = vrot.lane.b32.xlu0 %v414, 16
      %v473 = vpop.permute.xlu0 %472
      %476 = vrot.lane.b32.xlu0 %v411, 16
      %v477 = vpop.permute.xlu0 %476
      %478 = vrot.lane.b32.xlu0 %v413, 16
      %v479 = vpop.permute.xlu0 %478
      %vm480 = vcmask 130048
      %v481 = vsel %vm480, %v477, %v471
      %v482 = vsel %vm480, %v479, %v473
      %v487 = vsel %vm480, %v471, %v477
      %v488 = vsel %vm480, %v473, %v479
      %v489 = vmul.f32 %v407, %v487
      %v490 = vmul.f32 %v408, %v481
      %v491 = vmul.f32 %v409, %v488
      %v492 = vmul.f32 %v410, %v482
      %s493 = scalar_lea.vmem %s7, 2
      %v494 = vld [vmem:[%s493] sm:$0x3]
      %v496 = vlaneseq
      %v497 = vshrl.u32 %v496, 7
      %v498 = vsub.s32 0, %v497
      %v499 = vrot.slane %v494, %v498
      %v500 = vlaneseq
      %v501 = vshrl.u32 %v500, 7
      %v502 = vsub.s32 1, %v501
      %v503 = vrot.slane %v494, %v502
      %v506 = vmul.f32 %v489, %v499
      %v507 = vmul.f32 %v490, %v503
      %v508 = vmul.f32 %v491, %v499
      %v509 = vmul.f32 %v492, %v503
      %s510 = scalar_lea.vmem %s4, 8
      %v511 = vld [vmem:[%s510] sm:$0xf]
      %v512 = vld [vmem:[%s510 + $0x4] sm:$0x1]
      %v513 = vpack.c.bf16 %v508, %v506
      %v514 = vpack.c.bf16 %v509, %v507
      %v517 = vunpack.c.l.b16 %v511
      %v518 = vunpack.c.l.b16 %v512
      %v519 = vpack.c.b16 %v518, %v517
      %v521 = vsel %vm480, %v519, 0
      %523 = vmatprep.subr.bf16.mxu0 %v514
      %524 = vmatpush1.bf16.msra.mxu0 %v513
      %525 = vmatprep.subr.bf16.mxu0 0
      %526 = vmatpush1.bf16.msra.mxu0 0
      %527 = vmatprep.subr.bf16.mxu0 0
      %528 = vmatpush1.bf16.msra.mxu0 0
      %529 = vmatprep.subr.bf16.mxu0 0
      %530 = vmatpush1.bf16.msra.mxu0 0
      %531 = vmatprep.subr.bf16.mxu0 0
      %532 = vmatpush1.bf16.msra.mxu0 0
      %533 = vmatprep.subr.bf16.mxu0 0
      %534 = vmatpush1.bf16.msra.mxu0 0
      %535 = vmatprep.subr.bf16.mxu0 0
      %536 = vmatpush1.bf16.msra.mxu0 0
      %537 = vmatprep.subr.bf16.mxu0 0
      %538 = vmatpush1.bf16.msra.mxu0 0
      %539 = vmatprep.subr.bf16.mxu0 0
      %540 = vmatpush1.bf16.msra.mxu0 0
      %541 = vmatprep.subr.bf16.mxu0 0
      %542 = vmatpush1.bf16.msra.mxu0 0
      %543 = vmatprep.subr.bf16.mxu0 0
      %544 = vmatpush1.bf16.msra.mxu0 0
      %545 = vmatprep.subr.bf16.mxu0 0
      %546 = vmatpush1.bf16.msra.mxu0 0
      %547 = vmatprep.subr.bf16.mxu0 0
      %548 = vmatpush1.bf16.msra.mxu0 0
      %549 = vmatprep.subr.bf16.mxu0 0
      %550 = vmatpush1.bf16.msra.mxu0 0
      %551 = vmatprep.subr.bf16.mxu0 0
      %552 = vmatpush1.bf16.msra.mxu0 0
      %553 = vmatprep.subr.bf16.mxu0 0
      %554 = vmatpush1.bf16.msra.mxu0 0
      %555 = vmatprep.mubr.bf16.mxu0 0
      %556 = vmatmul.mubr.bf16.gmra.mrb[0].mxu0 %v521
      %v557 = vpop.f32.mrb[0].mxu0
      %v558 = vadd.f32 0.0, %v557
      %v559 = vpop.f32.mrb[0].mxu0
      %v560 = vadd.f32 0.0, %v559
      %v561 = vpop.f32.mrb[0].mxu0
      %v562 = vadd.f32 0.0, %v561
      %v563 = vpop.f32.mrb[0].mxu0
      %v564 = vadd.f32 0.0, %v563
      %565 = vdwg.mxu0
      %v568 = vunpack.c.l.b16 %v466
      %v569 = vunpack.c.l.b16 %v467
      %v570 = vpack.c.b16 %v569, %v568
      %v572 = vsel %vm480, %v570, 0
      %574 = vmatprep.subr.bf16.mxu0 %v469
      %575 = vmatpush1.bf16.msra.mxu0 %v468
      %576 = vmatprep.subr.bf16.mxu0 0
      %577 = vmatpush1.bf16.msra.mxu0 0
      %578 = vmatprep.subr.bf16.mxu0 0
      %579 = vmatpush1.bf16.msra.mxu0 0
      %580 = vmatprep.subr.bf16.mxu0 0
      %581 = vmatpush1.bf16.msra.mxu0 0
      %582 = vmatprep.subr.bf16.mxu0 0
      %583 = vmatpush1.bf16.msra.mxu0 0
      %584 = vmatprep.subr.bf16.mxu0 0
      %585 = vmatpush1.bf16.msra.mxu0 0
      %586 = vmatprep.subr.bf16.mxu0 0
      %587 = vmatpush1.bf16.msra.mxu0 0
      %588 = vmatprep.subr.bf16.mxu0 0
      %589 = vmatpush1.bf16.msra.mxu0 0
      %590 = vmatprep.subr.bf16.mxu0 0
      %591 = vmatpush1.bf16.msra.mxu0 0
      %592 = vmatprep.subr.bf16.mxu0 0
      %593 = vmatpush1.bf16.msra.mxu0 0
      %594 = vmatprep.subr.bf16.mxu0 0
      %595 = vmatpush1.bf16.msra.mxu0 0
      %596 = vmatprep.subr.bf16.mxu0 0
      %597 = vmatpush1.bf16.msra.mxu0 0
      %598 = vmatprep.subr.bf16.mxu0 0
      %599 = vmatpush1.bf16.msra.mxu0 0
      %600 = vmatprep.subr.bf16.mxu0 0
      %601 = vmatpush1.bf16.msra.mxu0 0
      %602 = vmatprep.subr.bf16.mxu0 0
      %603 = vmatpush1.bf16.msra.mxu0 0
      %604 = vmatprep.subr.bf16.mxu0 0
      %605 = vmatpush1.bf16.msra.mxu0 0
      %606 = vmatprep.mubr.bf16.mxu0 0
      %607 = vmatmul.mubr.bf16.gmra.mrb[0].mxu0 %v572
      %v608 = vpop.f32.mrb[0].mxu0
      %v609 = vadd.f32 %v558, %v608
      %v610 = vpop.f32.mrb[0].mxu0
      %v611 = vadd.f32 %v560, %v610
      %v612 = vpop.f32.mrb[0].mxu0
      %v613 = vadd.f32 %v562, %v612
      %v614 = vpop.f32.mrb[0].mxu0
      %v615 = vadd.f32 %v564, %v614
      %616 = vdwg.mxu0
      %617 = vrot.lane.b32.xlu0 %v412, 15
      %v618 = vpop.permute.xlu0 %617
      %619 = vrot.lane.b32.xlu0 %v414, 15
      %v620 = vpop.permute.xlu0 %619
      %623 = vrot.lane.b32.xlu0 %v411, 15
      %v624 = vpop.permute.xlu0 %623
      %625 = vrot.lane.b32.xlu0 %v413, 15
      %v626 = vpop.permute.xlu0 %625
      %vm627 = vcmask 121856
      %v628 = vsel %vm627, %v624, %v618
      %v629 = vsel %vm627, %v626, %v620
      %v634 = vsel %vm627, %v618, %v624
      %v635 = vsel %vm627, %v620, %v626
      %v636 = vmul.f32 %v407, %v634
      %v637 = vmul.f32 %v408, %v628
      %v638 = vmul.f32 %v409, %v635
      %v639 = vmul.f32 %v410, %v629
      %s640 = scalar_lea.vmem %s7, 4
      %v641 = vld [vmem:[%s640] sm:$0x3]
      %v643 = vlaneseq
      %v644 = vshrl.u32 %v643, 7
      %v645 = vsub.s32 0, %v644
      %v646 = vrot.slane %v641, %v645
      %v647 = vlaneseq
      %v648 = vshrl.u32 %v647, 7
      %v649 = vsub.s32 1, %v648
      %v650 = vrot.slane %v641, %v649
      %v653 = vmul.f32 %v636, %v646
      %v654 = vmul.f32 %v637, %v650
      %v655 = vmul.f32 %v638, %v646
      %v656 = vmul.f32 %v639, %v650
      %s657 = scalar_lea.vmem %s4, 16
      %v658 = vld [vmem:[%s657] sm:$0xf]
      %v659 = vld [vmem:[%s657 + $0x4] sm:$0x1]
      %v660 = vpack.c.bf16 %v655, %v653
      %v661 = vpack.c.bf16 %v656, %v654
      %v664 = vunpack.c.l.b16 %v658
      %v665 = vunpack.c.l.b16 %v659
      %v666 = vpack.c.b16 %v665, %v664
      %v668 = vsel %vm480, %v666, 0
      %670 = vmatprep.subr.bf16.mxu0 %v661
      %671 = vmatpush1.bf16.msra.mxu0 %v660
      %672 = vmatprep.subr.bf16.mxu0 0
      %673 = vmatpush1.bf16.msra.mxu0 0
      %674 = vmatprep.subr.bf16.mxu0 0
      %675 = vmatpush1.bf16.msra.mxu0 0
      %676 = vmatprep.subr.bf16.mxu0 0
      %677 = vmatpush1.bf16.msra.mxu0 0
      %678 = vmatprep.subr.bf16.mxu0 0
      %679 = vmatpush1.bf16.msra.mxu0 0
      %680 = vmatprep.subr.bf16.mxu0 0
      %681 = vmatpush1.bf16.msra.mxu0 0
      %682 = vmatprep.subr.bf16.mxu0 0
      %683 = vmatpush1.bf16.msra.mxu0 0
      %684 = vmatprep.subr.bf16.mxu0 0
      %685 = vmatpush1.bf16.msra.mxu0 0
      %686 = vmatprep.subr.bf16.mxu0 0
      %687 = vmatpush1.bf16.msra.mxu0 0
      %688 = vmatprep.subr.bf16.mxu0 0
      %689 = vmatpush1.bf16.msra.mxu0 0
      %690 = vmatprep.subr.bf16.mxu0 0
      %691 = vmatpush1.bf16.msra.mxu0 0
      %692 = vmatprep.subr.bf16.mxu0 0
      %693 = vmatpush1.bf16.msra.mxu0 0
      %694 = vmatprep.subr.bf16.mxu0 0
      %695 = vmatpush1.bf16.msra.mxu0 0
      %696 = vmatprep.subr.bf16.mxu0 0
      %697 = vmatpush1.bf16.msra.mxu0 0
      %698 = vmatprep.subr.bf16.mxu0 0
      %699 = vmatpush1.bf16.msra.mxu0 0
      %700 = vmatprep.subr.bf16.mxu0 0
      %701 = vmatpush1.bf16.msra.mxu0 0
      %702 = vmatprep.mubr.bf16.mxu0 0
      %703 = vmatmul.mubr.bf16.gmra.mrb[0].mxu0 %v668
      %v704 = vpop.f32.mrb[0].mxu0
      %v705 = vadd.f32 0.0, %v704
      %v706 = vpop.f32.mrb[0].mxu0
      %v707 = vadd.f32 0.0, %v706
      %v708 = vpop.f32.mrb[0].mxu0
      %v709 = vadd.f32 0.0, %v708
      %v710 = vpop.f32.mrb[0].mxu0
      %v711 = vadd.f32 0.0, %v710
      %712 = vdwg.mxu0
      %v713 = vadd.f32 %v609, %v705
      %v714 = vadd.f32 %v611, %v707
      %v715 = vadd.f32 %v613, %v709
      %v716 = vadd.f32 %v615, %v711
      %717 = vrot.lane.b32.xlu0 %v412, 1
      %v718 = vpop.permute.xlu0 %717
      %719 = vrot.lane.b32.xlu0 %v414, 1
      %v720 = vpop.permute.xlu0 %719
      %723 = vrot.lane.b32.xlu0 %v411, 1
      %v724 = vpop.permute.xlu0 %723
      %725 = vrot.lane.b32.xlu0 %v413, 1
      %v726 = vpop.permute.xlu0 %725
      %vm727 = vcmask 7168
      %v728 = vsel %vm727, %v724, %v718
      %v729 = vsel %vm727, %v726, %v720
      %v734 = vsel %vm727, %v718, %v724
      %v735 = vsel %vm727, %v720, %v726
      %v736 = vmul.f32 %v407, %v734
      %v737 = vmul.f32 %v408, %v728
      %v738 = vmul.f32 %v409, %v735
      %v739 = vmul.f32 %v410, %v729
      %s740 = scalar_lea.vmem %s7, 6
      %v741 = vld [vmem:[%s740] sm:$0x3]
      %v743 = vlaneseq
      %v744 = vshrl.u32 %v743, 7
      %v745 = vsub.s32 0, %v744
      %v746 = vrot.slane %v741, %v745
      %v747 = vlaneseq
      %v748 = vshrl.u32 %v747, 7
      %v749 = vsub.s32 1, %v748
      %v750 = vrot.slane %v741, %v749
      %v753 = vmul.f32 %v736, %v746
      %v754 = vmul.f32 %v737, %v750
      %v755 = vmul.f32 %v738, %v746
      %v756 = vmul.f32 %v739, %v750
      %s757 = scalar_lea.vmem %s4, 24
      %v758 = vld [vmem:[%s757] sm:$0xf]
      %v759 = vld [vmem:[%s757 + $0x4] sm:$0x1]
      %v760 = vpack.c.bf16 %v755, %v753
      %v761 = vpack.c.bf16 %v756, %v754
      %v764 = vunpack.c.l.b16 %v758
      %v765 = vunpack.c.l.b16 %v759
      %v766 = vpack.c.b16 %v765, %v764
      %v768 = vsel %vm480, %v766, 0
      %770 = vmatprep.subr.bf16.mxu0 %v761
      %771 = vmatpush1.bf16.msra.mxu0 %v760
      %772 = vmatprep.subr.bf16.mxu0 0
      %773 = vmatpush1.bf16.msra.mxu0 0
      %774 = vmatprep.subr.bf16.mxu0 0
      %775 = vmatpush1.bf16.msra.mxu0 0
      %776 = vmatprep.subr.bf16.mxu0 0
      %777 = vmatpush1.bf16.msra.mxu0 0
      %778 = vmatprep.subr.bf16.mxu0 0
      %779 = vmatpush1.bf16.msra.mxu0 0
      %780 = vmatprep.subr.bf16.mxu0 0
      %781 = vmatpush1.bf16.msra.mxu0 0
      %782 = vmatprep.subr.bf16.mxu0 0
      %783 = vmatpush1.bf16.msra.mxu0 0
      %784 = vmatprep.subr.bf16.mxu0 0
      %785 = vmatpush1.bf16.msra.mxu0 0
      %786 = vmatprep.subr.bf16.mxu0 0
      %787 = vmatpush1.bf16.msra.mxu0 0
      %788 = vmatprep.subr.bf16.mxu0 0
      %789 = vmatpush1.bf16.msra.mxu0 0
      %790 = vmatprep.subr.bf16.mxu0 0
      %791 = vmatpush1.bf16.msra.mxu0 0
      %792 = vmatprep.subr.bf16.mxu0 0
      %793 = vmatpush1.bf16.msra.mxu0 0
      %794 = vmatprep.subr.bf16.mxu0 0
      %795 = vmatpush1.bf16.msra.mxu0 0
      %796 = vmatprep.subr.bf16.mxu0 0
      %797 = vmatpush1.bf16.msra.mxu0 0
      %798 = vmatprep.subr.bf16.mxu0 0
      %799 = vmatpush1.bf16.msra.mxu0 0
      %800 = vmatprep.subr.bf16.mxu0 0
      %801 = vmatpush1.bf16.msra.mxu0 0
      %802 = vmatprep.mubr.bf16.mxu0 0
      %803 = vmatmul.mubr.bf16.gmra.mrb[0].mxu0 %v768
      %v804 = vpop.f32.mrb[0].mxu0
      %v805 = vadd.f32 0.0, %v804
      %v806 = vpop.f32.mrb[0].mxu0
      %v807 = vadd.f32 0.0, %v806
      %v808 = vpop.f32.mrb[0].mxu0
      %v809 = vadd.f32 0.0, %v808
      %v810 = vpop.f32.mrb[0].mxu0
      %v811 = vadd.f32 0.0, %v810
      %812 = vdwg.mxu0
      %v813 = vadd.f32 %v713, %v805
      %v814 = vadd.f32 %v714, %v807
      %v815 = vadd.f32 %v715, %v809
      %v816 = vadd.f32 %v716, %v811
      %v817 = vmul.f32 %v407, %v411
      %v818 = vmul.f32 %v408, %v412
      %v819 = vmul.f32 %v409, %v413
      %v820 = vmul.f32 %v410, %v414
      %s821 = scalar_lea.vmem %s7, 8
      %v822 = vld [vmem:[%s821] sm:$0x3]
      %v824 = vlaneseq
      %v825 = vshrl.u32 %v824, 7
      %v826 = vsub.s32 0, %v825
      %v827 = vrot.slane %v822, %v826
      %v828 = vlaneseq
      %v829 = vshrl.u32 %v828, 7
      %v830 = vsub.s32 1, %v829
      %v831 = vrot.slane %v822, %v830
      %v834 = vmul.f32 %v817, %v827
      %v835 = vmul.f32 %v818, %v831
      %v836 = vmul.f32 %v819, %v827
      %v837 = vmul.f32 %v820, %v831
      %s838 = scalar_lea.vmem %s4, 32
      %v839 = vld [vmem:[%s838] sm:$0xf]
      %v840 = vld [vmem:[%s838 + $0x4] sm:$0x1]
      %v841 = vpack.c.bf16 %v836, %v834
      %v842 = vpack.c.bf16 %v837, %v835
      %v845 = vunpack.c.l.b16 %v839
      %v846 = vunpack.c.l.b16 %v840
      %v847 = vpack.c.b16 %v846, %v845
      %v849 = vsel %vm480, %v847, 0
      %851 = vmatprep.subr.bf16.mxu0 %v842
      %852 = vmatpush1.bf16.msra.mxu0 %v841
      %853 = vmatprep.subr.bf16.mxu0 0
      %854 = vmatpush1.bf16.msra.mxu0 0
      %855 = vmatprep.subr.bf16.mxu0 0
      %856 = vmatpush1.bf16.msra.mxu0 0
      %857 = vmatprep.subr.bf16.mxu0 0
      %858 = vmatpush1.bf16.msra.mxu0 0
      %859 = vmatprep.subr.bf16.mxu0 0
      %860 = vmatpush1.bf16.msra.mxu0 0
      %861 = vmatprep.subr.bf16.mxu0 0
      %862 = vmatpush1.bf16.msra.mxu0 0
      %863 = vmatprep.subr.bf16.mxu0 0
      %864 = vmatpush1.bf16.msra.mxu0 0
      %865 = vmatprep.subr.bf16.mxu0 0
      %866 = vmatpush1.bf16.msra.mxu0 0
      %867 = vmatprep.subr.bf16.mxu0 0
      %868 = vmatpush1.bf16.msra.mxu0 0
      %869 = vmatprep.subr.bf16.mxu0 0
      %870 = vmatpush1.bf16.msra.mxu0 0
      %871 = vmatprep.subr.bf16.mxu0 0
      %872 = vmatpush1.bf16.msra.mxu0 0
      %873 = vmatprep.subr.bf16.mxu0 0
      %874 = vmatpush1.bf16.msra.mxu0 0
      %875 = vmatprep.subr.bf16.mxu0 0
      %876 = vmatpush1.bf16.msra.mxu0 0
      %877 = vmatprep.subr.bf16.mxu0 0
      %878 = vmatpush1.bf16.msra.mxu0 0
      %879 = vmatprep.subr.bf16.mxu0 0
      %880 = vmatpush1.bf16.msra.mxu0 0
      %881 = vmatprep.subr.bf16.mxu0 0
      %882 = vmatpush1.bf16.msra.mxu0 0
      %883 = vmatprep.mubr.bf16.mxu0 0
      %884 = vmatmul.mubr.bf16.gmra.mrb[0].mxu0 %v849
      %v885 = vpop.f32.mrb[0].mxu0
      %v886 = vadd.f32 0.0, %v885
      %v887 = vpop.f32.mrb[0].mxu0
      %v888 = vadd.f32 0.0, %v887
      %v889 = vpop.f32.mrb[0].mxu0
      %v890 = vadd.f32 0.0, %v889
      %v891 = vpop.f32.mrb[0].mxu0
      %v892 = vadd.f32 0.0, %v891
      %893 = vdwg.mxu0
      %v894 = vadd.f32 %v813, %v886
      %v895 = vadd.f32 %v814, %v888
      %v896 = vadd.f32 %v815, %v890
      %v897 = vadd.f32 %v816, %v892
      %898 = vrot.lane.b32.xlu0 %v411, 127
      %v899 = vpop.permute.xlu0 %898
      %900 = vrot.lane.b32.xlu0 %v412, 127
      %v901 = vpop.permute.xlu0 %900
      %902 = vrot.lane.b32.xlu0 %v413, 127
      %v903 = vpop.permute.xlu0 %902
      %904 = vrot.lane.b32.xlu0 %v414, 127
      %v905 = vpop.permute.xlu0 %904
      %vm906 = vcmask 1039360
      %v907 = vsel %vm906, %v899, %v901
      %v908 = vsel %vm906, %v903, %v905
      %v915 = vsel %vm906, %v901, %v899
      %v916 = vsel %vm906, %v905, %v903
      %v917 = vmul.f32 %v407, %v907
      %v918 = vmul.f32 %v408, %v915
      %v919 = vmul.f32 %v409, %v908
      %v920 = vmul.f32 %v410, %v916
      %s921 = scalar_lea.vmem %s7, 10
      %v922 = vld [vmem:[%s921] sm:$0x3]
      %v924 = vlaneseq
      %v925 = vshrl.u32 %v924, 7
      %v926 = vsub.s32 0, %v925
      %v927 = vrot.slane %v922, %v926
      %v928 = vlaneseq
      %v929 = vshrl.u32 %v928, 7
      %v930 = vsub.s32 1, %v929
      %v931 = vrot.slane %v922, %v930
      %v934 = vmul.f32 %v917, %v927
      %v935 = vmul.f32 %v918, %v931
      %v936 = vmul.f32 %v919, %v927
      %v937 = vmul.f32 %v920, %v931
      %s938 = scalar_lea.vmem %s4, 40
      %v939 = vld [vmem:[%s938] sm:$0xf]
      %v940 = vld [vmem:[%s938 + $0x4] sm:$0x1]
      %v941 = vpack.c.bf16 %v936, %v934
      %v942 = vpack.c.bf16 %v937, %v935
      %v945 = vunpack.c.l.b16 %v939
      %v946 = vunpack.c.l.b16 %v940
      %v947 = vpack.c.b16 %v946, %v945
      %v949 = vsel %vm480, %v947, 0
      %951 = vmatprep.subr.bf16.mxu0 %v942
      %952 = vmatpush1.bf16.msra.mxu0 %v941
      %953 = vmatprep.subr.bf16.mxu0 0
      %954 = vmatpush1.bf16.msra.mxu0 0
      %955 = vmatprep.subr.bf16.mxu0 0
      %956 = vmatpush1.bf16.msra.mxu0 0
      %957 = vmatprep.subr.bf16.mxu0 0
      %958 = vmatpush1.bf16.msra.mxu0 0
      %959 = vmatprep.subr.bf16.mxu0 0
      %960 = vmatpush1.bf16.msra.mxu0 0
      %961 = vmatprep.subr.bf16.mxu0 0
      %962 = vmatpush1.bf16.msra.mxu0 0
      %963 = vmatprep.subr.bf16.mxu0 0
      %964 = vmatpush1.bf16.msra.mxu0 0
      %965 = vmatprep.subr.bf16.mxu0 0
      %966 = vmatpush1.bf16.msra.mxu0 0
      %967 = vmatprep.subr.bf16.mxu0 0
      %968 = vmatpush1.bf16.msra.mxu0 0
      %969 = vmatprep.subr.bf16.mxu0 0
      %970 = vmatpush1.bf16.msra.mxu0 0
      %971 = vmatprep.subr.bf16.mxu0 0
      %972 = vmatpush1.bf16.msra.mxu0 0
      %973 = vmatprep.subr.bf16.mxu0 0
      %974 = vmatpush1.bf16.msra.mxu0 0
      %975 = vmatprep.subr.bf16.mxu0 0
      %976 = vmatpush1.bf16.msra.mxu0 0
      %977 = vmatprep.subr.bf16.mxu0 0
      %978 = vmatpush1.bf16.msra.mxu0 0
      %979 = vmatprep.subr.bf16.mxu0 0
      %980 = vmatpush1.bf16.msra.mxu0 0
      %981 = vmatprep.subr.bf16.mxu0 0
      %982 = vmatpush1.bf16.msra.mxu0 0
      %983 = vmatprep.mubr.bf16.mxu0 0
      %984 = vmatmul.mubr.bf16.gmra.mrb[0].mxu0 %v949
      %v985 = vpop.f32.mrb[0].mxu0
      %v986 = vadd.f32 0.0, %v985
      %v987 = vpop.f32.mrb[0].mxu0
      %v988 = vadd.f32 0.0, %v987
      %v989 = vpop.f32.mrb[0].mxu0
      %v990 = vadd.f32 0.0, %v989
      %v991 = vpop.f32.mrb[0].mxu0
      %v992 = vadd.f32 0.0, %v991
      %993 = vdwg.mxu0
      %v994 = vadd.f32 %v894, %v986
      %v995 = vadd.f32 %v895, %v988
      %v996 = vadd.f32 %v896, %v990
      %v997 = vadd.f32 %v897, %v992
      %998 = vrot.lane.b32.xlu0 %v411, 113
      %v999 = vpop.permute.xlu0 %998
      %1000 = vrot.lane.b32.xlu0 %v412, 113
      %v1001 = vpop.permute.xlu0 %1000
      %1002 = vrot.lane.b32.xlu0 %v413, 113
      %v1003 = vpop.permute.xlu0 %1002
      %1004 = vrot.lane.b32.xlu0 %v414, 113
      %v1005 = vpop.permute.xlu0 %1004
      %vm1006 = vcmask 924672
      %v1007 = vsel %vm1006, %v999, %v1001
      %v1008 = vsel %vm1006, %v1003, %v1005
      %v1015 = vsel %vm1006, %v1001, %v999
      %v1016 = vsel %vm1006, %v1005, %v1003
      %v1017 = vmul.f32 %v407, %v1007
      %v1018 = vmul.f32 %v408, %v1015
      %v1019 = vmul.f32 %v409, %v1008
      %v1020 = vmul.f32 %v410, %v1016
      %s1021 = scalar_lea.vmem %s7, 12
      %v1022 = vld [vmem:[%s1021] sm:$0x3]
      %v1024 = vlaneseq
      %v1025 = vshrl.u32 %v1024, 7
      %v1026 = vsub.s32 0, %v1025
      %v1027 = vrot.slane %v1022, %v1026
      %v1028 = vlaneseq
      %v1029 = vshrl.u32 %v1028, 7
      %v1030 = vsub.s32 1, %v1029
      %v1031 = vrot.slane %v1022, %v1030
      %v1034 = vmul.f32 %v1017, %v1027
      %v1035 = vmul.f32 %v1018, %v1031
      %v1036 = vmul.f32 %v1019, %v1027
      %v1037 = vmul.f32 %v1020, %v1031
      %s1038 = scalar_lea.vmem %s4, 48
      %v1039 = vld [vmem:[%s1038] sm:$0xf]
      %v1040 = vld [vmem:[%s1038 + $0x4] sm:$0x1]
      %v1041 = vpack.c.bf16 %v1036, %v1034
      %v1042 = vpack.c.bf16 %v1037, %v1035
      %v1045 = vunpack.c.l.b16 %v1039
      %v1046 = vunpack.c.l.b16 %v1040
      %v1047 = vpack.c.b16 %v1046, %v1045
      %v1049 = vsel %vm480, %v1047, 0
      %1051 = vmatprep.subr.bf16.mxu0 %v1042
      %1052 = vmatpush1.bf16.msra.mxu0 %v1041
      %1053 = vmatprep.subr.bf16.mxu0 0
      %1054 = vmatpush1.bf16.msra.mxu0 0
      %1055 = vmatprep.subr.bf16.mxu0 0
      %1056 = vmatpush1.bf16.msra.mxu0 0
      %1057 = vmatprep.subr.bf16.mxu0 0
      %1058 = vmatpush1.bf16.msra.mxu0 0
      %1059 = vmatprep.subr.bf16.mxu0 0
      %1060 = vmatpush1.bf16.msra.mxu0 0
      %1061 = vmatprep.subr.bf16.mxu0 0
      %1062 = vmatpush1.bf16.msra.mxu0 0
      %1063 = vmatprep.subr.bf16.mxu0 0
      %1064 = vmatpush1.bf16.msra.mxu0 0
      %1065 = vmatprep.subr.bf16.mxu0 0
      %1066 = vmatpush1.bf16.msra.mxu0 0
      %1067 = vmatprep.subr.bf16.mxu0 0
      %1068 = vmatpush1.bf16.msra.mxu0 0
      %1069 = vmatprep.subr.bf16.mxu0 0
      %1070 = vmatpush1.bf16.msra.mxu0 0
      %1071 = vmatprep.subr.bf16.mxu0 0
      %1072 = vmatpush1.bf16.msra.mxu0 0
      %1073 = vmatprep.subr.bf16.mxu0 0
      %1074 = vmatpush1.bf16.msra.mxu0 0
      %1075 = vmatprep.subr.bf16.mxu0 0
      %1076 = vmatpush1.bf16.msra.mxu0 0
      %1077 = vmatprep.subr.bf16.mxu0 0
      %1078 = vmatpush1.bf16.msra.mxu0 0
      %1079 = vmatprep.subr.bf16.mxu0 0
      %1080 = vmatpush1.bf16.msra.mxu0 0
      %1081 = vmatprep.subr.bf16.mxu0 0
      %1082 = vmatpush1.bf16.msra.mxu0 0
      %1083 = vmatprep.mubr.bf16.mxu0 0
      %1084 = vmatmul.mubr.bf16.gmra.mrb[0].mxu0 %v1049
      %v1085 = vpop.f32.mrb[0].mxu0
      %v1086 = vadd.f32 0.0, %v1085
      %v1087 = vpop.f32.mrb[0].mxu0
      %v1088 = vadd.f32 0.0, %v1087
      %v1089 = vpop.f32.mrb[0].mxu0
      %v1090 = vadd.f32 0.0, %v1089
      %v1091 = vpop.f32.mrb[0].mxu0
      %v1092 = vadd.f32 0.0, %v1091
      %1093 = vdwg.mxu0
      %v1094 = vadd.f32 %v994, %v1086
      %v1095 = vadd.f32 %v995, %v1088
      %v1096 = vadd.f32 %v996, %v1090
      %v1097 = vadd.f32 %v997, %v1092
      %1098 = vrot.lane.b32.xlu0 %v411, 112
      %v1099 = vpop.permute.xlu0 %1098
      %1100 = vrot.lane.b32.xlu0 %v412, 112
      %v1101 = vpop.permute.xlu0 %1100
      %1102 = vrot.lane.b32.xlu0 %v413, 112
      %v1103 = vpop.permute.xlu0 %1102
      %1104 = vrot.lane.b32.xlu0 %v414, 112
      %v1105 = vpop.permute.xlu0 %1104
      %vm1106 = vcmask 916480
      %v1107 = vsel %vm1106, %v1099, %v1101
      %v1108 = vsel %vm1106, %v1103, %v1105
      %v1115 = vsel %vm1106, %v1101, %v1099
      %v1116 = vsel %vm1106, %v1105, %v1103
      %v1117 = vmul.f32 %v407, %v1107
      %v1118 = vmul.f32 %v408, %v1115
      %v1119 = vmul.f32 %v409, %v1108
      %v1120 = vmul.f32 %v410, %v1116
      %s1121 = scalar_lea.vmem %s7, 14
      %v1122 = vld [vmem:[%s1121] sm:$0x3]
      %v1124 = vlaneseq
      %v1125 = vshrl.u32 %v1124, 7
      %v1126 = vsub.s32 0, %v1125
      %v1127 = vrot.slane %v1122, %v1126
      %v1128 = vlaneseq
      %v1129 = vshrl.u32 %v1128, 7
      %v1130 = vsub.s32 1, %v1129
      %v1131 = vrot.slane %v1122, %v1130
      %v1134 = vmul.f32 %v1117, %v1127
      %v1135 = vmul.f32 %v1118, %v1131
      %v1136 = vmul.f32 %v1119, %v1127
      %v1137 = vmul.f32 %v1120, %v1131
      %s1138 = scalar_lea.vmem %s4, 56
      %v1139 = vld [vmem:[%s1138] sm:$0xf]
      %v1140 = vld [vmem:[%s1138 + $0x4] sm:$0x1]
      %v1141 = vpack.c.bf16 %v1136, %v1134
      %v1142 = vpack.c.bf16 %v1137, %v1135
      %v1145 = vunpack.c.l.b16 %v1139
      %v1146 = vunpack.c.l.b16 %v1140
      %v1147 = vpack.c.b16 %v1146, %v1145
      %v1149 = vsel %vm480, %v1147, 0
      %1151 = vmatprep.subr.bf16.mxu0 %v1142
      %1152 = vmatpush1.bf16.msra.mxu0 %v1141
      %1153 = vmatprep.subr.bf16.mxu0 0
      %1154 = vmatpush1.bf16.msra.mxu0 0
      %1155 = vmatprep.subr.bf16.mxu0 0
      %1156 = vmatpush1.bf16.msra.mxu0 0
      %1157 = vmatprep.subr.bf16.mxu0 0
      %1158 = vmatpush1.bf16.msra.mxu0 0
      %1159 = vmatprep.subr.bf16.mxu0 0
      %1160 = vmatpush1.bf16.msra.mxu0 0
      %1161 = vmatprep.subr.bf16.mxu0 0
      %1162 = vmatpush1.bf16.msra.mxu0 0
      %1163 = vmatprep.subr.bf16.mxu0 0
      %1164 = vmatpush1.bf16.msra.mxu0 0
      %1165 = vmatprep.subr.bf16.mxu0 0
      %1166 = vmatpush1.bf16.msra.mxu0 0
      %1167 = vmatprep.subr.bf16.mxu0 0
      %1168 = vmatpush1.bf16.msra.mxu0 0
      %1169 = vmatprep.subr.bf16.mxu0 0
      %1170 = vmatpush1.bf16.msra.mxu0 0
      %1171 = vmatprep.subr.bf16.mxu0 0
      %1172 = vmatpush1.bf16.msra.mxu0 0
      %1173 = vmatprep.subr.bf16.mxu0 0
      %1174 = vmatpush1.bf16.msra.mxu0 0
      %1175 = vmatprep.subr.bf16.mxu0 0
      %1176 = vmatpush1.bf16.msra.mxu0 0
      %1177 = vmatprep.subr.bf16.mxu0 0
      %1178 = vmatpush1.bf16.msra.mxu0 0
      %1179 = vmatprep.subr.bf16.mxu0 0
      %1180 = vmatpush1.bf16.msra.mxu0 0
      %1181 = vmatprep.subr.bf16.mxu0 0
      %1182 = vmatpush1.bf16.msra.mxu0 0
      %1183 = vmatprep.mubr.bf16.mxu0 0
      %1184 = vmatmul.mubr.bf16.gmra.mrb[0].mxu0 %v1149
      %v1185 = vpop.f32.mrb[0].mxu0
      %v1186 = vadd.f32 0.0, %v1185
      %v1187 = vpop.f32.mrb[0].mxu0
      %v1188 = vadd.f32 0.0, %v1187
      %v1189 = vpop.f32.mrb[0].mxu0
      %v1190 = vadd.f32 0.0, %v1189
      %v1191 = vpop.f32.mrb[0].mxu0
      %v1192 = vadd.f32 0.0, %v1191
      %1193 = vdwg.mxu0
      %v1194 = vadd.f32 %v1094, %v1186
      %v1195 = vadd.f32 %v1095, %v1188
      %v1196 = vadd.f32 %v1096, %v1190
      %v1197 = vadd.f32 %v1097, %v1192
      %1198 = vrot.lane.b32.xlu0 %v411, 111
      %v1199 = vpop.permute.xlu0 %1198
      %1200 = vrot.lane.b32.xlu0 %v412, 111
      %v1201 = vpop.permute.xlu0 %1200
      %1202 = vrot.lane.b32.xlu0 %v413, 111
      %v1203 = vpop.permute.xlu0 %1202
      %1204 = vrot.lane.b32.xlu0 %v414, 111
      %v1205 = vpop.permute.xlu0 %1204
      %vm1206 = vcmask 908288
      %v1207 = vsel %vm1206, %v1199, %v1201
      %v1208 = vsel %vm1206, %v1203, %v1205
      %v1215 = vsel %vm1206, %v1201, %v1199
      %v1216 = vsel %vm1206, %v1205, %v1203
      %v1217 = vmul.f32 %v407, %v1207
      %v1218 = vmul.f32 %v408, %v1215
      %v1219 = vmul.f32 %v409, %v1208
      %v1220 = vmul.f32 %v410, %v1216
      %s1221 = scalar_lea.vmem %s7, 16
      %v1222 = vld [vmem:[%s1221] sm:$0x3]
      %v1224 = vlaneseq
      %v1225 = vshrl.u32 %v1224, 7
      %v1226 = vsub.s32 0, %v1225
      %v1227 = vrot.slane %v1222, %v1226
      %v1228 = vlaneseq
      %v1229 = vshrl.u32 %v1228, 7
      %v1230 = vsub.s32 1, %v1229
      %v1231 = vrot.slane %v1222, %v1230
      %v1234 = vmul.f32 %v1217, %v1227
      %v1235 = vmul.f32 %v1218, %v1231
      %v1236 = vmul.f32 %v1219, %v1227
      %v1237 = vmul.f32 %v1220, %v1231
      %s1238 = scalar_lea.vmem %s4, 64
      %v1239 = vld [vmem:[%s1238] sm:$0xf]
      %v1240 = vld [vmem:[%s1238 + $0x4] sm:$0x1]
      %v1241 = vpack.c.bf16 %v1236, %v1234
      %v1242 = vpack.c.bf16 %v1237, %v1235
      %v1245 = vunpack.c.l.b16 %v1239
      %v1246 = vunpack.c.l.b16 %v1240
      %v1247 = vpack.c.b16 %v1246, %v1245
      %v1249 = vsel %vm480, %v1247, 0
      %1251 = vmatprep.subr.bf16.mxu0 %v1242
      %1252 = vmatpush1.bf16.msra.mxu0 %v1241
      %1253 = vmatprep.subr.bf16.mxu0 0
      %1254 = vmatpush1.bf16.msra.mxu0 0
      %1255 = vmatprep.subr.bf16.mxu0 0
      %1256 = vmatpush1.bf16.msra.mxu0 0
      %1257 = vmatprep.subr.bf16.mxu0 0
      %1258 = vmatpush1.bf16.msra.mxu0 0
      %1259 = vmatprep.subr.bf16.mxu0 0
      %1260 = vmatpush1.bf16.msra.mxu0 0
      %1261 = vmatprep.subr.bf16.mxu0 0
      %1262 = vmatpush1.bf16.msra.mxu0 0
      %1263 = vmatprep.subr.bf16.mxu0 0
      %1264 = vmatpush1.bf16.msra.mxu0 0
      %1265 = vmatprep.subr.bf16.mxu0 0
      %1266 = vmatpush1.bf16.msra.mxu0 0
      %1267 = vmatprep.subr.bf16.mxu0 0
      %1268 = vmatpush1.bf16.msra.mxu0 0
      %1269 = vmatprep.subr.bf16.mxu0 0
      %1270 = vmatpush1.bf16.msra.mxu0 0
      %1271 = vmatprep.subr.bf16.mxu0 0
      %1272 = vmatpush1.bf16.msra.mxu0 0
      %1273 = vmatprep.subr.bf16.mxu0 0
      %1274 = vmatpush1.bf16.msra.mxu0 0
      %1275 = vmatprep.subr.bf16.mxu0 0
      %1276 = vmatpush1.bf16.msra.mxu0 0
      %1277 = vmatprep.subr.bf16.mxu0 0
      %1278 = vmatpush1.bf16.msra.mxu0 0
      %1279 = vmatprep.subr.bf16.mxu0 0
      %1280 = vmatpush1.bf16.msra.mxu0 0
      %1281 = vmatprep.subr.bf16.mxu0 0
      %1282 = vmatpush1.bf16.msra.mxu0 0
      %1283 = vmatprep.mubr.bf16.mxu0 0
      %1284 = vmatmul.mubr.bf16.gmra.mrb[0].mxu0 %v1249
      %v1285 = vpop.f32.mrb[0].mxu0
      %v1286 = vadd.f32 0.0, %v1285
      %v1287 = vpop.f32.mrb[0].mxu0
      %v1288 = vadd.f32 0.0, %v1287
      %v1289 = vpop.f32.mrb[0].mxu0
      %v1290 = vadd.f32 0.0, %v1289
      %v1291 = vpop.f32.mrb[0].mxu0
      %v1292 = vadd.f32 0.0, %v1291
      %1293 = vdwg.mxu0
      %v1294 = vadd.f32 %v1194, %v1286
      %v1295 = vadd.f32 %v1195, %v1288
      %v1296 = vadd.f32 %v1196, %v1290
      %v1297 = vadd.f32 %v1197, %v1292
      %vm1298 = vcmp.gt.f32.partialorder %v1294, 0.0
      %vm1299 = vcmp.gt.f32.partialorder %v1295, 0.0
      %vm1300 = vcmp.gt.f32.partialorder %v1296, 0.0
      %vm1301 = vcmp.gt.f32.partialorder %v1297, 0.0
      %v1302 = vmul.f32 %v1294, 0.01
      %v1303 = vmul.f32 %v1295, 0.01
      %v1304 = vmul.f32 %v1296, 0.01
      %v1305 = vmul.f32 %v1297, 0.01
      %v1306 = vsel %vm1298, %v1294, %v1302
      %v1307 = vsel %vm1299, %v1295, %v1303
      %v1308 = vsel %vm1300, %v1296, %v1304
      %v1309 = vsel %vm1301, %v1297, %v1305
      %vm1314 = vcmask 1040384
      %v1315 = vrot.slane %v415, 7
      %v1316 = vrot.slane %v416, 7
      %v1317 = vrot.slane %v417, 7
      %v1318 = vsel %vm1314, %v1315, %v1317
      %v1319 = vrot.slane %v418, 7
      %v1320 = vsel %vm1314, %v1316, %v1319
      %v1325 = vsel %vm1314, %v1308, %v1315
      %v1326 = vsel %vm1314, %v1309, %v1316
      %1329 = vrot.lane.b32.xlu0 %v1307, 17
      %v1330 = vpop.permute.xlu0 %1329
      %1331 = vrot.lane.b32.xlu0 %v1326, 17
      %v1332 = vpop.permute.xlu0 %1331
      %1333 = vrot.lane.b32.xlu0 %v1320, 17
      %v1334 = vpop.permute.xlu0 %1333
      %1340 = vrot.lane.b32.xlu0 %v1306, 17
      %v1341 = vpop.permute.xlu0 %1340
      %1342 = vrot.lane.b32.xlu0 %v1325, 17
      %v1343 = vpop.permute.xlu0 %1342
      %1344 = vrot.lane.b32.xlu0 %v1318, 17
      %v1345 = vpop.permute.xlu0 %1344
      %v1346 = vsel %vm437, %v1341, %v1330
      %v1347 = vsel %vm437, %v1343, %v1332
      %v1348 = vsel %vm437, %v1345, %v1334
      %v1355 = vsel %vm437, %v1330, %v1341
      %v1356 = vsel %vm437, %v1332, %v1343
      %v1357 = vsel %vm437, %v1334, %v1345
      %s1358 = scalar_lea.vmem %s7, 18
      %v1359 = vld [vmem:[%s1358] sm:$0x3]
      %v1361 = vlaneseq
      %v1362 = vshrl.u32 %v1361, 7
      %v1363 = vsub.s32 0, %v1362
      %v1364 = vrot.slane %v1359, %v1363
      %v1365 = vlaneseq
      %v1366 = vshrl.u32 %v1365, 7
      %v1367 = vsub.s32 1, %v1366
      %v1368 = vrot.slane %v1359, %v1367
      %v1371 = vmul.f32 %v1355, %v1364
      %v1372 = vmul.f32 %v1346, %v1368
      %v1373 = vmul.f32 %v1356, %v1364
      %v1374 = vmul.f32 %v1347, %v1368
      %v1375 = vmul.f32 %v1357, %v1364
      %v1376 = vmul.f32 %v1348, %v1368
      %v1377 = vpack.c.bf16 %v1373, %v1371
      %v1378 = vpack.c.bf16 %v1374, %v1372
      %v1379 = vpack.c.bf16 %v1375, %v1375
      %v1380 = vpack.c.bf16 %v1376, %v1376
      %v1381 = vld [vmem:[%s5] sm:$0xf]
      %v1382 = vld [vmem:[%s5 + $0x4] sm:$0xf]
      %v1383 = vld [vmem:[%s5 + $0x8] sm:$0xf]
      %v1384 = vld [vmem:[%s5 + $0xc] sm:$0xf]
      %v1385 = vld [vmem:[%s5 + $0x10] sm:$0x3]
      %1386 = vrot.lane.b32.xlu0 %v1307, 16
      %v1387 = vpop.permute.xlu0 %1386
      %1388 = vrot.lane.b32.xlu0 %v1326, 16
      %v1389 = vpop.permute.xlu0 %1388
      %1390 = vrot.lane.b32.xlu0 %v1320, 16
      %v1391 = vpop.permute.xlu0 %1390
      %1395 = vrot.lane.b32.xlu0 %v1306, 16
      %v1396 = vpop.permute.xlu0 %1395
      %1397 = vrot.lane.b32.xlu0 %v1325, 16
      %v1398 = vpop.permute.xlu0 %1397
      %1399 = vrot.lane.b32.xlu0 %v1318, 16
      %v1400 = vpop.permute.xlu0 %1399
      %v1401 = vsel %vm480, %v1396, %v1387
      %v1402 = vsel %vm480, %v1398, %v1389
      %v1403 = vsel %vm480, %v1400, %v1391
      %v1410 = vsel %vm480, %v1387, %v1396
      %v1411 = vsel %vm480, %v1389, %v1398
      %v1412 = vsel %vm480, %v1391, %v1400
      %s1413 = scalar_lea.vmem %s7, 20
      %v1414 = vld [vmem:[%s1413] sm:$0x3]
      %v1416 = vlaneseq
      %v1417 = vshrl.u32 %v1416, 7
      %v1418 = vsub.s32 0, %v1417
      %v1419 = vrot.slane %v1414, %v1418
      %v1420 = vlaneseq
      %v1421 = vshrl.u32 %v1420, 7
      %v1422 = vsub.s32 1, %v1421
      %v1423 = vrot.slane %v1414, %v1422
      %v1426 = vmul.f32 %v1410, %v1419
      %v1427 = vmul.f32 %v1401, %v1423
      %v1428 = vmul.f32 %v1411, %v1419
      %v1429 = vmul.f32 %v1402, %v1423
      %v1430 = vmul.f32 %v1412, %v1419
      %v1431 = vmul.f32 %v1403, %v1423
      %v1432 = vpack.c.bf16 %v1428, %v1426
      %v1433 = vpack.c.bf16 %v1429, %v1427
      %v1434 = vpack.c.bf16 %v1430, %v1430
      %v1435 = vpack.c.bf16 %v1431, %v1431
      %s1436 = scalar_lea.vmem %s5, 20
      %v1437 = vld [vmem:[%s1436] sm:$0xf]
      %v1438 = vld [vmem:[%s1436 + $0x4] sm:$0xf]
      %v1439 = vld [vmem:[%s1436 + $0x8] sm:$0xf]
      %v1440 = vld [vmem:[%s1436 + $0xc] sm:$0xf]
      %v1441 = vld [vmem:[%s1436 + $0x10] sm:$0x3]
      %v1447 = vunpack.c.l.b16 %v1437
      %v1448 = vunpack.c.l.b16 %v1438
      %v1449 = vunpack.c.l.b16 %v1439
      %v1450 = vunpack.c.l.b16 %v1440
      %v1451 = vunpack.c.l.b16 %v1441
      %v1452 = vpack.c.b16 %v1448, %v1447
      %v1453 = vpack.c.b16 %v1450, %v1449
      %v1454 = vpack.c.b16 %v1451, %v1451
      %vm1455 = vcmask 146432
      %v1457 = vsel %vm1455, %v1452, 0
      %v1460 = vsel %vm1455, %v1453, 0
      %v1463 = vsel %vm1455, %v1454, 0
      %v1466 = vsel %vm1314, %v1434, 0
      %v1469 = vsel %vm1314, %v1435, 0
      %1471 = vmatprep.subr.bf16.mxu0 %v1433
      %1472 = vmatpush1.bf16.msra.mxu0 %v1432
      %1473 = vmatprep.subr.bf16.mxu0 %v1469
      %1474 = vmatpush1.bf16.msra.mxu0 %v1466
      %1475 = vmatprep.subr.bf16.mxu0 0
      %1476 = vmatpush1.bf16.msra.mxu0 0
      %1477 = vmatprep.subr.bf16.mxu0 0
      %1478 = vmatpush1.bf16.msra.mxu0 0
      %1479 = vmatprep.subr.bf16.mxu0 0
      %1480 = vmatpush1.bf16.msra.mxu0 0
      %1481 = vmatprep.subr.bf16.mxu0 0
      %1482 = vmatpush1.bf16.msra.mxu0 0
      %1483 = vmatprep.subr.bf16.mxu0 0
      %1484 = vmatpush1.bf16.msra.mxu0 0
      %1485 = vmatprep.subr.bf16.mxu0 0
      %1486 = vmatpush1.bf16.msra.mxu0 0
      %1487 = vmatprep.subr.bf16.mxu0 0
      %1488 = vmatpush1.bf16.msra.mxu0 0
      %1489 = vmatprep.subr.bf16.mxu0 0
      %1490 = vmatpush1.bf16.msra.mxu0 0
      %1491 = vmatprep.subr.bf16.mxu0 0
      %1492 = vmatpush1.bf16.msra.mxu0 0
      %1493 = vmatprep.subr.bf16.mxu0 0
      %1494 = vmatpush1.bf16.msra.mxu0 0
      %1495 = vmatprep.subr.bf16.mxu0 0
      %1496 = vmatpush1.bf16.msra.mxu0 0
      %1497 = vmatprep.subr.bf16.mxu0 0
      %1498 = vmatpush1.bf16.msra.mxu0 0
      %1499 = vmatprep.subr.bf16.mxu0 0
      %1500 = vmatpush1.bf16.msra.mxu0 0
      %1501 = vmatprep.subr.bf16.mxu0 0
      %1502 = vmatpush1.bf16.msra.mxu0 0
      %1503 = vmatprep.mubr.bf16.mxu0 0
      %1504 = vmatmul.mubr.bf16.gmra.mrb[0].mxu0 %v1457
      %v1505 = vpop.f32.mrb[0].mxu0
      %v1506 = vadd.f32 0.0, %v1505
      %v1507 = vpop.f32.mrb[0].mxu0
      %v1508 = vadd.f32 0.0, %v1507
      %v1509 = vpop.f32.mrb[0].mxu0
      %v1510 = vadd.f32 0.0, %v1509
      %v1511 = vpop.f32.mrb[0].mxu0
      %v1512 = vadd.f32 0.0, %v1511
      %1513 = vmatprep.mubr.bf16.mxu0 0
      %1514 = vmatmul.mubr.bf16.gmra.mrb[0].mxu0 %v1460
      %v1515 = vpop.f32.mrb[0].mxu0
      %v1516 = vadd.f32 0.0, %v1515
      %v1517 = vpop.f32.mrb[0].mxu0
      %v1518 = vadd.f32 0.0, %v1517
      %v1519 = vpop.f32.mrb[0].mxu0
      %v1520 = vadd.f32 0.0, %v1519
      %v1521 = vpop.f32.mrb[0].mxu0
      %v1522 = vadd.f32 0.0, %v1521
      %1523 = vmatprep.mubr.bf16.mxu0 0
      %1524 = vmatmul.mubr.bf16.gmra.mrb[0].mxu0 %v1463
      %v1525 = vpop.f32.mrb[0].mxu0
      %v1526 = vadd.f32 0.0, %v1525
      %v1527 = vpop.f32.mrb[0].mxu0
      %v1528 = vadd.f32 0.0, %v1527
      %v1529 = vpop.f32.mrb[0].mxu0
      %v1530 = vpop.f32.mrb[0].mxu0
      %1531 = vdwg.mxu0
      %v1537 = vunpack.c.l.b16 %v1381
      %v1538 = vunpack.c.l.b16 %v1382
      %v1539 = vunpack.c.l.b16 %v1383
      %v1540 = vunpack.c.l.b16 %v1384
      %v1541 = vunpack.c.l.b16 %v1385
      %v1542 = vpack.c.b16 %v1538, %v1537
      %v1543 = vpack.c.b16 %v1540, %v1539
      %v1544 = vpack.c.b16 %v1541, %v1541
      %v1546 = vsel %vm1455, %v1542, 0
      %v1549 = vsel %vm1455, %v1543, 0
      %v1552 = vsel %vm1455, %v1544, 0
      %v1555 = vsel %vm1314, %v1379, 0
      %v1558 = vsel %vm1314, %v1380, 0
      %1560 = vmatprep.subr.bf16.mxu0 %v1378
      %1561 = vmatpush1.bf16.msra.mxu0 %v1377
      %1562 = vmatprep.subr.bf16.mxu0 %v1558
      %1563 = vmatpush1.bf16.msra.mxu0 %v1555
      %1564 = vmatprep.subr.bf16.mxu0 0
      %1565 = vmatpush1.bf16.msra.mxu0 0
      %1566 = vmatprep.subr.bf16.mxu0 0
      %1567 = vmatpush1.bf16.msra.mxu0 0
      %1568 = vmatprep.subr.bf16.mxu0 0
      %1569 = vmatpush1.bf16.msra.mxu0 0
      %1570 = vmatprep.subr.bf16.mxu0 0
      %1571 = vmatpush1.bf16.msra.mxu0 0
      %1572 = vmatprep.subr.bf16.mxu0 0
      %1573 = vmatpush1.bf16.msra.mxu0 0
      %1574 = vmatprep.subr.bf16.mxu0 0
      %1575 = vmatpush1.bf16.msra.mxu0 0
      %1576 = vmatprep.subr.bf16.mxu0 0
      %1577 = vmatpush1.bf16.msra.mxu0 0
      %1578 = vmatprep.subr.bf16.mxu0 0
      %1579 = vmatpush1.bf16.msra.mxu0 0
      %1580 = vmatprep.subr.bf16.mxu0 0
      %1581 = vmatpush1.bf16.msra.mxu0 0
      %1582 = vmatprep.subr.bf16.mxu0 0
      %1583 = vmatpush1.bf16.msra.mxu0 0
      %1584 = vmatprep.subr.bf16.mxu0 0
      %1585 = vmatpush1.bf16.msra.mxu0 0
      %1586 = vmatprep.subr.bf16.mxu0 0
      %1587 = vmatpush1.bf16.msra.mxu0 0
      %1588 = vmatprep.subr.bf16.mxu0 0
      %1589 = vmatpush1.bf16.msra.mxu0 0
      %1590 = vmatprep.subr.bf16.mxu0 0
      %1591 = vmatpush1.bf16.msra.mxu0 0
      %1592 = vmatprep.mubr.bf16.mxu0 0
      %1593 = vmatmul.mubr.bf16.gmra.mrb[0].mxu0 %v1546
      %v1594 = vpop.f32.mrb[0].mxu0
      %v1595 = vadd.f32 %v1506, %v1594
      %v1596 = vpop.f32.mrb[0].mxu0
      %v1597 = vadd.f32 %v1508, %v1596
      %v1598 = vpop.f32.mrb[0].mxu0
      %v1599 = vadd.f32 %v1510, %v1598
      %v1600 = vpop.f32.mrb[0].mxu0
      %v1601 = vadd.f32 %v1512, %v1600
      %1602 = vmatprep.mubr.bf16.mxu0 0
      %1603 = vmatmul.mubr.bf16.gmra.mrb[0].mxu0 %v1549
      %v1604 = vpop.f32.mrb[0].mxu0
      %v1605 = vadd.f32 %v1516, %v1604
      %v1606 = vpop.f32.mrb[0].mxu0
      %v1607 = vadd.f32 %v1518, %v1606
      %v1608 = vpop.f32.mrb[0].mxu0
      %v1609 = vadd.f32 %v1520, %v1608
      %v1610 = vpop.f32.mrb[0].mxu0
      %v1611 = vadd.f32 %v1522, %v1610
      %1612 = vmatprep.mubr.bf16.mxu0 0
      %1613 = vmatmul.mubr.bf16.gmra.mrb[0].mxu0 %v1552
      %v1614 = vpop.f32.mrb[0].mxu0
      %v1615 = vadd.f32 %v1526, %v1614
      %v1616 = vpop.f32.mrb[0].mxu0
      %v1617 = vadd.f32 %v1528, %v1616
      %v1618 = vpop.f32.mrb[0].mxu0
      %v1619 = vpop.f32.mrb[0].mxu0
      %1620 = vdwg.mxu0
      %1621 = vrot.lane.b32.xlu0 %v1307, 15
      %v1622 = vpop.permute.xlu0 %1621
      %1623 = vrot.lane.b32.xlu0 %v1326, 15
      %v1624 = vpop.permute.xlu0 %1623
      %1625 = vrot.lane.b32.xlu0 %v1320, 15
      %v1626 = vpop.permute.xlu0 %1625
      %1630 = vrot.lane.b32.xlu0 %v1306, 15
      %v1631 = vpop.permute.xlu0 %1630
      %1632 = vrot.lane.b32.xlu0 %v1325, 15
      %v1633 = vpop.permute.xlu0 %1632
      %1634 = vrot.lane.b32.xlu0 %v1318, 15
      %v1635 = vpop.permute.xlu0 %1634
      %v1636 = vsel %vm627, %v1631, %v1622
      %v1637 = vsel %vm627, %v1633, %v1624
      %v1638 = vsel %vm627, %v1635, %v1626
      %v1645 = vsel %vm627, %v1622, %v1631
      %v1646 = vsel %vm627, %v1624, %v1633
      %v1647 = vsel %vm627, %v1626, %v1635
      %s1648 = scalar_lea.vmem %s7, 22
      %v1649 = vld [vmem:[%s1648] sm:$0x3]
      %v1651 = vlaneseq
      %v1652 = vshrl.u32 %v1651, 7
      %v1653 = vsub.s32 0, %v1652
      %v1654 = vrot.slane %v1649, %v1653
      %v1655 = vlaneseq
      %v1656 = vshrl.u32 %v1655, 7
      %v1657 = vsub.s32 1, %v1656
      %v1658 = vrot.slane %v1649, %v1657
      %v1661 = vmul.f32 %v1645, %v1654
      %v1662 = vmul.f32 %v1636, %v1658
      %v1663 = vmul.f32 %v1646, %v1654
      %v1664 = vmul.f32 %v1637, %v1658
      %v1665 = vmul.f32 %v1647, %v1654
      %v1666 = vmul.f32 %v1638, %v1658
      %v1667 = vpack.c.bf16 %v1663, %v1661
      %v1668 = vpack.c.bf16 %v1664, %v1662
      %v1669 = vpack.c.bf16 %v1665, %v1665
      %v1670 = vpack.c.bf16 %v1666, %v1666
      %s1671 = scalar_lea.vmem %s5, 40
      %v1672 = vld [vmem:[%s1671] sm:$0xf]
      %v1673 = vld [vmem:[%s1671 + $0x4] sm:$0xf]
      %v1674 = vld [vmem:[%s1671 + $0x8] sm:$0xf]
      %v1675 = vld [vmem:[%s1671 + $0xc] sm:$0xf]
      %v1676 = vld [vmem:[%s1671 + $0x10] sm:$0x3]
      %v1682 = vunpack.c.l.b16 %v1672
      %v1683 = vunpack.c.l.b16 %v1673
      %v1684 = vunpack.c.l.b16 %v1674
      %v1685 = vunpack.c.l.b16 %v1675
      %v1686 = vunpack.c.l.b16 %v1676
      %v1687 = vpack.c.b16 %v1683, %v1682
      %v1688 = vpack.c.b16 %v1685, %v1684
      %v1689 = vpack.c.b16 %v1686, %v1686
      %v1691 = vsel %vm1455, %v1687, 0
      %v1694 = vsel %vm1455, %v1688, 0
      %v1697 = vsel %vm1455, %v1689, 0
      %v1700 = vsel %vm1314, %v1669, 0
      %v1703 = vsel %vm1314, %v1670, 0
      %1705 = vmatprep.subr.bf16.mxu0 %v1668
      %1706 = vmatpush1.bf16.msra.mxu0 %v1667
      %1707 = vmatprep.subr.bf16.mxu0 %v1703
      %1708 = vmatpush1.bf16.msra.mxu0 %v1700
      %1709 = vmatprep.subr.bf16.mxu0 0
      %1710 = vmatpush1.bf16.msra.mxu0 0
      %1711 = vmatprep.subr.bf16.mxu0 0
      %1712 = vmatpush1.bf16.msra.mxu0 0
      %1713 = vmatprep.subr.bf16.mxu0 0
      %1714 = vmatpush1.bf16.msra.mxu0 0
      %1715 = vmatprep.subr.bf16.mxu0 0
      %1716 = vmatpush1.bf16.msra.mxu0 0
      %1717 = vmatprep.subr.bf16.mxu0 0
      %1718 = vmatpush1.bf16.msra.mxu0 0
      %1719 = vmatprep.subr.bf16.mxu0 0
      %1720 = vmatpush1.bf16.msra.mxu0 0
      %1721 = vmatprep.subr.bf16.mxu0 0
      %1722 = vmatpush1.bf16.msra.mxu0 0
      %1723 = vmatprep.subr.bf16.mxu0 0
      %1724 = vmatpush1.bf16.msra.mxu0 0
      %1725 = vmatprep.subr.bf16.mxu0 0
      %1726 = vmatpush1.bf16.msra.mxu0 0
      %1727 = vmatprep.subr.bf16.mxu0 0
      %1728 = vmatpush1.bf16.msra.mxu0 0
      %1729 = vmatprep.subr.bf16.mxu0 0
      %1730 = vmatpush1.bf16.msra.mxu0 0
      %1731 = vmatprep.subr.bf16.mxu0 0
      %1732 = vmatpush1.bf16.msra.mxu0 0
      %1733 = vmatprep.subr.bf16.mxu0 0
      %1734 = vmatpush1.bf16.msra.mxu0 0
      %1735 = vmatprep.subr.bf16.mxu0 0
      %1736 = vmatpush1.bf16.msra.mxu0 0
      %1737 = vmatprep.mubr.bf16.mxu0 0
      %1738 = vmatmul.mubr.bf16.gmra.mrb[0].mxu0 %v1691
      %v1739 = vpop.f32.mrb[0].mxu0
      %v1740 = vadd.f32 0.0, %v1739
      %v1741 = vpop.f32.mrb[0].mxu0
      %v1742 = vadd.f32 0.0, %v1741
      %v1743 = vpop.f32.mrb[0].mxu0
      %v1744 = vadd.f32 0.0, %v1743
      %v1745 = vpop.f32.mrb[0].mxu0
      %v1746 = vadd.f32 0.0, %v1745
      %1747 = vmatprep.mubr.bf16.mxu0 0
      %1748 = vmatmul.mubr.bf16.gmra.mrb[0].mxu0 %v1694
      %v1749 = vpop.f32.mrb[0].mxu0
      %v1750 = vadd.f32 0.0, %v1749
      %v1751 = vpop.f32.mrb[0].mxu0
      %v1752 = vadd.f32 0.0, %v1751
      %v1753 = vpop.f32.mrb[0].mxu0
      %v1754 = vadd.f32 0.0, %v1753
      %v1755 = vpop.f32.mrb[0].mxu0
      %v1756 = vadd.f32 0.0, %v1755
      %1757 = vmatprep.mubr.bf16.mxu0 0
      %1758 = vmatmul.mubr.bf16.gmra.mrb[0].mxu0 %v1697
      %v1759 = vpop.f32.mrb[0].mxu0
      %v1760 = vadd.f32 0.0, %v1759
      %v1761 = vpop.f32.mrb[0].mxu0
      %v1762 = vadd.f32 0.0, %v1761
      %v1763 = vpop.f32.mrb[0].mxu0
      %v1764 = vpop.f32.mrb[0].mxu0
      %1765 = vdwg.mxu0
      %v1766 = vadd.f32 %v1595, %v1740
      %v1767 = vadd.f32 %v1597, %v1742
      %v1768 = vadd.f32 %v1599, %v1744
      %v1769 = vadd.f32 %v1601, %v1746
      %v1770 = vadd.f32 %v1605, %v1750
      %v1771 = vadd.f32 %v1607, %v1752
      %v1772 = vadd.f32 %v1609, %v1754
      %v1773 = vadd.f32 %v1611, %v1756
      %v1774 = vadd.f32 %v1615, %v1760
      %v1775 = vadd.f32 %v1617, %v1762
      %1776 = vrot.lane.b32.xlu0 %v1307, 1
      %v1777 = vpop.permute.xlu0 %1776
      %1778 = vrot.lane.b32.xlu0 %v1326, 1
      %v1779 = vpop.permute.xlu0 %1778
      %1780 = vrot.lane.b32.xlu0 %v1320, 1
      %v1781 = vpop.permute.xlu0 %1780
      %1785 = vrot.lane.b32.xlu0 %v1306, 1
      %v1786 = vpop.permute.xlu0 %1785
      %1787 = vrot.lane.b32.xlu0 %v1325, 1
      %v1788 = vpop.permute.xlu0 %1787
      %1789 = vrot.lane.b32.xlu0 %v1318, 1
      %v1790 = vpop.permute.xlu0 %1789
      %v1791 = vsel %vm727, %v1786, %v1777
      %v1792 = vsel %vm727, %v1788, %v1779
      %v1793 = vsel %vm727, %v1790, %v1781
      %v1800 = vsel %vm727, %v1777, %v1786
      %v1801 = vsel %vm727, %v1779, %v1788
      %v1802 = vsel %vm727, %v1781, %v1790
      %s1803 = scalar_lea.vmem %s7, 24
      %v1804 = vld [vmem:[%s1803] sm:$0x3]
      %v1806 = vlaneseq
      %v1807 = vshrl.u32 %v1806, 7
      %v1808 = vsub.s32 0, %v1807
      %v1809 = vrot.slane %v1804, %v1808
      %v1810 = vlaneseq
      %v1811 = vshrl.u32 %v1810, 7
      %v1812 = vsub.s32 1, %v1811
      %v1813 = vrot.slane %v1804, %v1812
      %v1816 = vmul.f32 %v1800, %v1809
      %v1817 = vmul.f32 %v1791, %v1813
      %v1818 = vmul.f32 %v1801, %v1809
      %v1819 = vmul.f32 %v1792, %v1813
      %v1820 = vmul.f32 %v1802, %v1809
      %v1821 = vmul.f32 %v1793, %v1813
      %v1822 = vpack.c.bf16 %v1818, %v1816
      %v1823 = vpack.c.bf16 %v1819, %v1817
      %v1824 = vpack.c.bf16 %v1820, %v1820
      %v1825 = vpack.c.bf16 %v1821, %v1821
      %s1826 = scalar_lea.vmem %s5, 60
      %v1827 = vld [vmem:[%s1826] sm:$0xf]
      %v1828 = vld [vmem:[%s1826 + $0x4] sm:$0xf]
      %v1829 = vld [vmem:[%s1826 + $0x8] sm:$0xf]
      %v1830 = vld [vmem:[%s1826 + $0xc] sm:$0xf]
      %v1831 = vld [vmem:[%s1826 + $0x10] sm:$0x3]
      %v1837 = vunpack.c.l.b16 %v1827
      %v1838 = vunpack.c.l.b16 %v1828
      %v1839 = vunpack.c.l.b16 %v1829
      %v1840 = vunpack.c.l.b16 %v1830
      %v1841 = vunpack.c.l.b16 %v1831
      %v1842 = vpack.c.b16 %v1838, %v1837
      %v1843 = vpack.c.b16 %v1840, %v1839
      %v1844 = vpack.c.b16 %v1841, %v1841
      %v1846 = vsel %vm1455, %v1842, 0
      %v1849 = vsel %vm1455, %v1843, 0
      %v1852 = vsel %vm1455, %v1844, 0
      %v1855 = vsel %vm1314, %v1824, 0
      %v1858 = vsel %vm1314, %v1825, 0
      %1860 = vmatprep.subr.bf16.mxu0 %v1823
      %1861 = vmatpush1.bf16.msra.mxu0 %v1822
      %1862 = vmatprep.subr.bf16.mxu0 %v1858
      %1863 = vmatpush1.bf16.msra.mxu0 %v1855
      %1864 = vmatprep.subr.bf16.mxu0 0
      %1865 = vmatpush1.bf16.msra.mxu0 0
      %1866 = vmatprep.subr.bf16.mxu0 0
      %1867 = vmatpush1.bf16.msra.mxu0 0
      %1868 = vmatprep.subr.bf16.mxu0 0
      %1869 = vmatpush1.bf16.msra.mxu0 0
      %1870 = vmatprep.subr.bf16.mxu0 0
      %1871 = vmatpush1.bf16.msra.mxu0 0
      %1872 = vmatprep.subr.bf16.mxu0 0
      %1873 = vmatpush1.bf16.msra.mxu0 0
      %1874 = vmatprep.subr.bf16.mxu0 0
      %1875 = vmatpush1.bf16.msra.mxu0 0
      %1876 = vmatprep.subr.bf16.mxu0 0
      %1877 = vmatpush1.bf16.msra.mxu0 0
      %1878 = vmatprep.subr.bf16.mxu0 0
      %1879 = vmatpush1.bf16.msra.mxu0 0
      %1880 = vmatprep.subr.bf16.mxu0 0
      %1881 = vmatpush1.bf16.msra.mxu0 0
      %1882 = vmatprep.subr.bf16.mxu0 0
      %1883 = vmatpush1.bf16.msra.mxu0 0
      %1884 = vmatprep.subr.bf16.mxu0 0
      %1885 = vmatpush1.bf16.msra.mxu0 0
      %1886 = vmatprep.subr.bf16.mxu0 0
      %1887 = vmatpush1.bf16.msra.mxu0 0
      %1888 = vmatprep.subr.bf16.mxu0 0
      %1889 = vmatpush1.bf16.msra.mxu0 0
      %1890 = vmatprep.subr.bf16.mxu0 0
      %1891 = vmatpush1.bf16.msra.mxu0 0
      %1892 = vmatprep.mubr.bf16.mxu0 0
      %1893 = vmatmul.mubr.bf16.gmra.mrb[0].mxu0 %v1846
      %v1894 = vpop.f32.mrb[0].mxu0
      %v1895 = vadd.f32 0.0, %v1894
      %v1896 = vpop.f32.mrb[0].mxu0
      %v1897 = vadd.f32 0.0, %v1896
      %v1898 = vpop.f32.mrb[0].mxu0
      %v1899 = vadd.f32 0.0, %v1898
      %v1900 = vpop.f32.mrb[0].mxu0
      %v1901 = vadd.f32 0.0, %v1900
      %1902 = vmatprep.mubr.bf16.mxu0 0
      %1903 = vmatmul.mubr.bf16.gmra.mrb[0].mxu0 %v1849
      %v1904 = vpop.f32.mrb[0].mxu0
      %v1905 = vadd.f32 0.0, %v1904
      %v1906 = vpop.f32.mrb[0].mxu0
      %v1907 = vadd.f32 0.0, %v1906
      %v1908 = vpop.f32.mrb[0].mxu0
      %v1909 = vadd.f32 0.0, %v1908
      %v1910 = vpop.f32.mrb[0].mxu0
      %v1911 = vadd.f32 0.0, %v1910
      %1912 = vmatprep.mubr.bf16.mxu0 0
      %1913 = vmatmul.mubr.bf16.gmra.mrb[0].mxu0 %v1852
      %v1914 = vpop.f32.mrb[0].mxu0
      %v1915 = vadd.f32 0.0, %v1914
      %v1916 = vpop.f32.mrb[0].mxu0
      %v1917 = vadd.f32 0.0, %v1916
      %v1918 = vpop.f32.mrb[0].mxu0
      %v1919 = vpop.f32.mrb[0].mxu0
      %1920 = vdwg.mxu0
      %v1921 = vadd.f32 %v1766, %v1895
      %v1922 = vadd.f32 %v1767, %v1897
      %v1923 = vadd.f32 %v1768, %v1899
      %v1924 = vadd.f32 %v1769, %v1901
      %v1925 = vadd.f32 %v1770, %v1905
      %v1926 = vadd.f32 %v1771, %v1907
      %v1927 = vadd.f32 %v1772, %v1909
      %v1928 = vadd.f32 %v1773, %v1911
      %v1929 = vadd.f32 %v1774, %v1915
      %v1930 = vadd.f32 %v1775, %v1917
      %s1931 = scalar_lea.vmem %s7, 26
      %v1932 = vld [vmem:[%s1931] sm:$0x3]
      %v1934 = vlaneseq
      %v1935 = vshrl.u32 %v1934, 7
      %v1936 = vsub.s32 0, %v1935
      %v1937 = vrot.slane %v1932, %v1936
      %v1938 = vlaneseq
      %v1939 = vshrl.u32 %v1938, 7
      %v1940 = vsub.s32 1, %v1939
      %v1941 = vrot.slane %v1932, %v1940
      %v1944 = vmul.f32 %v1306, %v1937
      %v1945 = vmul.f32 %v1307, %v1941
      %v1946 = vmul.f32 %v1325, %v1937
      %v1947 = vmul.f32 %v1326, %v1941
      %v1948 = vmul.f32 %v1318, %v1937
      %v1949 = vmul.f32 %v1320, %v1941
      %v1950 = vpack.c.bf16 %v1946, %v1944
      %v1951 = vpack.c.bf16 %v1947, %v1945
      %v1952 = vpack.c.bf16 %v1948, %v1948
      %v1953 = vpack.c.bf16 %v1949, %v1949
      %s1954 = scalar_lea.vmem %s5, 80
      %v1955 = vld [vmem:[%s1954] sm:$0xf]
      %v1956 = vld [vmem:[%s1954 + $0x4] sm:$0xf]
      %v1957 = vld [vmem:[%s1954 + $0x8] sm:$0xf]
      %v1958 = vld [vmem:[%s1954 + $0xc] sm:$0xf]
      %v1959 = vld [vmem:[%s1954 + $0x10] sm:$0x3]
      %v1965 = vunpack.c.l.b16 %v1955
      %v1966 = vunpack.c.l.b16 %v1956
      %v1967 = vunpack.c.l.b16 %v1957
      %v1968 = vunpack.c.l.b16 %v1958
      %v1969 = vunpack.c.l.b16 %v1959
      %v1970 = vpack.c.b16 %v1966, %v1965
      %v1971 = vpack.c.b16 %v1968, %v1967
      %v1972 = vpack.c.b16 %v1969, %v1969
      %v1974 = vsel %vm1455, %v1970, 0
      %v1977 = vsel %vm1455, %v1971, 0
      %v1980 = vsel %vm1455, %v1972, 0
      %v1983 = vsel %vm1314, %v1952, 0
      %v1986 = vsel %vm1314, %v1953, 0
      %1988 = vmatprep.subr.bf16.mxu0 %v1951
      %1989 = vmatpush1.bf16.msra.mxu0 %v1950
      %1990 = vmatprep.subr.bf16.mxu0 %v1986
      %1991 = vmatpush1.bf16.msra.mxu0 %v1983
      %1992 = vmatprep.subr.bf16.mxu0 0
      %1993 = vmatpush1.bf16.msra.mxu0 0
      %1994 = vmatprep.subr.bf16.mxu0 0
      %1995 = vmatpush1.bf16.msra.mxu0 0
      %1996 = vmatprep.subr.bf16.mxu0 0
      %1997 = vmatpush1.bf16.msra.mxu0 0
      %1998 = vmatprep.subr.bf16.mxu0 0
      %1999 = vmatpush1.bf16.msra.mxu0 0
      %2000 = vmatprep.subr.bf16.mxu0 0
      %2001 = vmatpush1.bf16.msra.mxu0 0
      %2002 = vmatprep.subr.bf16.mxu0 0
      %2003 = vmatpush1.bf16.msra.mxu0 0
      %2004 = vmatprep.subr.bf16.mxu0 0
      %2005 = vmatpush1.bf16.msra.mxu0 0
      %2006 = vmatprep.subr.bf16.mxu0 0
      %2007 = vmatpush1.bf16.msra.mxu0 0
      %2008 = vmatprep.subr.bf16.mxu0 0
      %2009 = vmatpush1.bf16.msra.mxu0 0
      %2010 = vmatprep.subr.bf16.mxu0 0
      %2011 = vmatpush1.bf16.msra.mxu0 0
      %2012 = vmatprep.subr.bf16.mxu0 0
      %2013 = vmatpush1.bf16.msra.mxu0 0
      %2014 = vmatprep.subr.bf16.mxu0 0
      %2015 = vmatpush1.bf16.msra.mxu0 0
      %2016 = vmatprep.subr.bf16.mxu0 0
      %2017 = vmatpush1.bf16.msra.mxu0 0
      %2018 = vmatprep.subr.bf16.mxu0 0
      %2019 = vmatpush1.bf16.msra.mxu0 0
      %2020 = vmatprep.mubr.bf16.mxu0 0
      %2021 = vmatmul.mubr.bf16.gmra.mrb[0].mxu0 %v1974
      %v2022 = vpop.f32.mrb[0].mxu0
      %v2023 = vadd.f32 0.0, %v2022
      %v2024 = vpop.f32.mrb[0].mxu0
      %v2025 = vadd.f32 0.0, %v2024
      %v2026 = vpop.f32.mrb[0].mxu0
      %v2027 = vadd.f32 0.0, %v2026
      %v2028 = vpop.f32.mrb[0].mxu0
      %v2029 = vadd.f32 0.0, %v2028
      %2030 = vmatprep.mubr.bf16.mxu0 0
      %2031 = vmatmul.mubr.bf16.gmra.mrb[0].mxu0 %v1977
      %v2032 = vpop.f32.mrb[0].mxu0
      %v2033 = vadd.f32 0.0, %v2032
      %v2034 = vpop.f32.mrb[0].mxu0
      %v2035 = vadd.f32 0.0, %v2034
      %v2036 = vpop.f32.mrb[0].mxu0
      %v2037 = vadd.f32 0.0, %v2036
      %v2038 = vpop.f32.mrb[0].mxu0
      %v2039 = vadd.f32 0.0, %v2038
      %2040 = vmatprep.mubr.bf16.mxu0 0
      %2041 = vmatmul.mubr.bf16.gmra.mrb[0].mxu0 %v1980
      %v2042 = vpop.f32.mrb[0].mxu0
      %v2043 = vadd.f32 0.0, %v2042
      %v2044 = vpop.f32.mrb[0].mxu0
      %v2045 = vadd.f32 0.0, %v2044
      %v2046 = vpop.f32.mrb[0].mxu0
      %v2047 = vpop.f32.mrb[0].mxu0
      %2048 = vdwg.mxu0
      %v2049 = vadd.f32 %v1921, %v2023
      %v2050 = vadd.f32 %v1922, %v2025
      %v2051 = vadd.f32 %v1923, %v2027
      %v2052 = vadd.f32 %v1924, %v2029
      %v2053 = vadd.f32 %v1925, %v2033
      %v2054 = vadd.f32 %v1926, %v2035
      %v2055 = vadd.f32 %v1927, %v2037
      %v2056 = vadd.f32 %v1928, %v2039
      %v2057 = vadd.f32 %v1929, %v2043
      %v2058 = vadd.f32 %v1930, %v2045
      %2059 = vrot.lane.b32.xlu0 %v1306, 127
      %v2060 = vpop.permute.xlu0 %2059
      %2061 = vrot.lane.b32.xlu0 %v1307, 127
      %v2062 = vpop.permute.xlu0 %2061
      %2063 = vrot.lane.b32.xlu0 %v1325, 127
      %v2064 = vpop.permute.xlu0 %2063
      %2065 = vrot.lane.b32.xlu0 %v1326, 127
      %v2066 = vpop.permute.xlu0 %2065
      %2067 = vrot.lane.b32.xlu0 %v1318, 127
      %v2068 = vpop.permute.xlu0 %2067
      %2069 = vrot.lane.b32.xlu0 %v1320, 127
      %v2070 = vpop.permute.xlu0 %2069
      %v2071 = vsel %vm906, %v2060, %v2062
      %v2072 = vsel %vm906, %v2064, %v2066
      %v2073 = vsel %vm906, %v2068, %v2070
      %v2083 = vsel %vm906, %v2062, %v2060
      %v2084 = vsel %vm906, %v2066, %v2064
      %v2085 = vsel %vm906, %v2070, %v2068
      %s2086 = scalar_lea.vmem %s7, 28
      %v2087 = vld [vmem:[%s2086] sm:$0x3]
      %v2089 = vlaneseq
      %v2090 = vshrl.u32 %v2089, 7
      %v2091 = vsub.s32 0, %v2090
      %v2092 = vrot.slane %v2087, %v2091
      %v2093 = vlaneseq
      %v2094 = vshrl.u32 %v2093, 7
      %v2095 = vsub.s32 1, %v2094
      %v2096 = vrot.slane %v2087, %v2095
      %v2099 = vmul.f32 %v2071, %v2092
      %v2100 = vmul.f32 %v2083, %v2096
      %v2101 = vmul.f32 %v2072, %v2092
      %v2102 = vmul.f32 %v2084, %v2096
      %v2103 = vmul.f32 %v2073, %v2092
      %v2104 = vmul.f32 %v2085, %v2096
      %v2105 = vpack.c.bf16 %v2101, %v2099
      %v2106 = vpack.c.bf16 %v2102, %v2100
      %v2107 = vpack.c.bf16 %v2103, %v2103
      %v2108 = vpack.c.bf16 %v2104, %v2104
      %s2109 = scalar_lea.vmem %s5, 100
      %v2110 = vld [vmem:[%s2109] sm:$0xf]
      %v2111 = vld [vmem:[%s2109 + $0x4] sm:$0xf]
      %v2112 = vld [vmem:[%s2109 + $0x8] sm:$0xf]
      %v2113 = vld [vmem:[%s2109 + $0xc] sm:$0xf]
      %v2114 = vld [vmem:[%s2109 + $0x10] sm:$0x3]
      %v2120 = vunpack.c.l.b16 %v2110
      %v2121 = vunpack.c.l.b16 %v2111
      %v2122 = vunpack.c.l.b16 %v2112
      %v2123 = vunpack.c.l.b16 %v2113
      %v2124 = vunpack.c.l.b16 %v2114
      %v2125 = vpack.c.b16 %v2121, %v2120
      %v2126 = vpack.c.b16 %v2123, %v2122
      %v2127 = vpack.c.b16 %v2124, %v2124
      %v2129 = vsel %vm1455, %v2125, 0
      %v2132 = vsel %vm1455, %v2126, 0
      %v2135 = vsel %vm1455, %v2127, 0
      %v2138 = vsel %vm1314, %v2107, 0
      %v2141 = vsel %vm1314, %v2108, 0
      %2143 = vmatprep.subr.bf16.mxu0 %v2106
      %2144 = vmatpush1.bf16.msra.mxu0 %v2105
      %2145 = vmatprep.subr.bf16.mxu0 %v2141
      %2146 = vmatpush1.bf16.msra.mxu0 %v2138
      %2147 = vmatprep.subr.bf16.mxu0 0
      %2148 = vmatpush1.bf16.msra.mxu0 0
      %2149 = vmatprep.subr.bf16.mxu0 0
      %2150 = vmatpush1.bf16.msra.mxu0 0
      %2151 = vmatprep.subr.bf16.mxu0 0
      %2152 = vmatpush1.bf16.msra.mxu0 0
      %2153 = vmatprep.subr.bf16.mxu0 0
      %2154 = vmatpush1.bf16.msra.mxu0 0
      %2155 = vmatprep.subr.bf16.mxu0 0
      %2156 = vmatpush1.bf16.msra.mxu0 0
      %2157 = vmatprep.subr.bf16.mxu0 0
      %2158 = vmatpush1.bf16.msra.mxu0 0
      %2159 = vmatprep.subr.bf16.mxu0 0
      %2160 = vmatpush1.bf16.msra.mxu0 0
      %2161 = vmatprep.subr.bf16.mxu0 0
      %2162 = vmatpush1.bf16.msra.mxu0 0
      %2163 = vmatprep.subr.bf16.mxu0 0
      %2164 = vmatpush1.bf16.msra.mxu0 0
      %2165 = vmatprep.subr.bf16.mxu0 0
      %2166 = vmatpush1.bf16.msra.mxu0 0
      %2167 = vmatprep.subr.bf16.mxu0 0
      %2168 = vmatpush1.bf16.msra.mxu0 0
      %2169 = vmatprep.subr.bf16.mxu0 0
      %2170 = vmatpush1.bf16.msra.mxu0 0
      %2171 = vmatprep.subr.bf16.mxu0 0
      %2172 = vmatpush1.bf16.msra.mxu0 0
      %2173 = vmatprep.subr.bf16.mxu0 0
      %2174 = vmatpush1.bf16.msra.mxu0 0
      %2175 = vmatprep.mubr.bf16.mxu0 0
      %2176 = vmatmul.mubr.bf16.gmra.mrb[0].mxu0 %v2129
      %v2177 = vpop.f32.mrb[0].mxu0
      %v2178 = vadd.f32 0.0, %v2177
      %v2179 = vpop.f32.mrb[0].mxu0
      %v2180 = vadd.f32 0.0, %v2179
      %v2181 = vpop.f32.mrb[0].mxu0
      %v2182 = vadd.f32 0.0, %v2181
      %v2183 = vpop.f32.mrb[0].mxu0
      %v2184 = vadd.f32 0.0, %v2183
      %2185 = vmatprep.mubr.bf16.mxu0 0
      %2186 = vmatmul.mubr.bf16.gmra.mrb[0].mxu0 %v2132
      %v2187 = vpop.f32.mrb[0].mxu0
      %v2188 = vadd.f32 0.0, %v2187
      %v2189 = vpop.f32.mrb[0].mxu0
      %v2190 = vadd.f32 0.0, %v2189
      %v2191 = vpop.f32.mrb[0].mxu0
      %v2192 = vadd.f32 0.0, %v2191
      %v2193 = vpop.f32.mrb[0].mxu0
      %v2194 = vadd.f32 0.0, %v2193
      %2195 = vmatprep.mubr.bf16.mxu0 0
      %2196 = vmatmul.mubr.bf16.gmra.mrb[0].mxu0 %v2135
      %v2197 = vpop.f32.mrb[0].mxu0
      %v2198 = vadd.f32 0.0, %v2197
      %v2199 = vpop.f32.mrb[0].mxu0
      %v2200 = vadd.f32 0.0, %v2199
      %v2201 = vpop.f32.mrb[0].mxu0
      %v2202 = vpop.f32.mrb[0].mxu0
      %2203 = vdwg.mxu0
      %v2204 = vadd.f32 %v2049, %v2178
      %v2205 = vadd.f32 %v2050, %v2180
      %v2206 = vadd.f32 %v2051, %v2182
      %v2207 = vadd.f32 %v2052, %v2184
      %v2208 = vadd.f32 %v2053, %v2188
      %v2209 = vadd.f32 %v2054, %v2190
      %v2210 = vadd.f32 %v2055, %v2192
      %v2211 = vadd.f32 %v2056, %v2194
      %v2212 = vadd.f32 %v2057, %v2198
      %v2213 = vadd.f32 %v2058, %v2200
      %2214 = vrot.lane.b32.xlu0 %v1306, 113
      %v2215 = vpop.permute.xlu0 %2214
      %2216 = vrot.lane.b32.xlu0 %v1307, 113
      %v2217 = vpop.permute.xlu0 %2216
      %2218 = vrot.lane.b32.xlu0 %v1325, 113
      %v2219 = vpop.permute.xlu0 %2218
      %2220 = vrot.lane.b32.xlu0 %v1326, 113
      %v2221 = vpop.permute.xlu0 %2220
      %2222 = vrot.lane.b32.xlu0 %v1318, 113
      %v2223 = vpop.permute.xlu0 %2222
      %2224 = vrot.lane.b32.xlu0 %v1320, 113
      %v2225 = vpop.permute.xlu0 %2224
      %v2226 = vsel %vm1006, %v2215, %v2217
      %v2227 = vsel %vm1006, %v2219, %v2221
      %v2228 = vsel %vm1006, %v2223, %v2225
      %v2238 = vsel %vm1006, %v2217, %v2215
      %v2239 = vsel %vm1006, %v2221, %v2219
      %v2240 = vsel %vm1006, %v2225, %v2223
      %s2241 = scalar_lea.vmem %s7, 30
      %v2242 = vld [vmem:[%s2241] sm:$0x3]
      %v2244 = vlaneseq
      %v2245 = vshrl.u32 %v2244, 7
      %v2246 = vsub.s32 0, %v2245
      %v2247 = vrot.slane %v2242, %v2246
      %v2248 = vlaneseq
      %v2249 = vshrl.u32 %v2248, 7
      %v2250 = vsub.s32 1, %v2249
      %v2251 = vrot.slane %v2242, %v2250
      %v2254 = vmul.f32 %v2226, %v2247
      %v2255 = vmul.f32 %v2238, %v2251
      %v2256 = vmul.f32 %v2227, %v2247
      %v2257 = vmul.f32 %v2239, %v2251
      %v2258 = vmul.f32 %v2228, %v2247
      %v2259 = vmul.f32 %v2240, %v2251
      %v2260 = vpack.c.bf16 %v2256, %v2254
      %v2261 = vpack.c.bf16 %v2257, %v2255
      %v2262 = vpack.c.bf16 %v2258, %v2258
      %v2263 = vpack.c.bf16 %v2259, %v2259
      %s2264 = scalar_lea.vmem %s5, 120
      %v2265 = vld [vmem:[%s2264] sm:$0xf]
      %v2266 = vld [vmem:[%s2264 + $0x4] sm:$0xf]
      %v2267 = vld [vmem:[%s2264 + $0x8] sm:$0xf]
      %v2268 = vld [vmem:[%s2264 + $0xc] sm:$0xf]
      %v2269 = vld [vmem:[%s2264 + $0x10] sm:$0x3]
      %v2275 = vunpack.c.l.b16 %v2265
      %v2276 = vunpack.c.l.b16 %v2266
      %v2277 = vunpack.c.l.b16 %v2267
      %v2278 = vunpack.c.l.b16 %v2268
      %v2279 = vunpack.c.l.b16 %v2269
      %v2280 = vpack.c.b16 %v2276, %v2275
      %v2281 = vpack.c.b16 %v2278, %v2277
      %v2282 = vpack.c.b16 %v2279, %v2279
      %v2284 = vsel %vm1455, %v2280, 0
      %v2287 = vsel %vm1455, %v2281, 0
      %v2290 = vsel %vm1455, %v2282, 0
      %v2293 = vsel %vm1314, %v2262, 0
      %v2296 = vsel %vm1314, %v2263, 0
      %2298 = vmatprep.subr.bf16.mxu0 %v2261
      %2299 = vmatpush1.bf16.msra.mxu0 %v2260
      %2300 = vmatprep.subr.bf16.mxu0 %v2296
      %2301 = vmatpush1.bf16.msra.mxu0 %v2293
      %2302 = vmatprep.subr.bf16.mxu0 0
      %2303 = vmatpush1.bf16.msra.mxu0 0
      %2304 = vmatprep.subr.bf16.mxu0 0
      %2305 = vmatpush1.bf16.msra.mxu0 0
      %2306 = vmatprep.subr.bf16.mxu0 0
      %2307 = vmatpush1.bf16.msra.mxu0 0
      %2308 = vmatprep.subr.bf16.mxu0 0
      %2309 = vmatpush1.bf16.msra.mxu0 0
      %2310 = vmatprep.subr.bf16.mxu0 0
      %2311 = vmatpush1.bf16.msra.mxu0 0
      %2312 = vmatprep.subr.bf16.mxu0 0
      %2313 = vmatpush1.bf16.msra.mxu0 0
      %2314 = vmatprep.subr.bf16.mxu0 0
      %2315 = vmatpush1.bf16.msra.mxu0 0
      %2316 = vmatprep.subr.bf16.mxu0 0
      %2317 = vmatpush1.bf16.msra.mxu0 0
      %2318 = vmatprep.subr.bf16.mxu0 0
      %2319 = vmatpush1.bf16.msra.mxu0 0
      %2320 = vmatprep.subr.bf16.mxu0 0
      %2321 = vmatpush1.bf16.msra.mxu0 0
      %2322 = vmatprep.subr.bf16.mxu0 0
      %2323 = vmatpush1.bf16.msra.mxu0 0
      %2324 = vmatprep.subr.bf16.mxu0 0
      %2325 = vmatpush1.bf16.msra.mxu0 0
      %2326 = vmatprep.subr.bf16.mxu0 0
      %2327 = vmatpush1.bf16.msra.mxu0 0
      %2328 = vmatprep.subr.bf16.mxu0 0
      %2329 = vmatpush1.bf16.msra.mxu0 0
      %2330 = vmatprep.mubr.bf16.mxu0 0
      %2331 = vmatmul.mubr.bf16.gmra.mrb[0].mxu0 %v2284
      %v2332 = vpop.f32.mrb[0].mxu0
      %v2333 = vadd.f32 0.0, %v2332
      %v2334 = vpop.f32.mrb[0].mxu0
      %v2335 = vadd.f32 0.0, %v2334
      %v2336 = vpop.f32.mrb[0].mxu0
      %v2337 = vadd.f32 0.0, %v2336
      %v2338 = vpop.f32.mrb[0].mxu0
      %v2339 = vadd.f32 0.0, %v2338
      %2340 = vmatprep.mubr.bf16.mxu0 0
      %2341 = vmatmul.mubr.bf16.gmra.mrb[0].mxu0 %v2287
      %v2342 = vpop.f32.mrb[0].mxu0
      %v2343 = vadd.f32 0.0, %v2342
      %v2344 = vpop.f32.mrb[0].mxu0
      %v2345 = vadd.f32 0.0, %v2344
      %v2346 = vpop.f32.mrb[0].mxu0
      %v2347 = vadd.f32 0.0, %v2346
      %v2348 = vpop.f32.mrb[0].mxu0
      %v2349 = vadd.f32 0.0, %v2348
      %2350 = vmatprep.mubr.bf16.mxu0 0
      %2351 = vmatmul.mubr.bf16.gmra.mrb[0].mxu0 %v2290
      %v2352 = vpop.f32.mrb[0].mxu0
      %v2353 = vadd.f32 0.0, %v2352
      %v2354 = vpop.f32.mrb[0].mxu0
      %v2355 = vadd.f32 0.0, %v2354
      %v2356 = vpop.f32.mrb[0].mxu0
      %v2357 = vpop.f32.mrb[0].mxu0
      %2358 = vdwg.mxu0
      %v2359 = vadd.f32 %v2204, %v2333
      %v2360 = vadd.f32 %v2205, %v2335
      %v2361 = vadd.f32 %v2206, %v2337
      %v2362 = vadd.f32 %v2207, %v2339
      %v2363 = vadd.f32 %v2208, %v2343
      %v2364 = vadd.f32 %v2209, %v2345
      %v2365 = vadd.f32 %v2210, %v2347
      %v2366 = vadd.f32 %v2211, %v2349
      %v2367 = vadd.f32 %v2212, %v2353
      %v2368 = vadd.f32 %v2213, %v2355
      %2369 = vrot.lane.b32.xlu0 %v1306, 112
      %v2370 = vpop.permute.xlu0 %2369
      %2371 = vrot.lane.b32.xlu0 %v1307, 112
      %v2372 = vpop.permute.xlu0 %2371
      %2373 = vrot.lane.b32.xlu0 %v1325, 112
      %v2374 = vpop.permute.xlu0 %2373
      %2375 = vrot.lane.b32.xlu0 %v1326, 112
      %v2376 = vpop.permute.xlu0 %2375
      %2377 = vrot.lane.b32.xlu0 %v1318, 112
      %v2378 = vpop.permute.xlu0 %2377
      %2379 = vrot.lane.b32.xlu0 %v1320, 112
      %v2380 = vpop.permute.xlu0 %2379
      %v2381 = vsel %vm1106, %v2370, %v2372
      %v2382 = vsel %vm1106, %v2374, %v2376
      %v2383 = vsel %vm1106, %v2378, %v2380
      %v2393 = vsel %vm1106, %v2372, %v2370
      %v2394 = vsel %vm1106, %v2376, %v2374
      %v2395 = vsel %vm1106, %v2380, %v2378
      %s2396 = scalar_lea.vmem %s7, 32
      %v2397 = vld [vmem:[%s2396] sm:$0x3]
      %v2399 = vlaneseq
      %v2400 = vshrl.u32 %v2399, 7
      %v2401 = vsub.s32 0, %v2400
      %v2402 = vrot.slane %v2397, %v2401
      %v2403 = vlaneseq
      %v2404 = vshrl.u32 %v2403, 7
      %v2405 = vsub.s32 1, %v2404
      %v2406 = vrot.slane %v2397, %v2405
      %v2409 = vmul.f32 %v2381, %v2402
      %v2410 = vmul.f32 %v2393, %v2406
      %v2411 = vmul.f32 %v2382, %v2402
      %v2412 = vmul.f32 %v2394, %v2406
      %v2413 = vmul.f32 %v2383, %v2402
      %v2414 = vmul.f32 %v2395, %v2406
      %v2415 = vpack.c.bf16 %v2411, %v2409
      %v2416 = vpack.c.bf16 %v2412, %v2410
      %v2417 = vpack.c.bf16 %v2413, %v2413
      %v2418 = vpack.c.bf16 %v2414, %v2414
      %s2419 = scalar_lea.vmem %s5, 140
      %v2420 = vld [vmem:[%s2419] sm:$0xf]
      %v2421 = vld [vmem:[%s2419 + $0x4] sm:$0xf]
      %v2422 = vld [vmem:[%s2419 + $0x8] sm:$0xf]
      %v2423 = vld [vmem:[%s2419 + $0xc] sm:$0xf]
      %v2424 = vld [vmem:[%s2419 + $0x10] sm:$0x3]
      %v2430 = vunpack.c.l.b16 %v2420
      %v2431 = vunpack.c.l.b16 %v2421
      %v2432 = vunpack.c.l.b16 %v2422
      %v2433 = vunpack.c.l.b16 %v2423
      %v2434 = vunpack.c.l.b16 %v2424
      %v2435 = vpack.c.b16 %v2431, %v2430
      %v2436 = vpack.c.b16 %v2433, %v2432
      %v2437 = vpack.c.b16 %v2434, %v2434
      %v2439 = vsel %vm1455, %v2435, 0
      %v2442 = vsel %vm1455, %v2436, 0
      %v2445 = vsel %vm1455, %v2437, 0
      %v2448 = vsel %vm1314, %v2417, 0
      %v2451 = vsel %vm1314, %v2418, 0
      %2453 = vmatprep.subr.bf16.mxu0 %v2416
      %2454 = vmatpush1.bf16.msra.mxu0 %v2415
      %2455 = vmatprep.subr.bf16.mxu0 %v2451
      %2456 = vmatpush1.bf16.msra.mxu0 %v2448
      %2457 = vmatprep.subr.bf16.mxu0 0
      %2458 = vmatpush1.bf16.msra.mxu0 0
      %2459 = vmatprep.subr.bf16.mxu0 0
      %2460 = vmatpush1.bf16.msra.mxu0 0
      %2461 = vmatprep.subr.bf16.mxu0 0
      %2462 = vmatpush1.bf16.msra.mxu0 0
      %2463 = vmatprep.subr.bf16.mxu0 0
      %2464 = vmatpush1.bf16.msra.mxu0 0
      %2465 = vmatprep.subr.bf16.mxu0 0
      %2466 = vmatpush1.bf16.msra.mxu0 0
      %2467 = vmatprep.subr.bf16.mxu0 0
      %2468 = vmatpush1.bf16.msra.mxu0 0
      %2469 = vmatprep.subr.bf16.mxu0 0
      %2470 = vmatpush1.bf16.msra.mxu0 0
      %2471 = vmatprep.subr.bf16.mxu0 0
      %2472 = vmatpush1.bf16.msra.mxu0 0
      %2473 = vmatprep.subr.bf16.mxu0 0
      %2474 = vmatpush1.bf16.msra.mxu0 0
      %2475 = vmatprep.subr.bf16.mxu0 0
      %2476 = vmatpush1.bf16.msra.mxu0 0
      %2477 = vmatprep.subr.bf16.mxu0 0
      %2478 = vmatpush1.bf16.msra.mxu0 0
      %2479 = vmatprep.subr.bf16.mxu0 0
      %2480 = vmatpush1.bf16.msra.mxu0 0
      %2481 = vmatprep.subr.bf16.mxu0 0
      %2482 = vmatpush1.bf16.msra.mxu0 0
      %2483 = vmatprep.subr.bf16.mxu0 0
      %2484 = vmatpush1.bf16.msra.mxu0 0
      %2485 = vmatprep.mubr.bf16.mxu0 0
      %2486 = vmatmul.mubr.bf16.gmra.mrb[0].mxu0 %v2439
      %v2487 = vpop.f32.mrb[0].mxu0
      %v2488 = vadd.f32 0.0, %v2487
      %v2489 = vpop.f32.mrb[0].mxu0
      %v2490 = vadd.f32 0.0, %v2489
      %v2491 = vpop.f32.mrb[0].mxu0
      %v2492 = vadd.f32 0.0, %v2491
      %v2493 = vpop.f32.mrb[0].mxu0
      %v2494 = vadd.f32 0.0, %v2493
      %2495 = vmatprep.mubr.bf16.mxu0 0
      %2496 = vmatmul.mubr.bf16.gmra.mrb[0].mxu0 %v2442
      %v2497 = vpop.f32.mrb[0].mxu0
      %v2498 = vadd.f32 0.0, %v2497
      %v2499 = vpop.f32.mrb[0].mxu0
      %v2500 = vadd.f32 0.0, %v2499
      %v2501 = vpop.f32.mrb[0].mxu0
      %v2502 = vadd.f32 0.0, %v2501
      %v2503 = vpop.f32.mrb[0].mxu0
      %v2504 = vadd.f32 0.0, %v2503
      %2505 = vmatprep.mubr.bf16.mxu0 0
      %2506 = vmatmul.mubr.bf16.gmra.mrb[0].mxu0 %v2445
      %v2507 = vpop.f32.mrb[0].mxu0
      %v2508 = vadd.f32 0.0, %v2507
      %v2509 = vpop.f32.mrb[0].mxu0
      %v2510 = vadd.f32 0.0, %v2509
      %v2511 = vpop.f32.mrb[0].mxu0
      %v2512 = vpop.f32.mrb[0].mxu0
      %2513 = vdwg.mxu0
      %v2514 = vadd.f32 %v2359, %v2488
      %v2515 = vadd.f32 %v2360, %v2490
      %v2516 = vadd.f32 %v2361, %v2492
      %v2517 = vadd.f32 %v2362, %v2494
      %v2518 = vadd.f32 %v2363, %v2498
      %v2519 = vadd.f32 %v2364, %v2500
      %v2520 = vadd.f32 %v2365, %v2502
      %v2521 = vadd.f32 %v2366, %v2504
      %v2522 = vadd.f32 %v2367, %v2508
      %v2523 = vadd.f32 %v2368, %v2510
      %2524 = vrot.lane.b32.xlu0 %v1306, 111
      %v2525 = vpop.permute.xlu0 %2524
      %2526 = vrot.lane.b32.xlu0 %v1307, 111
      %v2527 = vpop.permute.xlu0 %2526
      %2528 = vrot.lane.b32.xlu0 %v1325, 111
      %v2529 = vpop.permute.xlu0 %2528
      %2530 = vrot.lane.b32.xlu0 %v1326, 111
      %v2531 = vpop.permute.xlu0 %2530
      %2532 = vrot.lane.b32.xlu0 %v1318, 111
      %v2533 = vpop.permute.xlu0 %2532
      %2534 = vrot.lane.b32.xlu0 %v1320, 111
      %v2535 = vpop.permute.xlu0 %2534
      %v2536 = vsel %vm1206, %v2525, %v2527
      %v2537 = vsel %vm1206, %v2529, %v2531
      %v2538 = vsel %vm1206, %v2533, %v2535
      %v2548 = vsel %vm1206, %v2527, %v2525
      %v2549 = vsel %vm1206, %v2531, %v2529
      %v2550 = vsel %vm1206, %v2535, %v2533
      %s2551 = scalar_lea.vmem %s7, 34
      %v2552 = vld [vmem:[%s2551] sm:$0x3]
      %v2554 = vlaneseq
      %v2555 = vshrl.u32 %v2554, 7
      %v2556 = vsub.s32 0, %v2555
      %v2557 = vrot.slane %v2552, %v2556
      %v2558 = vlaneseq
      %v2559 = vshrl.u32 %v2558, 7
      %v2560 = vsub.s32 1, %v2559
      %v2561 = vrot.slane %v2552, %v2560
      %v2564 = vmul.f32 %v2536, %v2557
      %v2565 = vmul.f32 %v2548, %v2561
      %v2566 = vmul.f32 %v2537, %v2557
      %v2567 = vmul.f32 %v2549, %v2561
      %v2568 = vmul.f32 %v2538, %v2557
      %v2569 = vmul.f32 %v2550, %v2561
      %v2570 = vpack.c.bf16 %v2566, %v2564
      %v2571 = vpack.c.bf16 %v2567, %v2565
      %v2572 = vpack.c.bf16 %v2568, %v2568
      %v2573 = vpack.c.bf16 %v2569, %v2569
      %s2574 = scalar_lea.vmem %s5, 160
      %v2575 = vld [vmem:[%s2574] sm:$0xf]
      %v2576 = vld [vmem:[%s2574 + $0x4] sm:$0xf]
      %v2577 = vld [vmem:[%s2574 + $0x8] sm:$0xf]
      %v2578 = vld [vmem:[%s2574 + $0xc] sm:$0xf]
      %v2579 = vld [vmem:[%s2574 + $0x10] sm:$0x3]
      %v2585 = vunpack.c.l.b16 %v2575
      %v2586 = vunpack.c.l.b16 %v2576
      %v2587 = vunpack.c.l.b16 %v2577
      %v2588 = vunpack.c.l.b16 %v2578
      %v2589 = vunpack.c.l.b16 %v2579
      %v2590 = vpack.c.b16 %v2586, %v2585
      %v2591 = vpack.c.b16 %v2588, %v2587
      %v2592 = vpack.c.b16 %v2589, %v2589
      %v2594 = vsel %vm1455, %v2590, 0
      %v2597 = vsel %vm1455, %v2591, 0
      %v2600 = vsel %vm1455, %v2592, 0
      %v2603 = vsel %vm1314, %v2572, 0
      %v2606 = vsel %vm1314, %v2573, 0
      %2608 = vmatprep.subr.bf16.mxu0 %v2571
      %2609 = vmatpush1.bf16.msra.mxu0 %v2570
      %2610 = vmatprep.subr.bf16.mxu0 %v2606
      %2611 = vmatpush1.bf16.msra.mxu0 %v2603
      %2612 = vmatprep.subr.bf16.mxu0 0
      %2613 = vmatpush1.bf16.msra.mxu0 0
      %2614 = vmatprep.subr.bf16.mxu0 0
      %2615 = vmatpush1.bf16.msra.mxu0 0
      %2616 = vmatprep.subr.bf16.mxu0 0
      %2617 = vmatpush1.bf16.msra.mxu0 0
      %2618 = vmatprep.subr.bf16.mxu0 0
      %2619 = vmatpush1.bf16.msra.mxu0 0
      %2620 = vmatprep.subr.bf16.mxu0 0
      %2621 = vmatpush1.bf16.msra.mxu0 0
      %2622 = vmatprep.subr.bf16.mxu0 0
      %2623 = vmatpush1.bf16.msra.mxu0 0
      %2624 = vmatprep.subr.bf16.mxu0 0
      %2625 = vmatpush1.bf16.msra.mxu0 0
      %2626 = vmatprep.subr.bf16.mxu0 0
      %2627 = vmatpush1.bf16.msra.mxu0 0
      %2628 = vmatprep.subr.bf16.mxu0 0
      %2629 = vmatpush1.bf16.msra.mxu0 0
      %2630 = vmatprep.subr.bf16.mxu0 0
      %2631 = vmatpush1.bf16.msra.mxu0 0
      %2632 = vmatprep.subr.bf16.mxu0 0
      %2633 = vmatpush1.bf16.msra.mxu0 0
      %2634 = vmatprep.subr.bf16.mxu0 0
      %2635 = vmatpush1.bf16.msra.mxu0 0
      %2636 = vmatprep.subr.bf16.mxu0 0
      %2637 = vmatpush1.bf16.msra.mxu0 0
      %2638 = vmatprep.subr.bf16.mxu0 0
      %2639 = vmatpush1.bf16.msra.mxu0 0
      %2640 = vmatprep.mubr.bf16.mxu0 0
      %2641 = vmatmul.mubr.bf16.gmra.mrb[0].mxu0 %v2594
      %v2642 = vpop.f32.mrb[0].mxu0
      %v2643 = vadd.f32 0.0, %v2642
      %v2644 = vpop.f32.mrb[0].mxu0
      %v2645 = vadd.f32 0.0, %v2644
      %v2646 = vpop.f32.mrb[0].mxu0
      %v2647 = vadd.f32 0.0, %v2646
      %v2648 = vpop.f32.mrb[0].mxu0
      %v2649 = vadd.f32 0.0, %v2648
      %2650 = vmatprep.mubr.bf16.mxu0 0
      %2651 = vmatmul.mubr.bf16.gmra.mrb[0].mxu0 %v2597
      %v2652 = vpop.f32.mrb[0].mxu0
      %v2653 = vadd.f32 0.0, %v2652
      %v2654 = vpop.f32.mrb[0].mxu0
      %v2655 = vadd.f32 0.0, %v2654
      %v2656 = vpop.f32.mrb[0].mxu0
      %v2657 = vadd.f32 0.0, %v2656
      %v2658 = vpop.f32.mrb[0].mxu0
      %v2659 = vadd.f32 0.0, %v2658
      %2660 = vmatprep.mubr.bf16.mxu0 0
      %2661 = vmatmul.mubr.bf16.gmra.mrb[0].mxu0 %v2600
      %v2662 = vpop.f32.mrb[0].mxu0
      %v2663 = vadd.f32 0.0, %v2662
      %v2664 = vpop.f32.mrb[0].mxu0
      %v2665 = vadd.f32 0.0, %v2664
      %v2666 = vpop.f32.mrb[0].mxu0
      %v2667 = vpop.f32.mrb[0].mxu0
      %2668 = vdwg.mxu0
      %v2669 = vadd.f32 %v2514, %v2643
      %v2670 = vadd.f32 %v2515, %v2645
      %v2671 = vadd.f32 %v2516, %v2647
      %v2672 = vadd.f32 %v2517, %v2649
      %v2673 = vadd.f32 %v2518, %v2653
      %v2674 = vadd.f32 %v2519, %v2655
      %v2675 = vadd.f32 %v2520, %v2657
      %v2676 = vadd.f32 %v2521, %v2659
      %v2677 = vadd.f32 %v2522, %v2663
      %v2678 = vadd.f32 %v2523, %v2665
      %v2679 = vld [vmem:[%s6] sm:$0xff]
      %v2680 = vld [vmem:[%s6 + $0x8] sm:$0xff]
      %v2681 = vld [vmem:[%s6 + $0x10] sm:$0xff]
      %v2682 = vld [vmem:[%s6 + $0x18] sm:$0xff]
      %v2683 = vld [vmem:[%s6 + $0x20] sm:$0xf]
      %2685 = vset.pattern.permute.xlu0 0
      %2686 = vperm.xlu0 %2685, %v2679
      %v2687 = vpop.permute.xlu0 %2686
      %2690 = vset.pattern.permute.xlu0 0
      %2691 = vperm.xlu0 %2690, %v2680
      %v2692 = vpop.permute.xlu0 %2691
      %2695 = vset.pattern.permute.xlu0 0
      %2696 = vperm.xlu0 %2695, %v2681
      %v2697 = vpop.permute.xlu0 %2696
      %2700 = vset.pattern.permute.xlu0 0
      %2701 = vperm.xlu0 %2700, %v2682
      %v2702 = vpop.permute.xlu0 %2701
      %2705 = vset.pattern.permute.xlu0 0
      %2706 = vperm.xlu0 %2705, %v2683
      %v2707 = vpop.permute.xlu0 %2706
      %v2709 = vadd.f32 %v2669, %v2687
      %v2710 = vadd.f32 %v2670, %v2687
      %v2711 = vadd.f32 %v2671, %v2692
      %v2712 = vadd.f32 %v2672, %v2692
      %v2713 = vadd.f32 %v2673, %v2697
      %v2714 = vadd.f32 %v2674, %v2697
      %v2715 = vadd.f32 %v2675, %v2702
      %v2716 = vadd.f32 %v2676, %v2702
      %v2717 = vadd.f32 %v2677, %v2707
      %v2718 = vadd.f32 %v2678, %v2707
      %v2719 = vxor.u32 %v2709, 2147483648
      %v2720 = vxor.u32 %v2710, 2147483648
      %v2721 = vxor.u32 %v2711, 2147483648
      %v2722 = vxor.u32 %v2712, 2147483648
      %v2723 = vmul.f32 %v2719, 1.442695
      %v2724 = vpow.pop %v2723
      %v2725 = vmul.f32 %v2720, 1.442695
      %v2726 = vpow.pop %v2725
      %v2727 = vmul.f32 %v2721, 1.442695
      %v2728 = vpow.pop %v2727
      %v2729 = vmul.f32 %v2722, 1.442695
      %v2730 = vpow.pop %v2729
      %v2731 = vadd.f32 %v2724, 1.0
      %v2732 = vadd.f32 %v2726, 1.0
      %v2733 = vadd.f32 %v2728, 1.0
      %v2734 = vadd.f32 %v2730, 1.0
      %v2735 = vrcp.pop %v2731
      %v2736 = vmul.f32 1.0, %v2735
      %v2737 = vrcp.pop %v2732
      %v2738 = vmul.f32 1.0, %v2737
      %v2739 = vrcp.pop %v2733
      %v2740 = vmul.f32 1.0, %v2739
      %v2741 = vrcp.pop %v2734
      %v2742 = vmul.f32 1.0, %v2741
      %v2743 = vxor.u32 %v2713, 2147483648
      %v2744 = vxor.u32 %v2714, 2147483648
      %v2745 = vmul.f32 %v2743, 1.442695
      %v2746 = vpow.pop %v2745
      %v2747 = vmul.f32 %v2744, 1.442695
      %v2748 = vpow.pop %v2747
      %v2749 = vadd.f32 %v2746, 1.0
      %v2750 = vadd.f32 %v2748, 1.0
      %v2751 = vrcp.pop %v2749
      %v2752 = vmul.f32 1.0, %v2751
      %v2753 = vrcp.pop %v2750
      %v2754 = vmul.f32 1.0, %v2753
      %v2755 = vxor.u32 %v2715, 2147483648
      %v2756 = vxor.u32 %v2716, 2147483648
      %v2757 = vmul.f32 %v2755, 1.442695
      %v2758 = vpow.pop %v2757
      %v2759 = vmul.f32 %v2756, 1.442695
      %v2760 = vpow.pop %v2759
      %v2761 = vadd.f32 %v2758, 1.0
      %v2762 = vadd.f32 %v2760, 1.0
      %v2763 = vrcp.pop %v2761
      %v2764 = vmul.f32 1.0, %v2763
      %v2765 = vrcp.pop %v2762
      %v2766 = vmul.f32 1.0, %v2765
      %v2767 = vtanh.pop %v2715
      %v2768 = vtanh.pop %v2716
      %v2769 = vtanh.pop %v2717
      %v2770 = vtanh.pop %v2718
      %v2775 = vrot.slane %v419, 7
      %v2776 = vrot.slane %v420, 7
      %v2777 = vrot.slane %v421, 7
      %v2778 = vsel %vm1314, %v2775, %v2777
      %v2779 = vrot.slane %v422, 7
      %v2780 = vsel %vm1314, %v2776, %v2779
      %v2785 = vmul.f32 %v2740, %v2775
      %v2786 = vmul.f32 %v2742, %v2776
      %v2787 = vmul.f32 %v2752, %v2778
      %v2788 = vmul.f32 %v2754, %v2780
      %vm2793 = vcmask 1044480
      %v2794 = vrot.slane %v2767, 3
      %v2795 = vrot.slane %v2769, 3
      %v2796 = vsel %vm2793, %v2794, %v2795
      %v2797 = vrot.slane %v2768, 3
      %v2798 = vrot.slane %v2770, 3
      %v2799 = vsel %vm2793, %v2797, %v2798
      %v2804 = vmul.f32 %v2736, %v2796
      %v2805 = vmul.f32 %v2738, %v2799
      %v2806 = vmul.f32 %v2740, %v2795
      %v2807 = vmul.f32 %v2742, %v2798
      %v2812 = vrot.slane %v2804, 7
      %v2813 = vrot.slane %v2805, 7
      %v2814 = vrot.slane %v2806, 7
      %v2815 = vsel %vm1314, %v2812, %v2814
      %v2816 = vrot.slane %v2807, 7
      %v2817 = vsel %vm1314, %v2813, %v2816
      %v2822 = vadd.f32 %v2785, %v2812
      %v2823 = vadd.f32 %v2786, %v2813
      %v2824 = vadd.f32 %v2787, %v2815
      %v2825 = vadd.f32 %v2788, %v2817
      %v2826 = vtanh.pop %v2822
      %v2827 = vtanh.pop %v2823
      %v2828 = vtanh.pop %v2824
      %v2829 = vtanh.pop %v2825
      %v2834 = vrot.slane %v2826, 7
      %v2835 = vrot.slane %v2827, 7
      %v2836 = vrot.slane %v2828, 7
      %v2837 = vsel %vm1314, %v2834, %v2836
      %v2838 = vrot.slane %v2829, 7
      %v2839 = vsel %vm1314, %v2835, %v2838
      %v2844 = vmul.f32 %v2752, %v2834
      %v2845 = vmul.f32 %v2754, %v2835
      %v2846 = vmul.f32 %v2764, %v2837
      %v2847 = vmul.f32 %v2766, %v2839
      %vm2852 = vcmask 1046528
      %v2853 = vrot.slane %v2822, 1
      %v2854 = vrot.slane %v2824, 1
      %v2855 = vsel %vm2852, %v2853, %v2854
      %v2856 = vrot.slane %v2823, 1
      %v2857 = vrot.slane %v2825, 1
      %v2858 = vsel %vm2852, %v2856, %v2857
      %2863 = vst [vmem:[%s405] sm:$0xff] %v2855
      %2864 = vst [vmem:[%s405 + $0x8] sm:$0xff] %v2858
      %2865 = vst [vmem:[%s405 + $0x10] sm:$0x1] %v2854
      %2866 = vst [vmem:[%s405 + $0x18] sm:$0x1] %v2857
      %vm2871 = vcmask 1045504
      %v2872 = vrot.slane %v2844, 2
      %v2873 = vrot.slane %v2846, 2
      %v2874 = vsel %vm2871, %v2872, %v2873
      %v2875 = vrot.slane %v2845, 2
      %v2876 = vrot.slane %v2847, 2
      %v2877 = vsel %vm2871, %v2875, %v2876
      %2882 = vst [vmem:[%s400] sm:$0xff] %v2874
      %2883 = vst [vmem:[%s400 + $0x8] sm:$0xff] %v2877
      %2884 = vst [vmem:[%s400 + $0x10] sm:$0x1] %v2873
      %2885 = vst [vmem:[%s400 + $0x18] sm:$0x1] %v2876
      %p2886 = scmp.lt.s32.totalorder %s21, 1
      %s2887 = scalar_select %p2886, %s21, 1
      %s2888 = smul.addr %s2887, 4
      %s2889 = smul.addr %s2888, 8
      %s2890 = scalar_lea.vmem %s8, %s2889
      %p2891 = scmp.lt.s32.totalorder %s21, 1
      %s2892 = scalar_select %p2891, %s21, 1
      %s2893 = smul.addr %s2892, 4
      %s2894 = smul.addr %s2893, 8
      %s2895 = scalar_lea.vmem %s9, %s2894
      // Predicated region
      $region53: #{tpu_custom_call.1} parent=51 // pred_check
        %p2896 = pneg %p227
      $region54: #{tpu_custom_call.1} parent=51 // pred_check_branch
        %2898 = sbr.rel (%p2896) target = $region56
      $region55: #{tpu_custom_call.1} parent=51 // pred_region
        _
      $region56: #{tpu_custom_call.1} parent=51 // pred_fallthru
        _
      // Predicated region
      $region57: #{tpu_custom_call.1} parent=51 // pred_check
        %p2899 = pneg %p253
      $region58: #{tpu_custom_call.1} parent=51 // pred_check_branch
        %2901 = sbr.rel (%p2899) target = $region60
      $region59: #{tpu_custom_call.1} parent=51 // pred_region
        _
      $region60: #{tpu_custom_call.1} parent=51 // pred_fallthru
        _
    $region52: #{tpu_custom_call.1} parent=5 // pred_fallthru
      _
    %p2902 = scmp.le.s32.totalorder 2, %s16
    // Predicated region
    $region61: #{tpu_custom_call.1} parent=5 // pred_check
      %p2903 = pneg %p2902
    $region62: #{tpu_custom_call.1} parent=5 // pred_check_branch
      %2905 = sbr.rel (%p2903) target = $region64
    $region63: #{tpu_custom_call.1} parent=5 // pred_region
      %s2906 = ssub.s32 %s16, 2
      // Predicated region
      $region65: #{tpu_custom_call.1} parent=63 // pred_check
        %p2907 = pneg %p233
      $region66: #{tpu_custom_call.1} parent=63 // pred_check_branch
        %2909 = sbr.rel (%p2907) target = $region68
      $region67: #{tpu_custom_call.1} parent=63 // pred_region
        %p2910 = scmp.lt.s32.totalorder %s22, 1
        %s2911 = scalar_select %p2910, %s22, 1
        %s2912 = smul.addr %s2911, 4
        %s2913 = smul.addr %s2912, 8
        %s2914 = scalar_lea.vmem %s8, %s2913
      $region68: #{tpu_custom_call.1} parent=63 // pred_fallthru
        _
      // Predicated region
      $region69: #{tpu_custom_call.1} parent=63 // pred_check
        %p2915 = pneg %p259
      $region70: #{tpu_custom_call.1} parent=63 // pred_check_branch
        %2917 = sbr.rel (%p2915) target = $region72
      $region71: #{tpu_custom_call.1} parent=63 // pred_region
        %p2918 = scmp.lt.s32.totalorder %s22, 1
        %s2919 = scalar_select %p2918, %s22, 1
        %s2920 = smul.addr %s2919, 4
        %s2921 = smul.addr %s2920, 8
        %s2922 = scalar_lea.vmem %s9, %s2921
      $region72: #{tpu_custom_call.1} parent=63 // pred_fallthru
        _
    $region64: #{tpu_custom_call.1} parent=5 // pred_fallthru
      _
  $region6: #{tpu_custom_call.1} parent=0 // loop_footer
    %s20 = sadd.s32 1, %s16
  $region7: #{tpu_custom_call.1} parent=0 // loop_footer_branch
    %15 = sbr.rel target = $region3
  $region8: #{tpu_custom_call.1} parent=0 // loop_exit
    _

</llo_original>
